<compile_context>
chip_gen: v6e
topology: v6e:2x2x1
jax: 0.10.0
libtpu: 0.0.40
codegen_flags: <defaults>
</compile_context>

<pallas_src>
import functools

import jax
import jax.numpy as jnp
from jax import lax
from jax.experimental import pallas as pl
from jax.experimental.pallas import tpu as pltpu

LN_EPS = 1e-5                              # nn.LayerNorm default
_VMEM_LIMIT_BYTES = 48 * 1024 * 1024       # raise scoped VMEM limit (safe on v5e/v6e/v7x)
_TILE_VMEM_BUDGET = 20 * 1024 * 1024       # budget for double-buffered in+out data tiles


def _row_multiple(dtype):
    # second-to-last block dim multiple: 8 for 4-byte, 16 for 2-byte, 32 for 1-byte.
    return {4: 8, 2: 16, 1: 32}.get(jnp.dtype(dtype).itemsize, 8)


def _round_up(n, m):
    return ((n + m - 1) // m) * m


def _auto_tile_rows(rows, d_in, d_out, dtype, max_tile=1024):
    """Largest row tile whose double-buffered in/out tiles fit the VMEM budget.

    Mem-bound kernel: per-grid-step overhead is ~0.35us, so we want a few-MiB
    tile (hundreds of rows), capped at 1024 so real workloads keep enough grid
    steps for megacore sharding / pipelining.
    """
    itemsize = jnp.dtype(dtype).itemsize
    mult = _row_multiple(dtype)
    per_row = 2 * (d_in + d_out) * itemsize            # 2x: double buffering
    t = max(mult, _TILE_VMEM_BUDGET // max(per_row, 1))
    t = min(t, max_tile)
    t = min(t, _round_up(rows, mult))                  # don't blow up tiny inputs
    t = max(mult, (t // mult) * mult)
    return int(t)


# ----------------------------- kernels ------------------------------------ #

def _layernorm_kernel(x_ref, g_ref, b_ref, o_ref):
    # x_ref: (TILE_ROWS, D) tile of the flattened (rows, D) input.
    x = x_ref[...].astype(jnp.float32)
    mean = jnp.mean(x, axis=-1, keepdims=True)
    c = x - mean
    var = jnp.mean(c * c, axis=-1, keepdims=True)      # biased variance, like nn.LayerNorm
    inv = lax.rsqrt(var + LN_EPS)
    o_ref[...] = (c * inv * g_ref[...] + b_ref[...]).astype(o_ref.dtype)


def _prenorm_linear_kernel(x_ref, g_ref, b_ref, w_ref, wb_ref, o_ref):
    # Fused LayerNorm + Linear: normalized tile stays in VMEM and feeds the MXU.
    x = x_ref[...].astype(jnp.float32)
    mean = jnp.mean(x, axis=-1, keepdims=True)
    c = x - mean
    var = jnp.mean(c * c, axis=-1, keepdims=True)
    inv = lax.rsqrt(var + LN_EPS)
    y = c * inv * g_ref[...] + b_ref[...]
    acc = jnp.dot(y, w_ref[...].astype(jnp.float32),
                  preferred_element_type=jnp.float32,
                  precision=lax.Precision.HIGHEST)
    o_ref[...] = (acc + wb_ref[...]).astype(o_ref.dtype)


# ----------------------------- wrappers ------------------------------------ #

@functools.partial(jax.jit, static_argnames=("tile_rows",))
def layernorm_pallas(x, gamma, beta, *, tile_rows=None):
    """LayerNorm over the last axis of x (any leading shape, any row count)."""
    orig_shape = x.shape
    d = orig_shape[-1]
    x2 = x.reshape(-1, d)
    rows = x2.shape[0]
    if tile_rows is None:
        tile_rows = _auto_tile_rows(rows, d, d, x.dtype)
    rows_p = _round_up(rows, tile_rows)
    if rows_p != rows:                                  # ragged tail: pad, then slice off
        x2 = jnp.pad(x2, ((0, rows_p - rows), (0, 0)))
    g2 = gamma.astype(jnp.float32).reshape(1, d)
    b2 = beta.astype(jnp.float32).reshape(1, d)

    out = pl.pallas_call(
        _layernorm_kernel,
        out_shape=jax.ShapeDtypeStruct((rows_p, d), x.dtype),
        grid_spec=pltpu.PrefetchScalarGridSpec(
            num_scalar_prefetch=0,
            grid=(rows_p // tile_rows,),
            in_specs=[
                pl.BlockSpec((tile_rows, d), lambda i: (i, 0)),
                pl.BlockSpec((1, d), lambda i: (0, 0)),   # constant block -> fetched once
                pl.BlockSpec((1, d), lambda i: (0, 0)),
            ],
            out_specs=pl.BlockSpec((tile_rows, d), lambda i: (i, 0)),
        ),
        compiler_params=pltpu.CompilerParams(
            dimension_semantics=("parallel",),
            vmem_limit_bytes=_VMEM_LIMIT_BYTES,
        ),
    )(x2, g2, b2)
    if rows_p != rows:
        out = out[:rows]
    return out.reshape(orig_shape)


@functools.partial(jax.jit, static_argnames=("tile_rows",))
def prenorm_linear_pallas(x, gamma, beta, w, b=None, *, tile_rows=None):
    """Fused LayerNorm(dim) + Linear(dim, out_dim) in one Pallas kernel."""
    orig_shape = x.shape
    d = orig_shape[-1]
    e = w.shape[-1]
    x2 = x.reshape(-1, d)
    rows = x2.shape[0]
    if tile_rows is None:
        tile_rows = _auto_tile_rows(rows, d, e, x.dtype)
    rows_p = _round_up(rows, tile_rows)
    if rows_p != rows:
        x2 = jnp.pad(x2, ((0, rows_p - rows), (0, 0)))
    g2 = gamma.astype(jnp.float32).reshape(1, d)
    bt2 = beta.astype(jnp.float32).reshape(1, d)
    wb = (jnp.zeros((e,), jnp.float32) if b is None else b.astype(jnp.float32)).reshape(1, e)

    out = pl.pallas_call(
        _prenorm_linear_kernel,
        out_shape=jax.ShapeDtypeStruct((rows_p, e), x.dtype),
        grid_spec=pltpu.PrefetchScalarGridSpec(
            num_scalar_prefetch=0,
            grid=(rows_p // tile_rows,),
            in_specs=[
                pl.BlockSpec((tile_rows, d), lambda i: (i, 0)),
                pl.BlockSpec((1, d), lambda i: (0, 0)),
                pl.BlockSpec((1, d), lambda i: (0, 0)),
                pl.BlockSpec((d, e), lambda i: (0, 0)),   # weights resident across steps
                pl.BlockSpec((1, e), lambda i: (0, 0)),
            ],
            out_specs=pl.BlockSpec((tile_rows, e), lambda i: (i, 0)),
        ),
        compiler_params=pltpu.CompilerParams(
            dimension_semantics=("parallel",),
            vmem_limit_bytes=_VMEM_LIMIT_BYTES,
        ),
    )(x2, g2, bt2, w, wb)
    if rows_p != rows:
        out = out[:rows]
    return out.reshape(orig_shape[:-1] + (e,))


# ----------------------------- module-style wrappers ----------------------- #

class LinearParams:
    """Deterministic Linear(dim, out_dim) parameters (for the fused path)."""

    def __init__(self, key, dim, out_dim, bias=True, scale=0.02):
        kw, kb = jax.random.split(key)
        self.w = jax.random.normal(kw, (dim, out_dim), jnp.float32) * scale
        self.b = (jax.random.normal(kb, (out_dim,), jnp.float32) * scale) if bias else None

    def __call__(self, h):
        y = jnp.einsum("...d,de->...e", h, self.w, precision=lax.Precision.HIGHEST)
        return y if self.b is None else y + self.b


class PreNormPallas:
    """JAX/Pallas equivalent of fn(nn.LayerNorm(dim)(x)).

    If `fn` is a LinearParams (the leading Linear of Attention / FeedForward in
    MIL's Transformer), LayerNorm + Linear are fused into one Pallas kernel so
    the normalized tensor never round-trips HBM.
    """

    def __init__(self, dim, fn):
        # nn.LayerNorm default init: weight = ones, bias = zeros.
        self.gamma = jnp.ones((dim,), jnp.float32)
        self.beta = jnp.zeros((dim,), jnp.float32)
        self.fn = fn

    def __call__(self, x, **kwargs):
        if isinstance(self.fn, LinearParams):
            return prenorm_linear_pallas(x, self.gamma, self.beta, self.fn.w, self.fn.b)
        return self.fn(layernorm_pallas(x, self.gamma, self.beta), **kwargs)


if __name__ == "__main__":
    key = jax.random.PRNGKey(0)
    # Small shapes consistent with MIL: hidden_dim = 512 (lane-dense, multiple of 128).
    B, S, D = 2, 8, 512
    E = D                               # e.g. the attention output projection Linear(inner, dim)
    kx, kf = jax.random.split(key)
    x = jax.random.normal(kx, (B, S, D), jnp.float32)

    # Fused PreNorm + Linear path (MXU inside the kernel).
    lin = LinearParams(kf, D, E, bias=True)
    prenorm_fused = PreNormPallas(D, lin)
    out_fused = jax.block_until_ready(prenorm_fused(x))

    # Generic path: arbitrary wrapped fn applied to the Pallas LayerNorm output.
    prenorm_generic = PreNormPallas(D, lambda h: jnp.tanh(h))
    out_generic = jax.block_until_ready(prenorm_generic(x))

    # Pure-JAX reference (gamma = 1, beta = 0).
    mean = jnp.mean(x, axis=-1, keepdims=True)
    var = jnp.mean((x - mean) ** 2, axis=-1, keepdims=True)
    normed = (x - mean) / jnp.sqrt(var + LN_EPS)
    ref_fused = jnp.einsum("bsd,de->bse", normed, lin.w,
                           precision=lax.Precision.HIGHEST) + lin.b
    ref_generic = jnp.tanh(normed)

    assert out_fused.shape == (B, S, E)
    assert out_generic.shape == (B, S, D)
    assert jnp.allclose(out_fused, ref_fused, atol=1e-3, rtol=1e-3)
    assert jnp.allclose(out_generic, ref_generic, atol=1e-4, rtol=1e-4)

    print("KERNEL_OK")
</pallas_src>

<mosaic_0001>
module attributes {stable_mosaic.version = 11 : i64} {
  func.func @_prenorm_linear_kernel(%arg0: i32, %arg1: memref<16x512xf32, #tpu.memory_space<vmem>>, %arg2: memref<1x512xf32, #tpu.memory_space<vmem>>, %arg3: memref<1x512xf32, #tpu.memory_space<vmem>>, %arg4: memref<512x512xf32, #tpu.memory_space<vmem>>, %arg5: memref<1x512xf32, #tpu.memory_space<vmem>>, %arg6: memref<16x512xf32, #tpu.memory_space<vmem>>) attributes {dimension_semantics = [#tpu.dimension_semantics<parallel>], iteration_bounds = array<i64: 1>, scalar_prefetch = 0 : i64, scratch_operands = 0 : i64, tpu.core_type = #tpu.core_type<tc>, window_params = [{transform_indices = @transform_0, window_bounds = array<i64: 16, 512>}, {pipeline_mode = #tpu.pipeline_mode<synchronous>, transform_indices = @transform_1, window_bounds = array<i64: 1, 512>}, {pipeline_mode = #tpu.pipeline_mode<synchronous>, transform_indices = @transform_2, window_bounds = array<i64: 1, 512>}, {pipeline_mode = #tpu.pipeline_mode<synchronous>, transform_indices = @transform_3, window_bounds = array<i64: 512, 512>}, {pipeline_mode = #tpu.pipeline_mode<synchronous>, transform_indices = @transform_4, window_bounds = array<i64: 1, 512>}, {transform_indices = @transform_5, window_bounds = array<i64: 16, 512>}]} {
    %c0 = arith.constant 0 : index
    %c0_0 = arith.constant 0 : index
    %0 = vector.load %arg1[%c0, %c0_0] : memref<16x512xf32, #tpu.memory_space<vmem>>, vector<16x512xf32>
    %cst = arith.constant dense<0.000000e+00> : vector<16xf32>
    %1 = vector.multi_reduction <add>, %0, %cst [1] : vector<16x512xf32> to vector<16xf32>
    %2 = vector.shape_cast %1 : vector<16xf32> to vector<16x1xf32>
    %cst_1 = arith.constant 5.120000e+02 : f32
    %3 = vector.broadcast %cst_1 : f32 to vector<16x1xf32>
    %4 = arith.divf %2, %3 : vector<16x1xf32>
    %5 = vector.broadcast %4 : vector<16x1xf32> to vector<16x512xf32>
    %6 = arith.subf %0, %5 : vector<16x512xf32>
    %7 = arith.mulf %6, %6 : vector<16x512xf32>
    %cst_2 = arith.constant dense<0.000000e+00> : vector<16xf32>
    %8 = vector.multi_reduction <add>, %7, %cst_2 [1] : vector<16x512xf32> to vector<16xf32>
    %9 = vector.shape_cast %8 : vector<16xf32> to vector<16x1xf32>
    %cst_3 = arith.constant 5.120000e+02 : f32
    %10 = vector.broadcast %cst_3 : f32 to vector<16x1xf32>
    %11 = arith.divf %9, %10 : vector<16x1xf32>
    %cst_4 = arith.constant 9.99999974E-6 : f32
    %12 = vector.broadcast %cst_4 : f32 to vector<16x1xf32>
    %13 = arith.addf %11, %12 : vector<16x1xf32>
    %14 = math.rsqrt %13 : vector<16x1xf32>
    %15 = vector.broadcast %14 : vector<16x1xf32> to vector<16x512xf32>
    %16 = arith.mulf %6, %15 : vector<16x512xf32>
    %c0_5 = arith.constant 0 : index
    %c0_6 = arith.constant 0 : index
    %17 = vector.load %arg2[%c0_5, %c0_6] : memref<1x512xf32, #tpu.memory_space<vmem>>, vector<1x512xf32>
    %18 = vector.broadcast %17 : vector<1x512xf32> to vector<16x512xf32>
    %19 = arith.mulf %16, %18 : vector<16x512xf32>
    %c0_7 = arith.constant 0 : index
    %c0_8 = arith.constant 0 : index
    %20 = vector.load %arg3[%c0_7, %c0_8] : memref<1x512xf32, #tpu.memory_space<vmem>>, vector<1x512xf32>
    %21 = vector.broadcast %20 : vector<1x512xf32> to vector<16x512xf32>
    %22 = arith.addf %19, %21 : vector<16x512xf32>
    %c0_9 = arith.constant 0 : index
    %c0_10 = arith.constant 0 : index
    %23 = vector.load %arg4[%c0_9, %c0_10] : memref<512x512xf32, #tpu.memory_space<vmem>>, vector<512x512xf32>
    %cst_11 = arith.constant dense<0.000000e+00> : vector<16x512xf32>
    %24 = tpu.matmul %22, %23, %cst_11 {dimension_numbers = #tpu.dot_dimension_numbers<[1], [0], [0], [1], [0, 0, 1, 1], [], []>, precision = #tpu.contract_precision<fp32>} : vector<16x512xf32>, vector<512x512xf32>, vector<16x512xf32> -> vector<16x512xf32>
    %c0_12 = arith.constant 0 : index
    %c0_13 = arith.constant 0 : index
    %25 = vector.load %arg5[%c0_12, %c0_13] : memref<1x512xf32, #tpu.memory_space<vmem>>, vector<1x512xf32>
    %26 = vector.broadcast %25 : vector<1x512xf32> to vector<16x512xf32>
    %27 = arith.addf %24, %26 : vector<16x512xf32>
    %c0_14 = arith.constant 0 : index
    %c0_15 = arith.constant 0 : index
    %28 = vector.load %arg6[%c0_14, %c0_15] : memref<16x512xf32, #tpu.memory_space<vmem>>, vector<16x512xf32>
    tpu.vector_store %arg6[%c0_14, %c0_15], %27 {strides = array<i32>} : memref<16x512xf32, #tpu.memory_space<vmem>>, vector<16x512xf32>,
    return
  }
  func.func @transform_0(%arg0: i32) -> (i32, i32) {
    %c0_i32 = arith.constant 0 : i32
    %c0_i32_0 = arith.constant 0 : i32
    return %arg0, %c0_i32 : i32, i32
  }
  func.func @transform_1(%arg0: i32) -> (i32, i32) {
    %c0_i32 = arith.constant 0 : i32
    %c0_i32_0 = arith.constant 0 : i32
    %c0_i32_1 = arith.constant 0 : i32
    return %c0_i32, %c0_i32_0 : i32, i32
  }
  func.func @transform_2(%arg0: i32) -> (i32, i32) {
    %c0_i32 = arith.constant 0 : i32
    %c0_i32_0 = arith.constant 0 : i32
    %c0_i32_1 = arith.constant 0 : i32
    return %c0_i32, %c0_i32_0 : i32, i32
  }
  func.func @transform_3(%arg0: i32) -> (i32, i32) {
    %c0_i32 = arith.constant 0 : i32
    %c0_i32_0 = arith.constant 0 : i32
    %c0_i32_1 = arith.constant 0 : i32
    return %c0_i32, %c0_i32_0 : i32, i32
  }
  func.func @transform_4(%arg0: i32) -> (i32, i32) {
    %c0_i32 = arith.constant 0 : i32
    %c0_i32_0 = arith.constant 0 : i32
    %c0_i32_1 = arith.constant 0 : i32
    return %c0_i32, %c0_i32_0 : i32, i32
  }
  func.func @transform_5(%arg0: i32) -> (i32, i32) {
    %c0_i32 = arith.constant 0 : i32
    %c0_i32_0 = arith.constant 0 : i32
    return %arg0, %c0_i32 : i32, i32
  }
}

</mosaic_0001>

<llo_original>
// kernel: prenorm_linear_pallas.1
$region0: #{prenorm_linear_pallas.1}
  #allocation0 [shape = 'u32[]', space=smem, size = 0x4, offset = 0x4, fixed_abs, tag = 'smem constant byte address 0x4 - core index']
  #allocation1 [shape = 'u32[144,128]{1,0:T(1,128)}', space=vmem, size = 0x12000, scoped, tag = 'internal scratch']
  %s0 = inlined_call_operand.hbm [shape: f32[16,512], index: 0, kind: input, shape index: {}]
  %s1 = inlined_call_operand.vmem [shape: f32[1,512], index: 1, kind: input, shape index: {}]
  %s2 = inlined_call_operand.vmem [shape: f32[1,512], index: 2, kind: input, shape index: {}]
  %s3 = inlined_call_operand.hbm [shape: f32[512,512], index: 3, kind: input, shape index: {}]
  %s4 = inlined_call_operand.vmem [shape: f32[1,512], index: 4, kind: input, shape index: {}]
  %s5 = inlined_call_operand.hbm [shape: f32[16,512], index: 5, kind: output, shape index: {}]
  %s6 = sld [smem:[#allocation0]]
  $region38: #{prenorm_linear_pallas.1} parent=0
    _
  %s8 = ssub.s32 1, %s6
  %s9 = scalar_select 0, %s8, %s6
  $region1: #{prenorm_linear_pallas.1} parent=0
    #allocation2 [shape = 'u8[32768]{0}', space=vmem, size = 0x8000, scoped, tag = 'input window, operand 0, single buffered']
    #allocation3 [shape = 's32[1]{0}', space=sflag, size = 0x4, scoped, tag = 'scoped memory for prenorm_linear_pallas.1']
    #allocation4 [shape = 's32[1]{0}', space=sflag, size = 0x4, scoped, tag = 'scoped memory for prenorm_linear_pallas.1']
    #allocation5 [shape = 'u8[1048576]{0}', space=vmem, size = 0x100000, scoped, tag = 'input window, operand 3, single buffered']
    #allocation6 [shape = 's32[1]{0}', space=sflag, size = 0x4, scoped, tag = 'scoped memory for prenorm_linear_pallas.1']
    #allocation7 [shape = 'u8[32768]{0}', space=vmem, size = 0x8000, scoped, tag = 'output window, operand 0, single buffered']
    %10 = vsyncpa [#allocation3], 0
    %11 = vsyncpa [#allocation6], 0
    %12 = vsyncpa [#allocation4], 0
    // Predicated region
    $region2: #{prenorm_linear_pallas.1} parent=1 // pred_check
      _
    $region3: #{prenorm_linear_pallas.1} parent=1 // pred_check_branch
      %14 = sbr.rel (0) target = $region5
    $region4: #{prenorm_linear_pallas.1} parent=1 // pred_region
      %s16 = ssub.s32 1024, 1024
      %17 = vsyncadd [#allocation3], %s16
      %s18 = sshll.u32 [#allocation2], 4
      %s19 = int_to_ptr.vmem [resolvable:$true] %s18
      %24 = dma.hbm_to_vmem [thread:$0]  %s0, 1024, %s19, [#allocation3], 512, 512, 32
    $region5: #{prenorm_linear_pallas.1} parent=1 // pred_fallthru
      _
    // Predicated region
    $region6: #{prenorm_linear_pallas.1} parent=1 // pred_check
      _
    $region7: #{prenorm_linear_pallas.1} parent=1 // pred_check_branch
      %26 = sbr.rel (0) target = $region9
    $region8: #{prenorm_linear_pallas.1} parent=1 // pred_region
      _
    $region9: #{prenorm_linear_pallas.1} parent=1 // pred_fallthru
      _
    // Predicated region
    $region10: #{prenorm_linear_pallas.1} parent=1 // pred_check
      _
    $region11: #{prenorm_linear_pallas.1} parent=1 // pred_check_branch
      %28 = sbr.rel (0) target = $region13
    $region12: #{prenorm_linear_pallas.1} parent=1 // pred_region
      _
    $region13: #{prenorm_linear_pallas.1} parent=1 // pred_fallthru
      _
    // Predicated region
    $region14: #{prenorm_linear_pallas.1} parent=1 // pred_check
      _
    $region15: #{prenorm_linear_pallas.1} parent=1 // pred_check_branch
      %30 = sbr.rel (0) target = $region17
    $region16: #{prenorm_linear_pallas.1} parent=1 // pred_region
      %s32 = ssub.s32 32768, 32768
      %33 = vsyncadd [#allocation6], %s32
      %s34 = sshll.u32 [#allocation5], 4
      %s35 = int_to_ptr.vmem [resolvable:$true] %s34
      %40 = dma.hbm_to_vmem [thread:$0]  %s3, 32768, %s35, [#allocation6], 512, 512, 32
    $region17: #{prenorm_linear_pallas.1} parent=1 // pred_fallthru
      _
    // Predicated region
    $region18: #{prenorm_linear_pallas.1} parent=1 // pred_check
      _
    $region19: #{prenorm_linear_pallas.1} parent=1 // pred_check_branch
      %42 = sbr.rel (0) target = $region21
    $region20: #{prenorm_linear_pallas.1} parent=1 // pred_region
      _
    $region21: #{prenorm_linear_pallas.1} parent=1 // pred_fallthru
      _
    // Predicated region
    $region22: #{prenorm_linear_pallas.1} parent=1 // pred_check
      _
    $region23: #{prenorm_linear_pallas.1} parent=1 // pred_check_branch
      %44 = sbr.rel (0) target = $region25
    $region24: #{prenorm_linear_pallas.1} parent=1 // pred_region
      %45 = dma.done [#allocation3], 1024
    $region25: #{prenorm_linear_pallas.1} parent=1 // pred_fallthru
      _
    // Predicated region
    $region26: #{prenorm_linear_pallas.1} parent=1 // pred_check
      _
    $region27: #{prenorm_linear_pallas.1} parent=1 // pred_check_branch
      %47 = sbr.rel (0) target = $region29
    $region28: #{prenorm_linear_pallas.1} parent=1 // pred_region
      %48 = dma.done [#allocation6], 32768
    $region29: #{prenorm_linear_pallas.1} parent=1 // pred_fallthru
      _
    %v49 = vld [vmem:[#allocation2] sm:$0xff]
    %v50 = vld [vmem:[#allocation2 + $0x8] sm:$0xff]
    %v51 = vld [vmem:[#allocation2 + $0x10] sm:$0xff]
    %v52 = vld [vmem:[#allocation2 + $0x18] sm:$0xff]
    %v53 = vld [vmem:[#allocation2 + $0x20] sm:$0xff]
    %v54 = vld [vmem:[#allocation2 + $0x28] sm:$0xff]
    %v55 = vld [vmem:[#allocation2 + $0x30] sm:$0xff]
    %v56 = vld [vmem:[#allocation2 + $0x38] sm:$0xff]
    %v57 = vadd.f32 %v49, %v50
    %v58 = vadd.f32 %v57, %v51
    %v59 = vadd.f32 %v58, %v52
    %60 = vadd.xlane.f32.xlu0 %v59
    %v61 = vpop.xlane.xlu0 %60
    %v62 = vadd.f32 %v53, %v54
    %v63 = vadd.f32 %v62, %v55
    %v64 = vadd.f32 %v63, %v56
    %65 = vadd.xlane.f32.xlu0 %v64
    %v66 = vpop.xlane.xlu0 %65
    %v67 = vrcp.pop 512.0
    %v68 = vmul.f32 %v61, %v67
    %v69 = vmul.f32 %v66, %v67
    %v70 = vsub.f32 %v49, %v68
    %v71 = vsub.f32 %v50, %v68
    %v72 = vsub.f32 %v51, %v68
    %v73 = vsub.f32 %v52, %v68
    %v74 = vsub.f32 %v53, %v69
    %v75 = vsub.f32 %v54, %v69
    %v76 = vsub.f32 %v55, %v69
    %v77 = vsub.f32 %v56, %v69
    %v78 = vmul.f32 %v70, %v70
    %v79 = vmul.f32 %v71, %v71
    %v80 = vmul.f32 %v72, %v72
    %v81 = vmul.f32 %v73, %v73
    %v82 = vmul.f32 %v74, %v74
    %v83 = vmul.f32 %v75, %v75
    %v84 = vmul.f32 %v76, %v76
    %v85 = vmul.f32 %v77, %v77
    %v86 = vadd.f32 %v78, %v79
    %v87 = vadd.f32 %v86, %v80
    %v88 = vadd.f32 %v87, %v81
    %89 = vadd.xlane.f32.xlu0 %v88
    %v90 = vpop.xlane.xlu0 %89
    %v91 = vadd.f32 %v82, %v83
    %v92 = vadd.f32 %v91, %v84
    %v93 = vadd.f32 %v92, %v85
    %94 = vadd.xlane.f32.xlu0 %v93
    %v95 = vpop.xlane.xlu0 %94
    %v96 = vmul.f32 %v90, %v67
    %v97 = vmul.f32 %v95, %v67
    %v98 = vadd.f32 %v96, 1e-05
    %v99 = vadd.f32 %v97, 1e-05
    %v100 = vrsqrt.pop %v98
    %v101 = vrsqrt.pop %v99
    %v102 = vmul.f32 %v70, %v100
    %v103 = vmul.f32 %v71, %v100
    %v104 = vmul.f32 %v72, %v100
    %v105 = vmul.f32 %v73, %v100
    %v106 = vmul.f32 %v74, %v101
    %v107 = vmul.f32 %v75, %v101
    %v108 = vmul.f32 %v76, %v101
    %v109 = vmul.f32 %v77, %v101
    %v110 = vld [vmem:[%s1] sm:$0xf]
    %v112 = vlaneseq
    %v113 = vshrl.u32 %v112, 7
    %v114 = vsub.s32 0, %v113
    %v115 = vrot.slane %v110, %v114
    %v116 = vlaneseq
    %v117 = vshrl.u32 %v116, 7
    %v118 = vsub.s32 1, %v117
    %v119 = vrot.slane %v110, %v118
    %v120 = vlaneseq
    %v121 = vshrl.u32 %v120, 7
    %v122 = vsub.s32 2, %v121
    %v123 = vrot.slane %v110, %v122
    %v124 = vlaneseq
    %v125 = vshrl.u32 %v124, 7
    %v126 = vsub.s32 3, %v125
    %v127 = vrot.slane %v110, %v126
    %v132 = vmul.f32 %v102, %v115
    %v133 = vmul.f32 %v103, %v119
    %v134 = vmul.f32 %v104, %v123
    %v135 = vmul.f32 %v105, %v127
    %v136 = vmul.f32 %v106, %v115
    %v137 = vmul.f32 %v107, %v119
    %v138 = vmul.f32 %v108, %v123
    %v139 = vmul.f32 %v109, %v127
    %v140 = vld [vmem:[%s2] sm:$0xf]
    %v142 = vlaneseq
    %v143 = vshrl.u32 %v142, 7
    %v144 = vsub.s32 0, %v143
    %v145 = vrot.slane %v140, %v144
    %v146 = vlaneseq
    %v147 = vshrl.u32 %v146, 7
    %v148 = vsub.s32 1, %v147
    %v149 = vrot.slane %v140, %v148
    %v150 = vlaneseq
    %v151 = vshrl.u32 %v150, 7
    %v152 = vsub.s32 2, %v151
    %v153 = vrot.slane %v140, %v152
    %v154 = vlaneseq
    %v155 = vshrl.u32 %v154, 7
    %v156 = vsub.s32 3, %v155
    %v157 = vrot.slane %v140, %v156
    %v162 = vadd.f32 %v132, %v145
    %v163 = vadd.f32 %v133, %v149
    %v164 = vadd.f32 %v134, %v153
    %v165 = vadd.f32 %v135, %v157
    %v166 = vadd.f32 %v136, %v145
    %v167 = vadd.f32 %v137, %v149
    %v168 = vadd.f32 %v138, %v153
    %v169 = vadd.f32 %v139, %v157
    %v170 = vld [vmem:[#allocation5] sm:$0xff]
    %v171 = vld [vmem:[#allocation5 + $0x8] sm:$0xff]
    %v172 = vld [vmem:[#allocation5 + $0x10] sm:$0xff]
    %v173 = vld [vmem:[#allocation5 + $0x18] sm:$0xff]
    %v174 = vld [vmem:[#allocation5 + $0x20] sm:$0xff]
    %v175 = vld [vmem:[#allocation5 + $0x28] sm:$0xff]
    %v176 = vld [vmem:[#allocation5 + $0x30] sm:$0xff]
    %v177 = vld [vmem:[#allocation5 + $0x38] sm:$0xff]
    %v178 = vld [vmem:[#allocation5 + $0x40] sm:$0xff]
    %v179 = vld [vmem:[#allocation5 + $0x48] sm:$0xff]
    %v180 = vld [vmem:[#allocation5 + $0x50] sm:$0xff]
    %v181 = vld [vmem:[#allocation5 + $0x58] sm:$0xff]
    %v182 = vld [vmem:[#allocation5 + $0x60] sm:$0xff]
    %v183 = vld [vmem:[#allocation5 + $0x68] sm:$0xff]
    %v184 = vld [vmem:[#allocation5 + $0x70] sm:$0xff]
    %v185 = vld [vmem:[#allocation5 + $0x78] sm:$0xff]
    %v186 = vld [vmem:[#allocation5 + $0x80] sm:$0xff]
    %v187 = vld [vmem:[#allocation5 + $0x88] sm:$0xff]
    %v188 = vld [vmem:[#allocation5 + $0x90] sm:$0xff]
    %v189 = vld [vmem:[#allocation5 + $0x98] sm:$0xff]
    %v190 = vld [vmem:[#allocation5 + $0xa0] sm:$0xff]
    %v191 = vld [vmem:[#allocation5 + $0xa8] sm:$0xff]
    %v192 = vld [vmem:[#allocation5 + $0xb0] sm:$0xff]
    %v193 = vld [vmem:[#allocation5 + $0xb8] sm:$0xff]
    %v194 = vld [vmem:[#allocation5 + $0xc0] sm:$0xff]
    %v195 = vld [vmem:[#allocation5 + $0xc8] sm:$0xff]
    %v196 = vld [vmem:[#allocation5 + $0xd0] sm:$0xff]
    %v197 = vld [vmem:[#allocation5 + $0xd8] sm:$0xff]
    %v198 = vld [vmem:[#allocation5 + $0xe0] sm:$0xff]
    %v199 = vld [vmem:[#allocation5 + $0xe8] sm:$0xff]
    %v200 = vld [vmem:[#allocation5 + $0xf0] sm:$0xff]
    %v201 = vld [vmem:[#allocation5 + $0xf8] sm:$0xff]
    %v202 = vld [vmem:[#allocation5 + $0x100] sm:$0xff]
    %v203 = vld [vmem:[#allocation5 + $0x108] sm:$0xff]
    %v204 = vld [vmem:[#allocation5 + $0x110] sm:$0xff]
    %v205 = vld [vmem:[#allocation5 + $0x118] sm:$0xff]
    %v206 = vld [vmem:[#allocation5 + $0x120] sm:$0xff]
    %v207 = vld [vmem:[#allocation5 + $0x128] sm:$0xff]
    %v208 = vld [vmem:[#allocation5 + $0x130] sm:$0xff]
    %v209 = vld [vmem:[#allocation5 + $0x138] sm:$0xff]
    %v210 = vld [vmem:[#allocation5 + $0x140] sm:$0xff]
    %v211 = vld [vmem:[#allocation5 + $0x148] sm:$0xff]
    %v212 = vld [vmem:[#allocation5 + $0x150] sm:$0xff]
    %v213 = vld [vmem:[#allocation5 + $0x158] sm:$0xff]
    %v214 = vld [vmem:[#allocation5 + $0x160] sm:$0xff]
    %v215 = vld [vmem:[#allocation5 + $0x168] sm:$0xff]
    %v216 = vld [vmem:[#allocation5 + $0x170] sm:$0xff]
    %v217 = vld [vmem:[#allocation5 + $0x178] sm:$0xff]
    %v218 = vld [vmem:[#allocation5 + $0x180] sm:$0xff]
    %v219 = vld [vmem:[#allocation5 + $0x188] sm:$0xff]
    %v220 = vld [vmem:[#allocation5 + $0x190] sm:$0xff]
    %v221 = vld [vmem:[#allocation5 + $0x198] sm:$0xff]
    %v222 = vld [vmem:[#allocation5 + $0x1a0] sm:$0xff]
    %v223 = vld [vmem:[#allocation5 + $0x1a8] sm:$0xff]
    %v224 = vld [vmem:[#allocation5 + $0x1b0] sm:$0xff]
    %v225 = vld [vmem:[#allocation5 + $0x1b8] sm:$0xff]
    %v226 = vld [vmem:[#allocation5 + $0x1c0] sm:$0xff]
    %v227 = vld [vmem:[#allocation5 + $0x1c8] sm:$0xff]
    %v228 = vld [vmem:[#allocation5 + $0x1d0] sm:$0xff]
    %v229 = vld [vmem:[#allocation5 + $0x1d8] sm:$0xff]
    %v230 = vld [vmem:[#allocation5 + $0x1e0] sm:$0xff]
    %v231 = vld [vmem:[#allocation5 + $0x1e8] sm:$0xff]
    %v232 = vld [vmem:[#allocation5 + $0x1f0] sm:$0xff]
    %v233 = vld [vmem:[#allocation5 + $0x1f8] sm:$0xff]
    %v234 = vld [vmem:[#allocation5 + $0x200] sm:$0xff]
    %v235 = vld [vmem:[#allocation5 + $0x208] sm:$0xff]
    %v236 = vld [vmem:[#allocation5 + $0x210] sm:$0xff]
    %v237 = vld [vmem:[#allocation5 + $0x218] sm:$0xff]
    %v238 = vld [vmem:[#allocation5 + $0x220] sm:$0xff]
    %v239 = vld [vmem:[#allocation5 + $0x228] sm:$0xff]
    %v240 = vld [vmem:[#allocation5 + $0x230] sm:$0xff]
    %v241 = vld [vmem:[#allocation5 + $0x238] sm:$0xff]
    %v242 = vld [vmem:[#allocation5 + $0x240] sm:$0xff]
    %v243 = vld [vmem:[#allocation5 + $0x248] sm:$0xff]
    %v244 = vld [vmem:[#allocation5 + $0x250] sm:$0xff]
    %v245 = vld [vmem:[#allocation5 + $0x258] sm:$0xff]
    %v246 = vld [vmem:[#allocation5 + $0x260] sm:$0xff]
    %v247 = vld [vmem:[#allocation5 + $0x268] sm:$0xff]
    %v248 = vld [vmem:[#allocation5 + $0x270] sm:$0xff]
    %v249 = vld [vmem:[#allocation5 + $0x278] sm:$0xff]
    %v250 = vld [vmem:[#allocation5 + $0x280] sm:$0xff]
    %v251 = vld [vmem:[#allocation5 + $0x288] sm:$0xff]
    %v252 = vld [vmem:[#allocation5 + $0x290] sm:$0xff]
    %v253 = vld [vmem:[#allocation5 + $0x298] sm:$0xff]
    %v254 = vld [vmem:[#allocation5 + $0x2a0] sm:$0xff]
    %v255 = vld [vmem:[#allocation5 + $0x2a8] sm:$0xff]
    %v256 = vld [vmem:[#allocation5 + $0x2b0] sm:$0xff]
    %v257 = vld [vmem:[#allocation5 + $0x2b8] sm:$0xff]
    %v258 = vld [vmem:[#allocation5 + $0x2c0] sm:$0xff]
    %v259 = vld [vmem:[#allocation5 + $0x2c8] sm:$0xff]
    %v260 = vld [vmem:[#allocation5 + $0x2d0] sm:$0xff]
    %v261 = vld [vmem:[#allocation5 + $0x2d8] sm:$0xff]
    %v262 = vld [vmem:[#allocation5 + $0x2e0] sm:$0xff]
    %v263 = vld [vmem:[#allocation5 + $0x2e8] sm:$0xff]
    %v264 = vld [vmem:[#allocation5 + $0x2f0] sm:$0xff]
    %v265 = vld [vmem:[#allocation5 + $0x2f8] sm:$0xff]
    %v266 = vld [vmem:[#allocation5 + $0x300] sm:$0xff]
    %v267 = vld [vmem:[#allocation5 + $0x308] sm:$0xff]
    %v268 = vld [vmem:[#allocation5 + $0x310] sm:$0xff]
    %v269 = vld [vmem:[#allocation5 + $0x318] sm:$0xff]
    %v270 = vld [vmem:[#allocation5 + $0x320] sm:$0xff]
    %v271 = vld [vmem:[#allocation5 + $0x328] sm:$0xff]
    %v272 = vld [vmem:[#allocation5 + $0x330] sm:$0xff]
    %v273 = vld [vmem:[#allocation5 + $0x338] sm:$0xff]
    %v274 = vld [vmem:[#allocation5 + $0x340] sm:$0xff]
    %v275 = vld [vmem:[#allocation5 + $0x348] sm:$0xff]
    %v276 = vld [vmem:[#allocation5 + $0x350] sm:$0xff]
    %v277 = vld [vmem:[#allocation5 + $0x358] sm:$0xff]
    %v278 = vld [vmem:[#allocation5 + $0x360] sm:$0xff]
    %v279 = vld [vmem:[#allocation5 + $0x368] sm:$0xff]
    %v280 = vld [vmem:[#allocation5 + $0x370] sm:$0xff]
    %v281 = vld [vmem:[#allocation5 + $0x378] sm:$0xff]
    %v282 = vld [vmem:[#allocation5 + $0x380] sm:$0xff]
    %v283 = vld [vmem:[#allocation5 + $0x388] sm:$0xff]
    %v284 = vld [vmem:[#allocation5 + $0x390] sm:$0xff]
    %v285 = vld [vmem:[#allocation5 + $0x398] sm:$0xff]
    %v286 = vld [vmem:[#allocation5 + $0x3a0] sm:$0xff]
    %v287 = vld [vmem:[#allocation5 + $0x3a8] sm:$0xff]
    %v288 = vld [vmem:[#allocation5 + $0x3b0] sm:$0xff]
    %v289 = vld [vmem:[#allocation5 + $0x3b8] sm:$0xff]
    %v290 = vld [vmem:[#allocation5 + $0x3c0] sm:$0xff]
    %v291 = vld [vmem:[#allocation5 + $0x3c8] sm:$0xff]
    %v292 = vld [vmem:[#allocation5 + $0x3d0] sm:$0xff]
    %v293 = vld [vmem:[#allocation5 + $0x3d8] sm:$0xff]
    %v294 = vld [vmem:[#allocation5 + $0x3e0] sm:$0xff]
    %v295 = vld [vmem:[#allocation5 + $0x3e8] sm:$0xff]
    %v296 = vld [vmem:[#allocation5 + $0x3f0] sm:$0xff]
    %v297 = vld [vmem:[#allocation5 + $0x3f8] sm:$0xff]
    %v298 = vld [vmem:[#allocation5 + $0x400] sm:$0xff]
    %v299 = vld [vmem:[#allocation5 + $0x408] sm:$0xff]
    %v300 = vld [vmem:[#allocation5 + $0x410] sm:$0xff]
    %v301 = vld [vmem:[#allocation5 + $0x418] sm:$0xff]
    %v302 = vld [vmem:[#allocation5 + $0x420] sm:$0xff]
    %v303 = vld [vmem:[#allocation5 + $0x428] sm:$0xff]
    %v304 = vld [vmem:[#allocation5 + $0x430] sm:$0xff]
    %v305 = vld [vmem:[#allocation5 + $0x438] sm:$0xff]
    %v306 = vld [vmem:[#allocation5 + $0x440] sm:$0xff]
    %v307 = vld [vmem:[#allocation5 + $0x448] sm:$0xff]
    %v308 = vld [vmem:[#allocation5 + $0x450] sm:$0xff]
    %v309 = vld [vmem:[#allocation5 + $0x458] sm:$0xff]
    %v310 = vld [vmem:[#allocation5 + $0x460] sm:$0xff]
    %v311 = vld [vmem:[#allocation5 + $0x468] sm:$0xff]
    %v312 = vld [vmem:[#allocation5 + $0x470] sm:$0xff]
    %v313 = vld [vmem:[#allocation5 + $0x478] sm:$0xff]
    %v314 = vld [vmem:[#allocation5 + $0x480] sm:$0xff]
    %v315 = vld [vmem:[#allocation5 + $0x488] sm:$0xff]
    %v316 = vld [vmem:[#allocation5 + $0x490] sm:$0xff]
    %v317 = vld [vmem:[#allocation5 + $0x498] sm:$0xff]
    %v318 = vld [vmem:[#allocation5 + $0x4a0] sm:$0xff]
    %v319 = vld [vmem:[#allocation5 + $0x4a8] sm:$0xff]
    %v320 = vld [vmem:[#allocation5 + $0x4b0] sm:$0xff]
    %v321 = vld [vmem:[#allocation5 + $0x4b8] sm:$0xff]
    %v322 = vld [vmem:[#allocation5 + $0x4c0] sm:$0xff]
    %v323 = vld [vmem:[#allocation5 + $0x4c8] sm:$0xff]
    %v324 = vld [vmem:[#allocation5 + $0x4d0] sm:$0xff]
    %v325 = vld [vmem:[#allocation5 + $0x4d8] sm:$0xff]
    %v326 = vld [vmem:[#allocation5 + $0x4e0] sm:$0xff]
    %v327 = vld [vmem:[#allocation5 + $0x4e8] sm:$0xff]
    %v328 = vld [vmem:[#allocation5 + $0x4f0] sm:$0xff]
    %v329 = vld [vmem:[#allocation5 + $0x4f8] sm:$0xff]
    %v330 = vld [vmem:[#allocation5 + $0x500] sm:$0xff]
    %v331 = vld [vmem:[#allocation5 + $0x508] sm:$0xff]
    %v332 = vld [vmem:[#allocation5 + $0x510] sm:$0xff]
    %v333 = vld [vmem:[#allocation5 + $0x518] sm:$0xff]
    %v334 = vld [vmem:[#allocation5 + $0x520] sm:$0xff]
    %v335 = vld [vmem:[#allocation5 + $0x528] sm:$0xff]
    %v336 = vld [vmem:[#allocation5 + $0x530] sm:$0xff]
    %v337 = vld [vmem:[#allocation5 + $0x538] sm:$0xff]
    %v338 = vld [vmem:[#allocation5 + $0x540] sm:$0xff]
    %v339 = vld [vmem:[#allocation5 + $0x548] sm:$0xff]
    %v340 = vld [vmem:[#allocation5 + $0x550] sm:$0xff]
    %v341 = vld [vmem:[#allocation5 + $0x558] sm:$0xff]
    %v342 = vld [vmem:[#allocation5 + $0x560] sm:$0xff]
    %v343 = vld [vmem:[#allocation5 + $0x568] sm:$0xff]
    %v344 = vld [vmem:[#allocation5 + $0x570] sm:$0xff]
    %v345 = vld [vmem:[#allocation5 + $0x578] sm:$0xff]
    %v346 = vld [vmem:[#allocation5 + $0x580] sm:$0xff]
    %v347 = vld [vmem:[#allocation5 + $0x588] sm:$0xff]
    %v348 = vld [vmem:[#allocation5 + $0x590] sm:$0xff]
    %v349 = vld [vmem:[#allocation5 + $0x598] sm:$0xff]
    %v350 = vld [vmem:[#allocation5 + $0x5a0] sm:$0xff]
    %v351 = vld [vmem:[#allocation5 + $0x5a8] sm:$0xff]
    %v352 = vld [vmem:[#allocation5 + $0x5b0] sm:$0xff]
    %v353 = vld [vmem:[#allocation5 + $0x5b8] sm:$0xff]
    %v354 = vld [vmem:[#allocation5 + $0x5c0] sm:$0xff]
    %v355 = vld [vmem:[#allocation5 + $0x5c8] sm:$0xff]
    %v356 = vld [vmem:[#allocation5 + $0x5d0] sm:$0xff]
    %v357 = vld [vmem:[#allocation5 + $0x5d8] sm:$0xff]
    %v358 = vld [vmem:[#allocation5 + $0x5e0] sm:$0xff]
    %v359 = vld [vmem:[#allocation5 + $0x5e8] sm:$0xff]
    %v360 = vld [vmem:[#allocation5 + $0x5f0] sm:$0xff]
    %v361 = vld [vmem:[#allocation5 + $0x5f8] sm:$0xff]
    %v362 = vld [vmem:[#allocation5 + $0x600] sm:$0xff]
    %v363 = vld [vmem:[#allocation5 + $0x608] sm:$0xff]
    %v364 = vld [vmem:[#allocation5 + $0x610] sm:$0xff]
    %v365 = vld [vmem:[#allocation5 + $0x618] sm:$0xff]
    %v366 = vld [vmem:[#allocation5 + $0x620] sm:$0xff]
    %v367 = vld [vmem:[#allocation5 + $0x628] sm:$0xff]
    %v368 = vld [vmem:[#allocation5 + $0x630] sm:$0xff]
    %v369 = vld [vmem:[#allocation5 + $0x638] sm:$0xff]
    %v370 = vld [vmem:[#allocation5 + $0x640] sm:$0xff]
    %v371 = vld [vmem:[#allocation5 + $0x648] sm:$0xff]
    %v372 = vld [vmem:[#allocation5 + $0x650] sm:$0xff]
    %v373 = vld [vmem:[#allocation5 + $0x658] sm:$0xff]
    %v374 = vld [vmem:[#allocation5 + $0x660] sm:$0xff]
    %v375 = vld [vmem:[#allocation5 + $0x668] sm:$0xff]
    %v376 = vld [vmem:[#allocation5 + $0x670] sm:$0xff]
    %v377 = vld [vmem:[#allocation5 + $0x678] sm:$0xff]
    %v378 = vld [vmem:[#allocation5 + $0x680] sm:$0xff]
    %v379 = vld [vmem:[#allocation5 + $0x688] sm:$0xff]
    %v380 = vld [vmem:[#allocation5 + $0x690] sm:$0xff]
    %v381 = vld [vmem:[#allocation5 + $0x698] sm:$0xff]
    %v382 = vld [vmem:[#allocation5 + $0x6a0] sm:$0xff]
    %v383 = vld [vmem:[#allocation5 + $0x6a8] sm:$0xff]
    %v384 = vld [vmem:[#allocation5 + $0x6b0] sm:$0xff]
    %v385 = vld [vmem:[#allocation5 + $0x6b8] sm:$0xff]
    %v386 = vld [vmem:[#allocation5 + $0x6c0] sm:$0xff]
    %v387 = vld [vmem:[#allocation5 + $0x6c8] sm:$0xff]
    %v388 = vld [vmem:[#allocation5 + $0x6d0] sm:$0xff]
    %v389 = vld [vmem:[#allocation5 + $0x6d8] sm:$0xff]
    %v390 = vld [vmem:[#allocation5 + $0x6e0] sm:$0xff]
    %v391 = vld [vmem:[#allocation5 + $0x6e8] sm:$0xff]
    %v392 = vld [vmem:[#allocation5 + $0x6f0] sm:$0xff]
    %v393 = vld [vmem:[#allocation5 + $0x6f8] sm:$0xff]
    %v394 = vld [vmem:[#allocation5 + $0x700] sm:$0xff]
    %v395 = vld [vmem:[#allocation5 + $0x708] sm:$0xff]
    %v396 = vld [vmem:[#allocation5 + $0x710] sm:$0xff]
    %v397 = vld [vmem:[#allocation5 + $0x718] sm:$0xff]
    %v398 = vld [vmem:[#allocation5 + $0x720] sm:$0xff]
    %v399 = vld [vmem:[#allocation5 + $0x728] sm:$0xff]
    %v400 = vld [vmem:[#allocation5 + $0x730] sm:$0xff]
    %v401 = vld [vmem:[#allocation5 + $0x738] sm:$0xff]
    %v402 = vld [vmem:[#allocation5 + $0x740] sm:$0xff]
    %v403 = vld [vmem:[#allocation5 + $0x748] sm:$0xff]
    %v404 = vld [vmem:[#allocation5 + $0x750] sm:$0xff]
    %v405 = vld [vmem:[#allocation5 + $0x758] sm:$0xff]
    %v406 = vld [vmem:[#allocation5 + $0x760] sm:$0xff]
    %v407 = vld [vmem:[#allocation5 + $0x768] sm:$0xff]
    %v408 = vld [vmem:[#allocation5 + $0x770] sm:$0xff]
    %v409 = vld [vmem:[#allocation5 + $0x778] sm:$0xff]
    %v410 = vld [vmem:[#allocation5 + $0x780] sm:$0xff]
    %v411 = vld [vmem:[#allocation5 + $0x788] sm:$0xff]
    %v412 = vld [vmem:[#allocation5 + $0x790] sm:$0xff]
    %v413 = vld [vmem:[#allocation5 + $0x798] sm:$0xff]
    %v414 = vld [vmem:[#allocation5 + $0x7a0] sm:$0xff]
    %v415 = vld [vmem:[#allocation5 + $0x7a8] sm:$0xff]
    %v416 = vld [vmem:[#allocation5 + $0x7b0] sm:$0xff]
    %v417 = vld [vmem:[#allocation5 + $0x7b8] sm:$0xff]
    %v418 = vld [vmem:[#allocation5 + $0x7c0] sm:$0xff]
    %v419 = vld [vmem:[#allocation5 + $0x7c8] sm:$0xff]
    %v420 = vld [vmem:[#allocation5 + $0x7d0] sm:$0xff]
    %v421 = vld [vmem:[#allocation5 + $0x7d8] sm:$0xff]
    %v422 = vld [vmem:[#allocation5 + $0x7e0] sm:$0xff]
    %v423 = vld [vmem:[#allocation5 + $0x7e8] sm:$0xff]
    %v424 = vld [vmem:[#allocation5 + $0x7f0] sm:$0xff]
    %v425 = vld [vmem:[#allocation5 + $0x7f8] sm:$0xff]
    %v426 = vld [vmem:[%s4] sm:$0xf]
    %v428 = vlaneseq
    %v429 = vshrl.u32 %v428, 7
    %v430 = vsub.s32 0, %v429
    %v431 = vrot.slane %v426, %v430
    %v432 = vlaneseq
    %v433 = vshrl.u32 %v432, 7
    %v434 = vsub.s32 1, %v433
    %v435 = vrot.slane %v426, %v434
    %v436 = vlaneseq
    %v437 = vshrl.u32 %v436, 7
    %v438 = vsub.s32 2, %v437
    %v439 = vrot.slane %v426, %v438
    %v440 = vlaneseq
    %v441 = vshrl.u32 %v440, 7
    %v442 = vsub.s32 3, %v441
    %v443 = vrot.slane %v426, %v442
    %v448 = vand.u32 %v231, 4294901760
    %449 = vmatprep.subr.mxu0 %v448
    %v450 = vand.u32 %v230, 4294901760
    %451 = vmatpush1.msra.mxu0 %v450
    %v452 = vand.u32 %v227, 4294901760
    %453 = vmatprep.subr.mxu0 %v452
    %v454 = vand.u32 %v226, 4294901760
    %455 = vmatpush1.msra.mxu0 %v454
    %v456 = vand.u32 %v223, 4294901760
    %457 = vmatprep.subr.mxu0 %v456
    %v458 = vand.u32 %v222, 4294901760
    %459 = vmatpush1.msra.mxu0 %v458
    %v460 = vand.u32 %v219, 4294901760
    %461 = vmatprep.subr.mxu0 %v460
    %v462 = vand.u32 %v218, 4294901760
    %463 = vmatpush1.msra.mxu0 %v462
    %v464 = vand.u32 %v215, 4294901760
    %465 = vmatprep.subr.mxu0 %v464
    %v466 = vand.u32 %v214, 4294901760
    %467 = vmatpush1.msra.mxu0 %v466
    %v468 = vand.u32 %v211, 4294901760
    %469 = vmatprep.subr.mxu0 %v468
    %v470 = vand.u32 %v210, 4294901760
    %471 = vmatpush1.msra.mxu0 %v470
    %v472 = vand.u32 %v207, 4294901760
    %473 = vmatprep.subr.mxu0 %v472
    %v474 = vand.u32 %v206, 4294901760
    %475 = vmatpush1.msra.mxu0 %v474
    %v476 = vand.u32 %v203, 4294901760
    %477 = vmatprep.subr.mxu0 %v476
    %v478 = vand.u32 %v202, 4294901760
    %479 = vmatpush1.msra.mxu0 %v478
    %v480 = vand.u32 %v199, 4294901760
    %481 = vmatprep.subr.mxu0 %v480
    %v482 = vand.u32 %v198, 4294901760
    %483 = vmatpush1.msra.mxu0 %v482
    %v484 = vand.u32 %v195, 4294901760
    %485 = vmatprep.subr.mxu0 %v484
    %v486 = vand.u32 %v194, 4294901760
    %487 = vmatpush1.msra.mxu0 %v486
    %v488 = vand.u32 %v191, 4294901760
    %489 = vmatprep.subr.mxu0 %v488
    %v490 = vand.u32 %v190, 4294901760
    %491 = vmatpush1.msra.mxu0 %v490
    %v492 = vand.u32 %v187, 4294901760
    %493 = vmatprep.subr.mxu0 %v492
    %v494 = vand.u32 %v186, 4294901760
    %495 = vmatpush1.msra.mxu0 %v494
    %v496 = vand.u32 %v183, 4294901760
    %497 = vmatprep.subr.mxu0 %v496
    %v498 = vand.u32 %v182, 4294901760
    %499 = vmatpush1.msra.mxu0 %v498
    %v500 = vand.u32 %v179, 4294901760
    %501 = vmatprep.subr.mxu0 %v500
    %v502 = vand.u32 %v178, 4294901760
    %503 = vmatpush1.msra.mxu0 %v502
    %v504 = vand.u32 %v175, 4294901760
    %505 = vmatprep.subr.mxu0 %v504
    %v506 = vand.u32 %v174, 4294901760
    %507 = vmatpush1.msra.mxu0 %v506
    %v508 = vand.u32 %v171, 4294901760
    %509 = vmatprep.subr.mxu0 %v508
    %v510 = vand.u32 %v170, 4294901760
    %511 = vmatpush1.msra.mxu0 %v510
    %v512 = vand.u32 %v295, 4294901760
    %513 = vmatprep.subr.mxu0 %v512
    %v514 = vand.u32 %v294, 4294901760
    %515 = vmatpush2.msra.mxu0 %v514
    %v516 = vand.u32 %v291, 4294901760
    %517 = vmatprep.subr.mxu0 %v516
    %v518 = vand.u32 %v290, 4294901760
    %519 = vmatpush2.msra.mxu0 %v518
    %v520 = vand.u32 %v287, 4294901760
    %521 = vmatprep.subr.mxu0 %v520
    %v522 = vand.u32 %v286, 4294901760
    %523 = vmatpush2.msra.mxu0 %v522
    %v524 = vand.u32 %v283, 4294901760
    %525 = vmatprep.subr.mxu0 %v524
    %v526 = vand.u32 %v282, 4294901760
    %527 = vmatpush2.msra.mxu0 %v526
    %v528 = vand.u32 %v279, 4294901760
    %529 = vmatprep.subr.mxu0 %v528
    %v530 = vand.u32 %v278, 4294901760
    %531 = vmatpush2.msra.mxu0 %v530
    %v532 = vand.u32 %v275, 4294901760
    %533 = vmatprep.subr.mxu0 %v532
    %v534 = vand.u32 %v274, 4294901760
    %535 = vmatpush2.msra.mxu0 %v534
    %v536 = vand.u32 %v271, 4294901760
    %537 = vmatprep.subr.mxu0 %v536
    %v538 = vand.u32 %v270, 4294901760
    %539 = vmatpush2.msra.mxu0 %v538
    %v540 = vand.u32 %v267, 4294901760
    %541 = vmatprep.subr.mxu0 %v540
    %v542 = vand.u32 %v266, 4294901760
    %543 = vmatpush2.msra.mxu0 %v542
    %v544 = vand.u32 %v263, 4294901760
    %545 = vmatprep.subr.mxu0 %v544
    %v546 = vand.u32 %v262, 4294901760
    %547 = vmatpush2.msra.mxu0 %v546
    %v548 = vand.u32 %v259, 4294901760
    %549 = vmatprep.subr.mxu0 %v548
    %v550 = vand.u32 %v258, 4294901760
    %551 = vmatpush2.msra.mxu0 %v550
    %v552 = vand.u32 %v255, 4294901760
    %553 = vmatprep.subr.mxu0 %v552
    %v554 = vand.u32 %v254, 4294901760
    %555 = vmatpush2.msra.mxu0 %v554
    %v556 = vand.u32 %v251, 4294901760
    %557 = vmatprep.subr.mxu0 %v556
    %v558 = vand.u32 %v250, 4294901760
    %559 = vmatpush2.msra.mxu0 %v558
    %v560 = vand.u32 %v247, 4294901760
    %561 = vmatprep.subr.mxu0 %v560
    %v562 = vand.u32 %v246, 4294901760
    %563 = vmatpush2.msra.mxu0 %v562
    %v564 = vand.u32 %v243, 4294901760
    %565 = vmatprep.subr.mxu0 %v564
    %v566 = vand.u32 %v242, 4294901760
    %567 = vmatpush2.msra.mxu0 %v566
    %v568 = vand.u32 %v239, 4294901760
    %569 = vmatprep.subr.mxu0 %v568
    %v570 = vand.u32 %v238, 4294901760
    %571 = vmatpush2.msra.mxu0 %v570
    %v572 = vand.u32 %v235, 4294901760
    %573 = vmatprep.subr.mxu0 %v572
    %v574 = vand.u32 %v234, 4294901760
    %575 = vmatpush2.msra.mxu0 %v574
    %v576 = vand.u32 %v163, 4294901760
    %v577 = vsub.f32 %v163, %v576
    %v578 = vand.u32 %v577, 4294901760
    %v579 = vsub.f32 %v577, %v578
    %v580 = vand.u32 %v579, 4294901760
    %581 = vmatprep.mubr.f32.mxu0 %v580
    %v582 = vand.u32 %v162, 4294901760
    %v583 = vsub.f32 %v162, %v582
    %v584 = vand.u32 %v583, 4294901760
    %v585 = vsub.f32 %v583, %v584
    %v586 = vand.u32 %v585, 4294901760
    %587 = vmatmul.mubr.f32.gmra.mxu0 %v586
    %v588 = vpop.f32.mrf.mxu0
    %v589 = vadd.f32 %v431, %v588
    %v590 = vpop.f32.mrf.mxu0
    %v591 = vadd.f32 %v435, %v590
    %v592 = vand.u32 %v167, 4294901760
    %v593 = vsub.f32 %v167, %v592
    %v594 = vand.u32 %v593, 4294901760
    %v595 = vsub.f32 %v593, %v594
    %v596 = vand.u32 %v595, 4294901760
    %597 = vmatprep.mubr.f32.mxu0 %v596
    %v598 = vand.u32 %v166, 4294901760
    %v599 = vsub.f32 %v166, %v598
    %v600 = vand.u32 %v599, 4294901760
    %v601 = vsub.f32 %v599, %v600
    %v602 = vand.u32 %v601, 4294901760
    %603 = vmatmul.mubr.f32.gmra.mxu0 %v602
    %v604 = vpop.f32.mrf.mxu0
    %v605 = vadd.f32 %v431, %v604
    %v606 = vpop.f32.mrf.mxu0
    %v607 = vadd.f32 %v435, %v606
    %608 = vdwg.mxu0
    %v609 = vand.u32 %v231, 4294901760
    %v610 = vsub.f32 %v231, %v609
    %v611 = vand.u32 %v610, 4294901760
    %v612 = vsub.f32 %v610, %v611
    %v613 = vand.u32 %v612, 4294901760
    %614 = vmatprep.subr.mxu0 %v613
    %v615 = vand.u32 %v230, 4294901760
    %v616 = vsub.f32 %v230, %v615
    %v617 = vand.u32 %v616, 4294901760
    %v618 = vsub.f32 %v616, %v617
    %v619 = vand.u32 %v618, 4294901760
    %620 = vmatpush1.msra.mxu0 %v619
    %v621 = vand.u32 %v227, 4294901760
    %v622 = vsub.f32 %v227, %v621
    %v623 = vand.u32 %v622, 4294901760
    %v624 = vsub.f32 %v622, %v623
    %v625 = vand.u32 %v624, 4294901760
    %626 = vmatprep.subr.mxu0 %v625
    %v627 = vand.u32 %v226, 4294901760
    %v628 = vsub.f32 %v226, %v627
    %v629 = vand.u32 %v628, 4294901760
    %v630 = vsub.f32 %v628, %v629
    %v631 = vand.u32 %v630, 4294901760
    %632 = vmatpush1.msra.mxu0 %v631
    %v633 = vand.u32 %v223, 4294901760
    %v634 = vsub.f32 %v223, %v633
    %v635 = vand.u32 %v634, 4294901760
    %v636 = vsub.f32 %v634, %v635
    %v637 = vand.u32 %v636, 4294901760
    %638 = vmatprep.subr.mxu0 %v637
    %v639 = vand.u32 %v222, 4294901760
    %v640 = vsub.f32 %v222, %v639
    %v641 = vand.u32 %v640, 4294901760
    %v642 = vsub.f32 %v640, %v641
    %v643 = vand.u32 %v642, 4294901760
    %644 = vmatpush1.msra.mxu0 %v643
    %v645 = vand.u32 %v219, 4294901760
    %v646 = vsub.f32 %v219, %v645
    %v647 = vand.u32 %v646, 4294901760
    %v648 = vsub.f32 %v646, %v647
    %v649 = vand.u32 %v648, 4294901760
    %650 = vmatprep.subr.mxu0 %v649
    %v651 = vand.u32 %v218, 4294901760
    %v652 = vsub.f32 %v218, %v651
    %v653 = vand.u32 %v652, 4294901760
    %v654 = vsub.f32 %v652, %v653
    %v655 = vand.u32 %v654, 4294901760
    %656 = vmatpush1.msra.mxu0 %v655
    %v657 = vand.u32 %v215, 4294901760
    %v658 = vsub.f32 %v215, %v657
    %v659 = vand.u32 %v658, 4294901760
    %v660 = vsub.f32 %v658, %v659
    %v661 = vand.u32 %v660, 4294901760
    %662 = vmatprep.subr.mxu0 %v661
    %v663 = vand.u32 %v214, 4294901760
    %v664 = vsub.f32 %v214, %v663
    %v665 = vand.u32 %v664, 4294901760
    %v666 = vsub.f32 %v664, %v665
    %v667 = vand.u32 %v666, 4294901760
    %668 = vmatpush1.msra.mxu0 %v667
    %v669 = vand.u32 %v211, 4294901760
    %v670 = vsub.f32 %v211, %v669
    %v671 = vand.u32 %v670, 4294901760
    %v672 = vsub.f32 %v670, %v671
    %v673 = vand.u32 %v672, 4294901760
    %674 = vmatprep.subr.mxu0 %v673
    %v675 = vand.u32 %v210, 4294901760
    %v676 = vsub.f32 %v210, %v675
    %v677 = vand.u32 %v676, 4294901760
    %v678 = vsub.f32 %v676, %v677
    %v679 = vand.u32 %v678, 4294901760
    %680 = vmatpush1.msra.mxu0 %v679
    %v681 = vand.u32 %v207, 4294901760
    %v682 = vsub.f32 %v207, %v681
    %v683 = vand.u32 %v682, 4294901760
    %v684 = vsub.f32 %v682, %v683
    %v685 = vand.u32 %v684, 4294901760
    %686 = vmatprep.subr.mxu0 %v685
    %v687 = vand.u32 %v206, 4294901760
    %v688 = vsub.f32 %v206, %v687
    %v689 = vand.u32 %v688, 4294901760
    %v690 = vsub.f32 %v688, %v689
    %v691 = vand.u32 %v690, 4294901760
    %692 = vmatpush1.msra.mxu0 %v691
    %v693 = vand.u32 %v203, 4294901760
    %v694 = vsub.f32 %v203, %v693
    %v695 = vand.u32 %v694, 4294901760
    %v696 = vsub.f32 %v694, %v695
    %v697 = vand.u32 %v696, 4294901760
    %698 = vmatprep.subr.mxu0 %v697
    %v699 = vand.u32 %v202, 4294901760
    %v700 = vsub.f32 %v202, %v699
    %v701 = vand.u32 %v700, 4294901760
    %v702 = vsub.f32 %v700, %v701
    %v703 = vand.u32 %v702, 4294901760
    %704 = vmatpush1.msra.mxu0 %v703
    %v705 = vand.u32 %v199, 4294901760
    %v706 = vsub.f32 %v199, %v705
    %v707 = vand.u32 %v706, 4294901760
    %v708 = vsub.f32 %v706, %v707
    %v709 = vand.u32 %v708, 4294901760
    %710 = vmatprep.subr.mxu0 %v709
    %v711 = vand.u32 %v198, 4294901760
    %v712 = vsub.f32 %v198, %v711
    %v713 = vand.u32 %v712, 4294901760
    %v714 = vsub.f32 %v712, %v713
    %v715 = vand.u32 %v714, 4294901760
    %716 = vmatpush1.msra.mxu0 %v715
    %v717 = vand.u32 %v195, 4294901760
    %v718 = vsub.f32 %v195, %v717
    %v719 = vand.u32 %v718, 4294901760
    %v720 = vsub.f32 %v718, %v719
    %v721 = vand.u32 %v720, 4294901760
    %722 = vmatprep.subr.mxu0 %v721
    %v723 = vand.u32 %v194, 4294901760
    %v724 = vsub.f32 %v194, %v723
    %v725 = vand.u32 %v724, 4294901760
    %v726 = vsub.f32 %v724, %v725
    %v727 = vand.u32 %v726, 4294901760
    %728 = vmatpush1.msra.mxu0 %v727
    %v729 = vand.u32 %v191, 4294901760
    %v730 = vsub.f32 %v191, %v729
    %v731 = vand.u32 %v730, 4294901760
    %v732 = vsub.f32 %v730, %v731
    %v733 = vand.u32 %v732, 4294901760
    %734 = vmatprep.subr.mxu0 %v733
    %v735 = vand.u32 %v190, 4294901760
    %v736 = vsub.f32 %v190, %v735
    %v737 = vand.u32 %v736, 4294901760
    %v738 = vsub.f32 %v736, %v737
    %v739 = vand.u32 %v738, 4294901760
    %740 = vmatpush1.msra.mxu0 %v739
    %v741 = vand.u32 %v187, 4294901760
    %v742 = vsub.f32 %v187, %v741
    %v743 = vand.u32 %v742, 4294901760
    %v744 = vsub.f32 %v742, %v743
    %v745 = vand.u32 %v744, 4294901760
    %746 = vmatprep.subr.mxu0 %v745
    %v747 = vand.u32 %v186, 4294901760
    %v748 = vsub.f32 %v186, %v747
    %v749 = vand.u32 %v748, 4294901760
    %v750 = vsub.f32 %v748, %v749
    %v751 = vand.u32 %v750, 4294901760
    %752 = vmatpush1.msra.mxu0 %v751
    %v753 = vand.u32 %v183, 4294901760
    %v754 = vsub.f32 %v183, %v753
    %v755 = vand.u32 %v754, 4294901760
    %v756 = vsub.f32 %v754, %v755
    %v757 = vand.u32 %v756, 4294901760
    %758 = vmatprep.subr.mxu0 %v757
    %v759 = vand.u32 %v182, 4294901760
    %v760 = vsub.f32 %v182, %v759
    %v761 = vand.u32 %v760, 4294901760
    %v762 = vsub.f32 %v760, %v761
    %v763 = vand.u32 %v762, 4294901760
    %764 = vmatpush1.msra.mxu0 %v763
    %v765 = vand.u32 %v179, 4294901760
    %v766 = vsub.f32 %v179, %v765
    %v767 = vand.u32 %v766, 4294901760
    %v768 = vsub.f32 %v766, %v767
    %v769 = vand.u32 %v768, 4294901760
    %770 = vmatprep.subr.mxu0 %v769
    %v771 = vand.u32 %v178, 4294901760
    %v772 = vsub.f32 %v178, %v771
    %v773 = vand.u32 %v772, 4294901760
    %v774 = vsub.f32 %v772, %v773
    %v775 = vand.u32 %v774, 4294901760
    %776 = vmatpush1.msra.mxu0 %v775
    %v777 = vand.u32 %v175, 4294901760
    %v778 = vsub.f32 %v175, %v777
    %v779 = vand.u32 %v778, 4294901760
    %v780 = vsub.f32 %v778, %v779
    %v781 = vand.u32 %v780, 4294901760
    %782 = vmatprep.subr.mxu0 %v781
    %v783 = vand.u32 %v174, 4294901760
    %v784 = vsub.f32 %v174, %v783
    %v785 = vand.u32 %v784, 4294901760
    %v786 = vsub.f32 %v784, %v785
    %v787 = vand.u32 %v786, 4294901760
    %788 = vmatpush1.msra.mxu0 %v787
    %v789 = vand.u32 %v171, 4294901760
    %v790 = vsub.f32 %v171, %v789
    %v791 = vand.u32 %v790, 4294901760
    %v792 = vsub.f32 %v790, %v791
    %v793 = vand.u32 %v792, 4294901760
    %794 = vmatprep.subr.mxu0 %v793
    %v795 = vand.u32 %v170, 4294901760
    %v796 = vsub.f32 %v170, %v795
    %v797 = vand.u32 %v796, 4294901760
    %v798 = vsub.f32 %v796, %v797
    %v799 = vand.u32 %v798, 4294901760
    %800 = vmatpush1.msra.mxu0 %v799
    %v801 = vand.u32 %v295, 4294901760
    %v802 = vsub.f32 %v295, %v801
    %v803 = vand.u32 %v802, 4294901760
    %v804 = vsub.f32 %v802, %v803
    %v805 = vand.u32 %v804, 4294901760
    %806 = vmatprep.subr.mxu0 %v805
    %v807 = vand.u32 %v294, 4294901760
    %v808 = vsub.f32 %v294, %v807
    %v809 = vand.u32 %v808, 4294901760
    %v810 = vsub.f32 %v808, %v809
    %v811 = vand.u32 %v810, 4294901760
    %812 = vmatpush2.msra.mxu0 %v811
    %v813 = vand.u32 %v291, 4294901760
    %v814 = vsub.f32 %v291, %v813
    %v815 = vand.u32 %v814, 4294901760
    %v816 = vsub.f32 %v814, %v815
    %v817 = vand.u32 %v816, 4294901760
    %818 = vmatprep.subr.mxu0 %v817
    %v819 = vand.u32 %v290, 4294901760
    %v820 = vsub.f32 %v290, %v819
    %v821 = vand.u32 %v820, 4294901760
    %v822 = vsub.f32 %v820, %v821
    %v823 = vand.u32 %v822, 4294901760
    %824 = vmatpush2.msra.mxu0 %v823
    %v825 = vand.u32 %v287, 4294901760
    %v826 = vsub.f32 %v287, %v825
    %v827 = vand.u32 %v826, 4294901760
    %v828 = vsub.f32 %v826, %v827
    %v829 = vand.u32 %v828, 4294901760
    %830 = vmatprep.subr.mxu0 %v829
    %v831 = vand.u32 %v286, 4294901760
    %v832 = vsub.f32 %v286, %v831
    %v833 = vand.u32 %v832, 4294901760
    %v834 = vsub.f32 %v832, %v833
    %v835 = vand.u32 %v834, 4294901760
    %836 = vmatpush2.msra.mxu0 %v835
    %v837 = vand.u32 %v283, 4294901760
    %v838 = vsub.f32 %v283, %v837
    %v839 = vand.u32 %v838, 4294901760
    %v840 = vsub.f32 %v838, %v839
    %v841 = vand.u32 %v840, 4294901760
    %842 = vmatprep.subr.mxu0 %v841
    %v843 = vand.u32 %v282, 4294901760
    %v844 = vsub.f32 %v282, %v843
    %v845 = vand.u32 %v844, 4294901760
    %v846 = vsub.f32 %v844, %v845
    %v847 = vand.u32 %v846, 4294901760
    %848 = vmatpush2.msra.mxu0 %v847
    %v849 = vand.u32 %v279, 4294901760
    %v850 = vsub.f32 %v279, %v849
    %v851 = vand.u32 %v850, 4294901760
    %v852 = vsub.f32 %v850, %v851
    %v853 = vand.u32 %v852, 4294901760
    %854 = vmatprep.subr.mxu0 %v853
    %v855 = vand.u32 %v278, 4294901760
    %v856 = vsub.f32 %v278, %v855
    %v857 = vand.u32 %v856, 4294901760
    %v858 = vsub.f32 %v856, %v857
    %v859 = vand.u32 %v858, 4294901760
    %860 = vmatpush2.msra.mxu0 %v859
    %v861 = vand.u32 %v275, 4294901760
    %v862 = vsub.f32 %v275, %v861
    %v863 = vand.u32 %v862, 4294901760
    %v864 = vsub.f32 %v862, %v863
    %v865 = vand.u32 %v864, 4294901760
    %866 = vmatprep.subr.mxu0 %v865
    %v867 = vand.u32 %v274, 4294901760
    %v868 = vsub.f32 %v274, %v867
    %v869 = vand.u32 %v868, 4294901760
    %v870 = vsub.f32 %v868, %v869
    %v871 = vand.u32 %v870, 4294901760
    %872 = vmatpush2.msra.mxu0 %v871
    %v873 = vand.u32 %v271, 4294901760
    %v874 = vsub.f32 %v271, %v873
    %v875 = vand.u32 %v874, 4294901760
    %v876 = vsub.f32 %v874, %v875
    %v877 = vand.u32 %v876, 4294901760
    %878 = vmatprep.subr.mxu0 %v877
    %v879 = vand.u32 %v270, 4294901760
    %v880 = vsub.f32 %v270, %v879
    %v881 = vand.u32 %v880, 4294901760
    %v882 = vsub.f32 %v880, %v881
    %v883 = vand.u32 %v882, 4294901760
    %884 = vmatpush2.msra.mxu0 %v883
    %v885 = vand.u32 %v267, 4294901760
    %v886 = vsub.f32 %v267, %v885
    %v887 = vand.u32 %v886, 4294901760
    %v888 = vsub.f32 %v886, %v887
    %v889 = vand.u32 %v888, 4294901760
    %890 = vmatprep.subr.mxu0 %v889
    %v891 = vand.u32 %v266, 4294901760
    %v892 = vsub.f32 %v266, %v891
    %v893 = vand.u32 %v892, 4294901760
    %v894 = vsub.f32 %v892, %v893
    %v895 = vand.u32 %v894, 4294901760
    %896 = vmatpush2.msra.mxu0 %v895
    %v897 = vand.u32 %v263, 4294901760
    %v898 = vsub.f32 %v263, %v897
    %v899 = vand.u32 %v898, 4294901760
    %v900 = vsub.f32 %v898, %v899
    %v901 = vand.u32 %v900, 4294901760
    %902 = vmatprep.subr.mxu0 %v901
    %v903 = vand.u32 %v262, 4294901760
    %v904 = vsub.f32 %v262, %v903
    %v905 = vand.u32 %v904, 4294901760
    %v906 = vsub.f32 %v904, %v905
    %v907 = vand.u32 %v906, 4294901760
    %908 = vmatpush2.msra.mxu0 %v907
    %v909 = vand.u32 %v259, 4294901760
    %v910 = vsub.f32 %v259, %v909
    %v911 = vand.u32 %v910, 4294901760
    %v912 = vsub.f32 %v910, %v911
    %v913 = vand.u32 %v912, 4294901760
    %914 = vmatprep.subr.mxu0 %v913
    %v915 = vand.u32 %v258, 4294901760
    %v916 = vsub.f32 %v258, %v915
    %v917 = vand.u32 %v916, 4294901760
    %v918 = vsub.f32 %v916, %v917
    %v919 = vand.u32 %v918, 4294901760
    %920 = vmatpush2.msra.mxu0 %v919
    %v921 = vand.u32 %v255, 4294901760
    %v922 = vsub.f32 %v255, %v921
    %v923 = vand.u32 %v922, 4294901760
    %v924 = vsub.f32 %v922, %v923
    %v925 = vand.u32 %v924, 4294901760
    %926 = vmatprep.subr.mxu0 %v925
    %v927 = vand.u32 %v254, 4294901760
    %v928 = vsub.f32 %v254, %v927
    %v929 = vand.u32 %v928, 4294901760
    %v930 = vsub.f32 %v928, %v929
    %v931 = vand.u32 %v930, 4294901760
    %932 = vmatpush2.msra.mxu0 %v931
    %v933 = vand.u32 %v251, 4294901760
    %v934 = vsub.f32 %v251, %v933
    %v935 = vand.u32 %v934, 4294901760
    %v936 = vsub.f32 %v934, %v935
    %v937 = vand.u32 %v936, 4294901760
    %938 = vmatprep.subr.mxu0 %v937
    %v939 = vand.u32 %v250, 4294901760
    %v940 = vsub.f32 %v250, %v939
    %v941 = vand.u32 %v940, 4294901760
    %v942 = vsub.f32 %v940, %v941
    %v943 = vand.u32 %v942, 4294901760
    %944 = vmatpush2.msra.mxu0 %v943
    %v945 = vand.u32 %v247, 4294901760
    %v946 = vsub.f32 %v247, %v945
    %v947 = vand.u32 %v946, 4294901760
    %v948 = vsub.f32 %v946, %v947
    %v949 = vand.u32 %v948, 4294901760
    %950 = vmatprep.subr.mxu0 %v949
    %v951 = vand.u32 %v246, 4294901760
    %v952 = vsub.f32 %v246, %v951
    %v953 = vand.u32 %v952, 4294901760
    %v954 = vsub.f32 %v952, %v953
    %v955 = vand.u32 %v954, 4294901760
    %956 = vmatpush2.msra.mxu0 %v955
    %v957 = vand.u32 %v243, 4294901760
    %v958 = vsub.f32 %v243, %v957
    %v959 = vand.u32 %v958, 4294901760
    %v960 = vsub.f32 %v958, %v959
    %v961 = vand.u32 %v960, 4294901760
    %962 = vmatprep.subr.mxu0 %v961
    %v963 = vand.u32 %v242, 4294901760
    %v964 = vsub.f32 %v242, %v963
    %v965 = vand.u32 %v964, 4294901760
    %v966 = vsub.f32 %v964, %v965
    %v967 = vand.u32 %v966, 4294901760
    %968 = vmatpush2.msra.mxu0 %v967
    %v969 = vand.u32 %v239, 4294901760
    %v970 = vsub.f32 %v239, %v969
    %v971 = vand.u32 %v970, 4294901760
    %v972 = vsub.f32 %v970, %v971
    %v973 = vand.u32 %v972, 4294901760
    %974 = vmatprep.subr.mxu0 %v973
    %v975 = vand.u32 %v238, 4294901760
    %v976 = vsub.f32 %v238, %v975
    %v977 = vand.u32 %v976, 4294901760
    %v978 = vsub.f32 %v976, %v977
    %v979 = vand.u32 %v978, 4294901760
    %980 = vmatpush2.msra.mxu0 %v979
    %v981 = vand.u32 %v235, 4294901760
    %v982 = vsub.f32 %v235, %v981
    %v983 = vand.u32 %v982, 4294901760
    %v984 = vsub.f32 %v982, %v983
    %v985 = vand.u32 %v984, 4294901760
    %986 = vmatprep.subr.mxu0 %v985
    %v987 = vand.u32 %v234, 4294901760
    %v988 = vsub.f32 %v234, %v987
    %v989 = vand.u32 %v988, 4294901760
    %v990 = vsub.f32 %v988, %v989
    %v991 = vand.u32 %v990, 4294901760
    %992 = vmatpush2.msra.mxu0 %v991
    %v993 = vand.u32 %v163, 4294901760
    %994 = vmatprep.mubr.f32.mxu0 %v993
    %v995 = vand.u32 %v162, 4294901760
    %996 = vmatmul.mubr.f32.gmra.mxu0 %v995
    %v997 = vpop.f32.mrf.mxu0
    %v998 = vadd.f32 %v589, %v997
    %v999 = vpop.f32.mrf.mxu0
    %v1000 = vadd.f32 %v591, %v999
    %v1001 = vand.u32 %v167, 4294901760
    %1002 = vmatprep.mubr.f32.mxu0 %v1001
    %v1003 = vand.u32 %v166, 4294901760
    %1004 = vmatmul.mubr.f32.gmra.mxu0 %v1003
    %v1005 = vpop.f32.mrf.mxu0
    %v1006 = vadd.f32 %v605, %v1005
    %v1007 = vpop.f32.mrf.mxu0
    %v1008 = vadd.f32 %v607, %v1007
    %1009 = vdwg.mxu0
    %v1010 = vand.u32 %v231, 4294901760
    %v1011 = vsub.f32 %v231, %v1010
    %1012 = vmatprep.subr.mxu0 %v1011
    %v1013 = vand.u32 %v230, 4294901760
    %v1014 = vsub.f32 %v230, %v1013
    %1015 = vmatpush1.msra.mxu0 %v1014
    %v1016 = vand.u32 %v227, 4294901760
    %v1017 = vsub.f32 %v227, %v1016
    %1018 = vmatprep.subr.mxu0 %v1017
    %v1019 = vand.u32 %v226, 4294901760
    %v1020 = vsub.f32 %v226, %v1019
    %1021 = vmatpush1.msra.mxu0 %v1020
    %v1022 = vand.u32 %v223, 4294901760
    %v1023 = vsub.f32 %v223, %v1022
    %1024 = vmatprep.subr.mxu0 %v1023
    %v1025 = vand.u32 %v222, 4294901760
    %v1026 = vsub.f32 %v222, %v1025
    %1027 = vmatpush1.msra.mxu0 %v1026
    %v1028 = vand.u32 %v219, 4294901760
    %v1029 = vsub.f32 %v219, %v1028
    %1030 = vmatprep.subr.mxu0 %v1029
    %v1031 = vand.u32 %v218, 4294901760
    %v1032 = vsub.f32 %v218, %v1031
    %1033 = vmatpush1.msra.mxu0 %v1032
    %v1034 = vand.u32 %v215, 4294901760
    %v1035 = vsub.f32 %v215, %v1034
    %1036 = vmatprep.subr.mxu0 %v1035
    %v1037 = vand.u32 %v214, 4294901760
    %v1038 = vsub.f32 %v214, %v1037
    %1039 = vmatpush1.msra.mxu0 %v1038
    %v1040 = vand.u32 %v211, 4294901760
    %v1041 = vsub.f32 %v211, %v1040
    %1042 = vmatprep.subr.mxu0 %v1041
    %v1043 = vand.u32 %v210, 4294901760
    %v1044 = vsub.f32 %v210, %v1043
    %1045 = vmatpush1.msra.mxu0 %v1044
    %v1046 = vand.u32 %v207, 4294901760
    %v1047 = vsub.f32 %v207, %v1046
    %1048 = vmatprep.subr.mxu0 %v1047
    %v1049 = vand.u32 %v206, 4294901760
    %v1050 = vsub.f32 %v206, %v1049
    %1051 = vmatpush1.msra.mxu0 %v1050
    %v1052 = vand.u32 %v203, 4294901760
    %v1053 = vsub.f32 %v203, %v1052
    %1054 = vmatprep.subr.mxu0 %v1053
    %v1055 = vand.u32 %v202, 4294901760
    %v1056 = vsub.f32 %v202, %v1055
    %1057 = vmatpush1.msra.mxu0 %v1056
    %v1058 = vand.u32 %v199, 4294901760
    %v1059 = vsub.f32 %v199, %v1058
    %1060 = vmatprep.subr.mxu0 %v1059
    %v1061 = vand.u32 %v198, 4294901760
    %v1062 = vsub.f32 %v198, %v1061
    %1063 = vmatpush1.msra.mxu0 %v1062
    %v1064 = vand.u32 %v195, 4294901760
    %v1065 = vsub.f32 %v195, %v1064
    %1066 = vmatprep.subr.mxu0 %v1065
    %v1067 = vand.u32 %v194, 4294901760
    %v1068 = vsub.f32 %v194, %v1067
    %1069 = vmatpush1.msra.mxu0 %v1068
    %v1070 = vand.u32 %v191, 4294901760
    %v1071 = vsub.f32 %v191, %v1070
    %1072 = vmatprep.subr.mxu0 %v1071
    %v1073 = vand.u32 %v190, 4294901760
    %v1074 = vsub.f32 %v190, %v1073
    %1075 = vmatpush1.msra.mxu0 %v1074
    %v1076 = vand.u32 %v187, 4294901760
    %v1077 = vsub.f32 %v187, %v1076
    %1078 = vmatprep.subr.mxu0 %v1077
    %v1079 = vand.u32 %v186, 4294901760
    %v1080 = vsub.f32 %v186, %v1079
    %1081 = vmatpush1.msra.mxu0 %v1080
    %v1082 = vand.u32 %v183, 4294901760
    %v1083 = vsub.f32 %v183, %v1082
    %1084 = vmatprep.subr.mxu0 %v1083
    %v1085 = vand.u32 %v182, 4294901760
    %v1086 = vsub.f32 %v182, %v1085
    %1087 = vmatpush1.msra.mxu0 %v1086
    %v1088 = vand.u32 %v179, 4294901760
    %v1089 = vsub.f32 %v179, %v1088
    %1090 = vmatprep.subr.mxu0 %v1089
    %v1091 = vand.u32 %v178, 4294901760
    %v1092 = vsub.f32 %v178, %v1091
    %1093 = vmatpush1.msra.mxu0 %v1092
    %v1094 = vand.u32 %v175, 4294901760
    %v1095 = vsub.f32 %v175, %v1094
    %1096 = vmatprep.subr.mxu0 %v1095
    %v1097 = vand.u32 %v174, 4294901760
    %v1098 = vsub.f32 %v174, %v1097
    %1099 = vmatpush1.msra.mxu0 %v1098
    %v1100 = vand.u32 %v171, 4294901760
    %v1101 = vsub.f32 %v171, %v1100
    %1102 = vmatprep.subr.mxu0 %v1101
    %v1103 = vand.u32 %v170, 4294901760
    %v1104 = vsub.f32 %v170, %v1103
    %1105 = vmatpush1.msra.mxu0 %v1104
    %v1106 = vand.u32 %v295, 4294901760
    %v1107 = vsub.f32 %v295, %v1106
    %1108 = vmatprep.subr.mxu0 %v1107
    %v1109 = vand.u32 %v294, 4294901760
    %v1110 = vsub.f32 %v294, %v1109
    %1111 = vmatpush2.msra.mxu0 %v1110
    %v1112 = vand.u32 %v291, 4294901760
    %v1113 = vsub.f32 %v291, %v1112
    %1114 = vmatprep.subr.mxu0 %v1113
    %v1115 = vand.u32 %v290, 4294901760
    %v1116 = vsub.f32 %v290, %v1115
    %1117 = vmatpush2.msra.mxu0 %v1116
    %v1118 = vand.u32 %v287, 4294901760
    %v1119 = vsub.f32 %v287, %v1118
    %1120 = vmatprep.subr.mxu0 %v1119
    %v1121 = vand.u32 %v286, 4294901760
    %v1122 = vsub.f32 %v286, %v1121
    %1123 = vmatpush2.msra.mxu0 %v1122
    %v1124 = vand.u32 %v283, 4294901760
    %v1125 = vsub.f32 %v283, %v1124
    %1126 = vmatprep.subr.mxu0 %v1125
    %v1127 = vand.u32 %v282, 4294901760
    %v1128 = vsub.f32 %v282, %v1127
    %1129 = vmatpush2.msra.mxu0 %v1128
    %v1130 = vand.u32 %v279, 4294901760
    %v1131 = vsub.f32 %v279, %v1130
    %1132 = vmatprep.subr.mxu0 %v1131
    %v1133 = vand.u32 %v278, 4294901760
    %v1134 = vsub.f32 %v278, %v1133
    %1135 = vmatpush2.msra.mxu0 %v1134
    %v1136 = vand.u32 %v275, 4294901760
    %v1137 = vsub.f32 %v275, %v1136
    %1138 = vmatprep.subr.mxu0 %v1137
    %v1139 = vand.u32 %v274, 4294901760
    %v1140 = vsub.f32 %v274, %v1139
    %1141 = vmatpush2.msra.mxu0 %v1140
    %v1142 = vand.u32 %v271, 4294901760
    %v1143 = vsub.f32 %v271, %v1142
    %1144 = vmatprep.subr.mxu0 %v1143
    %v1145 = vand.u32 %v270, 4294901760
    %v1146 = vsub.f32 %v270, %v1145
    %1147 = vmatpush2.msra.mxu0 %v1146
    %v1148 = vand.u32 %v267, 4294901760
    %v1149 = vsub.f32 %v267, %v1148
    %1150 = vmatprep.subr.mxu0 %v1149
    %v1151 = vand.u32 %v266, 4294901760
    %v1152 = vsub.f32 %v266, %v1151
    %1153 = vmatpush2.msra.mxu0 %v1152
    %v1154 = vand.u32 %v263, 4294901760
    %v1155 = vsub.f32 %v263, %v1154
    %1156 = vmatprep.subr.mxu0 %v1155
    %v1157 = vand.u32 %v262, 4294901760
    %v1158 = vsub.f32 %v262, %v1157
    %1159 = vmatpush2.msra.mxu0 %v1158
    %v1160 = vand.u32 %v259, 4294901760
    %v1161 = vsub.f32 %v259, %v1160
    %1162 = vmatprep.subr.mxu0 %v1161
    %v1163 = vand.u32 %v258, 4294901760
    %v1164 = vsub.f32 %v258, %v1163
    %1165 = vmatpush2.msra.mxu0 %v1164
    %v1166 = vand.u32 %v255, 4294901760
    %v1167 = vsub.f32 %v255, %v1166
    %1168 = vmatprep.subr.mxu0 %v1167
    %v1169 = vand.u32 %v254, 4294901760
    %v1170 = vsub.f32 %v254, %v1169
    %1171 = vmatpush2.msra.mxu0 %v1170
    %v1172 = vand.u32 %v251, 4294901760
    %v1173 = vsub.f32 %v251, %v1172
    %1174 = vmatprep.subr.mxu0 %v1173
    %v1175 = vand.u32 %v250, 4294901760
    %v1176 = vsub.f32 %v250, %v1175
    %1177 = vmatpush2.msra.mxu0 %v1176
    %v1178 = vand.u32 %v247, 4294901760
    %v1179 = vsub.f32 %v247, %v1178
    %1180 = vmatprep.subr.mxu0 %v1179
    %v1181 = vand.u32 %v246, 4294901760
    %v1182 = vsub.f32 %v246, %v1181
    %1183 = vmatpush2.msra.mxu0 %v1182
    %v1184 = vand.u32 %v243, 4294901760
    %v1185 = vsub.f32 %v243, %v1184
    %1186 = vmatprep.subr.mxu0 %v1185
    %v1187 = vand.u32 %v242, 4294901760
    %v1188 = vsub.f32 %v242, %v1187
    %1189 = vmatpush2.msra.mxu0 %v1188
    %v1190 = vand.u32 %v239, 4294901760
    %v1191 = vsub.f32 %v239, %v1190
    %1192 = vmatprep.subr.mxu0 %v1191
    %v1193 = vand.u32 %v238, 4294901760
    %v1194 = vsub.f32 %v238, %v1193
    %1195 = vmatpush2.msra.mxu0 %v1194
    %v1196 = vand.u32 %v235, 4294901760
    %v1197 = vsub.f32 %v235, %v1196
    %1198 = vmatprep.subr.mxu0 %v1197
    %v1199 = vand.u32 %v234, 4294901760
    %v1200 = vsub.f32 %v234, %v1199
    %1201 = vmatpush2.msra.mxu0 %v1200
    %v1202 = vand.u32 %v163, 4294901760
    %v1203 = vsub.f32 %v163, %v1202
    %1204 = vmatprep.mubr.f32.mxu0 %v1203
    %v1205 = vand.u32 %v162, 4294901760
    %v1206 = vsub.f32 %v162, %v1205
    %1207 = vmatmul.mubr.f32.gmra.mxu0 %v1206
    %v1208 = vpop.f32.mrf.mxu0
    %v1209 = vadd.f32 %v998, %v1208
    %v1210 = vpop.f32.mrf.mxu0
    %v1211 = vadd.f32 %v1000, %v1210
    %v1212 = vand.u32 %v167, 4294901760
    %v1213 = vsub.f32 %v167, %v1212
    %1214 = vmatprep.mubr.f32.mxu0 %v1213
    %v1215 = vand.u32 %v166, 4294901760
    %v1216 = vsub.f32 %v166, %v1215
    %1217 = vmatmul.mubr.f32.gmra.mxu0 %v1216
    %v1218 = vpop.f32.mrf.mxu0
    %v1219 = vadd.f32 %v1006, %v1218
    %v1220 = vpop.f32.mrf.mxu0
    %v1221 = vadd.f32 %v1008, %v1220
    %1222 = vdwg.mxu0
    %v1223 = vand.u32 %v231, 4294901760
    %1224 = vmatprep.subr.mxu0 %v1223
    %v1225 = vand.u32 %v230, 4294901760
    %1226 = vmatpush1.msra.mxu0 %v1225
    %v1227 = vand.u32 %v227, 4294901760
    %1228 = vmatprep.subr.mxu0 %v1227
    %v1229 = vand.u32 %v226, 4294901760
    %1230 = vmatpush1.msra.mxu0 %v1229
    %v1231 = vand.u32 %v223, 4294901760
    %1232 = vmatprep.subr.mxu0 %v1231
    %v1233 = vand.u32 %v222, 4294901760
    %1234 = vmatpush1.msra.mxu0 %v1233
    %v1235 = vand.u32 %v219, 4294901760
    %1236 = vmatprep.subr.mxu0 %v1235
    %v1237 = vand.u32 %v218, 4294901760
    %1238 = vmatpush1.msra.mxu0 %v1237
    %v1239 = vand.u32 %v215, 4294901760
    %1240 = vmatprep.subr.mxu0 %v1239
    %v1241 = vand.u32 %v214, 4294901760
    %1242 = vmatpush1.msra.mxu0 %v1241
    %v1243 = vand.u32 %v211, 4294901760
    %1244 = vmatprep.subr.mxu0 %v1243
    %v1245 = vand.u32 %v210, 4294901760
    %1246 = vmatpush1.msra.mxu0 %v1245
    %v1247 = vand.u32 %v207, 4294901760
    %1248 = vmatprep.subr.mxu0 %v1247
    %v1249 = vand.u32 %v206, 4294901760
    %1250 = vmatpush1.msra.mxu0 %v1249
    %v1251 = vand.u32 %v203, 4294901760
    %1252 = vmatprep.subr.mxu0 %v1251
    %v1253 = vand.u32 %v202, 4294901760
    %1254 = vmatpush1.msra.mxu0 %v1253
    %v1255 = vand.u32 %v199, 4294901760
    %1256 = vmatprep.subr.mxu0 %v1255
    %v1257 = vand.u32 %v198, 4294901760
    %1258 = vmatpush1.msra.mxu0 %v1257
    %v1259 = vand.u32 %v195, 4294901760
    %1260 = vmatprep.subr.mxu0 %v1259
    %v1261 = vand.u32 %v194, 4294901760
    %1262 = vmatpush1.msra.mxu0 %v1261
    %v1263 = vand.u32 %v191, 4294901760
    %1264 = vmatprep.subr.mxu0 %v1263
    %v1265 = vand.u32 %v190, 4294901760
    %1266 = vmatpush1.msra.mxu0 %v1265
    %v1267 = vand.u32 %v187, 4294901760
    %1268 = vmatprep.subr.mxu0 %v1267
    %v1269 = vand.u32 %v186, 4294901760
    %1270 = vmatpush1.msra.mxu0 %v1269
    %v1271 = vand.u32 %v183, 4294901760
    %1272 = vmatprep.subr.mxu0 %v1271
    %v1273 = vand.u32 %v182, 4294901760
    %1274 = vmatpush1.msra.mxu0 %v1273
    %v1275 = vand.u32 %v179, 4294901760
    %1276 = vmatprep.subr.mxu0 %v1275
    %v1277 = vand.u32 %v178, 4294901760
    %1278 = vmatpush1.msra.mxu0 %v1277
    %v1279 = vand.u32 %v175, 4294901760
    %1280 = vmatprep.subr.mxu0 %v1279
    %v1281 = vand.u32 %v174, 4294901760
    %1282 = vmatpush1.msra.mxu0 %v1281
    %v1283 = vand.u32 %v171, 4294901760
    %1284 = vmatprep.subr.mxu0 %v1283
    %v1285 = vand.u32 %v170, 4294901760
    %1286 = vmatpush1.msra.mxu0 %v1285
    %v1287 = vand.u32 %v295, 4294901760
    %1288 = vmatprep.subr.mxu0 %v1287
    %v1289 = vand.u32 %v294, 4294901760
    %1290 = vmatpush2.msra.mxu0 %v1289
    %v1291 = vand.u32 %v291, 4294901760
    %1292 = vmatprep.subr.mxu0 %v1291
    %v1293 = vand.u32 %v290, 4294901760
    %1294 = vmatpush2.msra.mxu0 %v1293
    %v1295 = vand.u32 %v287, 4294901760
    %1296 = vmatprep.subr.mxu0 %v1295
    %v1297 = vand.u32 %v286, 4294901760
    %1298 = vmatpush2.msra.mxu0 %v1297
    %v1299 = vand.u32 %v283, 4294901760
    %1300 = vmatprep.subr.mxu0 %v1299
    %v1301 = vand.u32 %v282, 4294901760
    %1302 = vmatpush2.msra.mxu0 %v1301
    %v1303 = vand.u32 %v279, 4294901760
    %1304 = vmatprep.subr.mxu0 %v1303
    %v1305 = vand.u32 %v278, 4294901760
    %1306 = vmatpush2.msra.mxu0 %v1305
    %v1307 = vand.u32 %v275, 4294901760
    %1308 = vmatprep.subr.mxu0 %v1307
    %v1309 = vand.u32 %v274, 4294901760
    %1310 = vmatpush2.msra.mxu0 %v1309
    %v1311 = vand.u32 %v271, 4294901760
    %1312 = vmatprep.subr.mxu0 %v1311
    %v1313 = vand.u32 %v270, 4294901760
    %1314 = vmatpush2.msra.mxu0 %v1313
    %v1315 = vand.u32 %v267, 4294901760
    %1316 = vmatprep.subr.mxu0 %v1315
    %v1317 = vand.u32 %v266, 4294901760
    %1318 = vmatpush2.msra.mxu0 %v1317
    %v1319 = vand.u32 %v263, 4294901760
    %1320 = vmatprep.subr.mxu0 %v1319
    %v1321 = vand.u32 %v262, 4294901760
    %1322 = vmatpush2.msra.mxu0 %v1321
    %v1323 = vand.u32 %v259, 4294901760
    %1324 = vmatprep.subr.mxu0 %v1323
    %v1325 = vand.u32 %v258, 4294901760
    %1326 = vmatpush2.msra.mxu0 %v1325
    %v1327 = vand.u32 %v255, 4294901760
    %1328 = vmatprep.subr.mxu0 %v1327
    %v1329 = vand.u32 %v254, 4294901760
    %1330 = vmatpush2.msra.mxu0 %v1329
    %v1331 = vand.u32 %v251, 4294901760
    %1332 = vmatprep.subr.mxu0 %v1331
    %v1333 = vand.u32 %v250, 4294901760
    %1334 = vmatpush2.msra.mxu0 %v1333
    %v1335 = vand.u32 %v247, 4294901760
    %1336 = vmatprep.subr.mxu0 %v1335
    %v1337 = vand.u32 %v246, 4294901760
    %1338 = vmatpush2.msra.mxu0 %v1337
    %v1339 = vand.u32 %v243, 4294901760
    %1340 = vmatprep.subr.mxu0 %v1339
    %v1341 = vand.u32 %v242, 4294901760
    %1342 = vmatpush2.msra.mxu0 %v1341
    %v1343 = vand.u32 %v239, 4294901760
    %1344 = vmatprep.subr.mxu0 %v1343
    %v1345 = vand.u32 %v238, 4294901760
    %1346 = vmatpush2.msra.mxu0 %v1345
    %v1347 = vand.u32 %v235, 4294901760
    %1348 = vmatprep.subr.mxu0 %v1347
    %v1349 = vand.u32 %v234, 4294901760
    %1350 = vmatpush2.msra.mxu0 %v1349
    %v1351 = vand.u32 %v163, 4294901760
    %v1352 = vsub.f32 %v163, %v1351
    %v1353 = vand.u32 %v1352, 4294901760
    %1354 = vmatprep.mubr.f32.mxu0 %v1353
    %v1355 = vand.u32 %v162, 4294901760
    %v1356 = vsub.f32 %v162, %v1355
    %v1357 = vand.u32 %v1356, 4294901760
    %1358 = vmatmul.mubr.f32.gmra.mxu0 %v1357
    %v1359 = vpop.f32.mrf.mxu0
    %v1360 = vadd.f32 %v1209, %v1359
    %v1361 = vpop.f32.mrf.mxu0
    %v1362 = vadd.f32 %v1211, %v1361
    %v1363 = vand.u32 %v167, 4294901760
    %v1364 = vsub.f32 %v167, %v1363
    %v1365 = vand.u32 %v1364, 4294901760
    %1366 = vmatprep.mubr.f32.mxu0 %v1365
    %v1367 = vand.u32 %v166, 4294901760
    %v1368 = vsub.f32 %v166, %v1367
    %v1369 = vand.u32 %v1368, 4294901760
    %1370 = vmatmul.mubr.f32.gmra.mxu0 %v1369
    %v1371 = vpop.f32.mrf.mxu0
    %v1372 = vadd.f32 %v1219, %v1371
    %v1373 = vpop.f32.mrf.mxu0
    %v1374 = vadd.f32 %v1221, %v1373
    %1375 = vdwg.mxu0
    %v1376 = vand.u32 %v231, 4294901760
    %v1377 = vsub.f32 %v231, %v1376
    %v1378 = vand.u32 %v1377, 4294901760
    %1379 = vmatprep.subr.mxu0 %v1378
    %v1380 = vand.u32 %v230, 4294901760
    %v1381 = vsub.f32 %v230, %v1380
    %v1382 = vand.u32 %v1381, 4294901760
    %1383 = vmatpush1.msra.mxu0 %v1382
    %v1384 = vand.u32 %v227, 4294901760
    %v1385 = vsub.f32 %v227, %v1384
    %v1386 = vand.u32 %v1385, 4294901760
    %1387 = vmatprep.subr.mxu0 %v1386
    %v1388 = vand.u32 %v226, 4294901760
    %v1389 = vsub.f32 %v226, %v1388
    %v1390 = vand.u32 %v1389, 4294901760
    %1391 = vmatpush1.msra.mxu0 %v1390
    %v1392 = vand.u32 %v223, 4294901760
    %v1393 = vsub.f32 %v223, %v1392
    %v1394 = vand.u32 %v1393, 4294901760
    %1395 = vmatprep.subr.mxu0 %v1394
    %v1396 = vand.u32 %v222, 4294901760
    %v1397 = vsub.f32 %v222, %v1396
    %v1398 = vand.u32 %v1397, 4294901760
    %1399 = vmatpush1.msra.mxu0 %v1398
    %v1400 = vand.u32 %v219, 4294901760
    %v1401 = vsub.f32 %v219, %v1400
    %v1402 = vand.u32 %v1401, 4294901760
    %1403 = vmatprep.subr.mxu0 %v1402
    %v1404 = vand.u32 %v218, 4294901760
    %v1405 = vsub.f32 %v218, %v1404
    %v1406 = vand.u32 %v1405, 4294901760
    %1407 = vmatpush1.msra.mxu0 %v1406
    %v1408 = vand.u32 %v215, 4294901760
    %v1409 = vsub.f32 %v215, %v1408
    %v1410 = vand.u32 %v1409, 4294901760
    %1411 = vmatprep.subr.mxu0 %v1410
    %v1412 = vand.u32 %v214, 4294901760
    %v1413 = vsub.f32 %v214, %v1412
    %v1414 = vand.u32 %v1413, 4294901760
    %1415 = vmatpush1.msra.mxu0 %v1414
    %v1416 = vand.u32 %v211, 4294901760
    %v1417 = vsub.f32 %v211, %v1416
    %v1418 = vand.u32 %v1417, 4294901760
    %1419 = vmatprep.subr.mxu0 %v1418
    %v1420 = vand.u32 %v210, 4294901760
    %v1421 = vsub.f32 %v210, %v1420
    %v1422 = vand.u32 %v1421, 4294901760
    %1423 = vmatpush1.msra.mxu0 %v1422
    %v1424 = vand.u32 %v207, 4294901760
    %v1425 = vsub.f32 %v207, %v1424
    %v1426 = vand.u32 %v1425, 4294901760
    %1427 = vmatprep.subr.mxu0 %v1426
    %v1428 = vand.u32 %v206, 4294901760
    %v1429 = vsub.f32 %v206, %v1428
    %v1430 = vand.u32 %v1429, 4294901760
    %1431 = vmatpush1.msra.mxu0 %v1430
    %v1432 = vand.u32 %v203, 4294901760
    %v1433 = vsub.f32 %v203, %v1432
    %v1434 = vand.u32 %v1433, 4294901760
    %1435 = vmatprep.subr.mxu0 %v1434
    %v1436 = vand.u32 %v202, 4294901760
    %v1437 = vsub.f32 %v202, %v1436
    %v1438 = vand.u32 %v1437, 4294901760
    %1439 = vmatpush1.msra.mxu0 %v1438
    %v1440 = vand.u32 %v199, 4294901760
    %v1441 = vsub.f32 %v199, %v1440
    %v1442 = vand.u32 %v1441, 4294901760
    %1443 = vmatprep.subr.mxu0 %v1442
    %v1444 = vand.u32 %v198, 4294901760
    %v1445 = vsub.f32 %v198, %v1444
    %v1446 = vand.u32 %v1445, 4294901760
    %1447 = vmatpush1.msra.mxu0 %v1446
    %v1448 = vand.u32 %v195, 4294901760
    %v1449 = vsub.f32 %v195, %v1448
    %v1450 = vand.u32 %v1449, 4294901760
    %1451 = vmatprep.subr.mxu0 %v1450
    %v1452 = vand.u32 %v194, 4294901760
    %v1453 = vsub.f32 %v194, %v1452
    %v1454 = vand.u32 %v1453, 4294901760
    %1455 = vmatpush1.msra.mxu0 %v1454
    %v1456 = vand.u32 %v191, 4294901760
    %v1457 = vsub.f32 %v191, %v1456
    %v1458 = vand.u32 %v1457, 4294901760
    %1459 = vmatprep.subr.mxu0 %v1458
    %v1460 = vand.u32 %v190, 4294901760
    %v1461 = vsub.f32 %v190, %v1460
    %v1462 = vand.u32 %v1461, 4294901760
    %1463 = vmatpush1.msra.mxu0 %v1462
    %v1464 = vand.u32 %v187, 4294901760
    %v1465 = vsub.f32 %v187, %v1464
    %v1466 = vand.u32 %v1465, 4294901760
    %1467 = vmatprep.subr.mxu0 %v1466
    %v1468 = vand.u32 %v186, 4294901760
    %v1469 = vsub.f32 %v186, %v1468
    %v1470 = vand.u32 %v1469, 4294901760
    %1471 = vmatpush1.msra.mxu0 %v1470
    %v1472 = vand.u32 %v183, 4294901760
    %v1473 = vsub.f32 %v183, %v1472
    %v1474 = vand.u32 %v1473, 4294901760
    %1475 = vmatprep.subr.mxu0 %v1474
    %v1476 = vand.u32 %v182, 4294901760
    %v1477 = vsub.f32 %v182, %v1476
    %v1478 = vand.u32 %v1477, 4294901760
    %1479 = vmatpush1.msra.mxu0 %v1478
    %v1480 = vand.u32 %v179, 4294901760
    %v1481 = vsub.f32 %v179, %v1480
    %v1482 = vand.u32 %v1481, 4294901760
    %1483 = vmatprep.subr.mxu0 %v1482
    %v1484 = vand.u32 %v178, 4294901760
    %v1485 = vsub.f32 %v178, %v1484
    %v1486 = vand.u32 %v1485, 4294901760
    %1487 = vmatpush1.msra.mxu0 %v1486
    %v1488 = vand.u32 %v175, 4294901760
    %v1489 = vsub.f32 %v175, %v1488
    %v1490 = vand.u32 %v1489, 4294901760
    %1491 = vmatprep.subr.mxu0 %v1490
    %v1492 = vand.u32 %v174, 4294901760
    %v1493 = vsub.f32 %v174, %v1492
    %v1494 = vand.u32 %v1493, 4294901760
    %1495 = vmatpush1.msra.mxu0 %v1494
    %v1496 = vand.u32 %v171, 4294901760
    %v1497 = vsub.f32 %v171, %v1496
    %v1498 = vand.u32 %v1497, 4294901760
    %1499 = vmatprep.subr.mxu0 %v1498
    %v1500 = vand.u32 %v170, 4294901760
    %v1501 = vsub.f32 %v170, %v1500
    %v1502 = vand.u32 %v1501, 4294901760
    %1503 = vmatpush1.msra.mxu0 %v1502
    %v1504 = vand.u32 %v295, 4294901760
    %v1505 = vsub.f32 %v295, %v1504
    %v1506 = vand.u32 %v1505, 4294901760
    %1507 = vmatprep.subr.mxu0 %v1506
    %v1508 = vand.u32 %v294, 4294901760
    %v1509 = vsub.f32 %v294, %v1508
    %v1510 = vand.u32 %v1509, 4294901760
    %1511 = vmatpush2.msra.mxu0 %v1510
    %v1512 = vand.u32 %v291, 4294901760
    %v1513 = vsub.f32 %v291, %v1512
    %v1514 = vand.u32 %v1513, 4294901760
    %1515 = vmatprep.subr.mxu0 %v1514
    %v1516 = vand.u32 %v290, 4294901760
    %v1517 = vsub.f32 %v290, %v1516
    %v1518 = vand.u32 %v1517, 4294901760
    %1519 = vmatpush2.msra.mxu0 %v1518
    %v1520 = vand.u32 %v287, 4294901760
    %v1521 = vsub.f32 %v287, %v1520
    %v1522 = vand.u32 %v1521, 4294901760
    %1523 = vmatprep.subr.mxu0 %v1522
    %v1524 = vand.u32 %v286, 4294901760
    %v1525 = vsub.f32 %v286, %v1524
    %v1526 = vand.u32 %v1525, 4294901760
    %1527 = vmatpush2.msra.mxu0 %v1526
    %v1528 = vand.u32 %v283, 4294901760
    %v1529 = vsub.f32 %v283, %v1528
    %v1530 = vand.u32 %v1529, 4294901760
    %1531 = vmatprep.subr.mxu0 %v1530
    %v1532 = vand.u32 %v282, 4294901760
    %v1533 = vsub.f32 %v282, %v1532
    %v1534 = vand.u32 %v1533, 4294901760
    %1535 = vmatpush2.msra.mxu0 %v1534
    %v1536 = vand.u32 %v279, 4294901760
    %v1537 = vsub.f32 %v279, %v1536
    %v1538 = vand.u32 %v1537, 4294901760
    %1539 = vmatprep.subr.mxu0 %v1538
    %v1540 = vand.u32 %v278, 4294901760
    %v1541 = vsub.f32 %v278, %v1540
    %v1542 = vand.u32 %v1541, 4294901760
    %1543 = vmatpush2.msra.mxu0 %v1542
    %v1544 = vand.u32 %v275, 4294901760
    %v1545 = vsub.f32 %v275, %v1544
    %v1546 = vand.u32 %v1545, 4294901760
    %1547 = vmatprep.subr.mxu0 %v1546
    %v1548 = vand.u32 %v274, 4294901760
    %v1549 = vsub.f32 %v274, %v1548
    %v1550 = vand.u32 %v1549, 4294901760
    %1551 = vmatpush2.msra.mxu0 %v1550
    %v1552 = vand.u32 %v271, 4294901760
    %v1553 = vsub.f32 %v271, %v1552
    %v1554 = vand.u32 %v1553, 4294901760
    %1555 = vmatprep.subr.mxu0 %v1554
    %v1556 = vand.u32 %v270, 4294901760
    %v1557 = vsub.f32 %v270, %v1556
    %v1558 = vand.u32 %v1557, 4294901760
    %1559 = vmatpush2.msra.mxu0 %v1558
    %v1560 = vand.u32 %v267, 4294901760
    %v1561 = vsub.f32 %v267, %v1560
    %v1562 = vand.u32 %v1561, 4294901760
    %1563 = vmatprep.subr.mxu0 %v1562
    %v1564 = vand.u32 %v266, 4294901760
    %v1565 = vsub.f32 %v266, %v1564
    %v1566 = vand.u32 %v1565, 4294901760
    %1567 = vmatpush2.msra.mxu0 %v1566
    %v1568 = vand.u32 %v263, 4294901760
    %v1569 = vsub.f32 %v263, %v1568
    %v1570 = vand.u32 %v1569, 4294901760
    %1571 = vmatprep.subr.mxu0 %v1570
    %v1572 = vand.u32 %v262, 4294901760
    %v1573 = vsub.f32 %v262, %v1572
    %v1574 = vand.u32 %v1573, 4294901760
    %1575 = vmatpush2.msra.mxu0 %v1574
    %v1576 = vand.u32 %v259, 4294901760
    %v1577 = vsub.f32 %v259, %v1576
    %v1578 = vand.u32 %v1577, 4294901760
    %1579 = vmatprep.subr.mxu0 %v1578
    %v1580 = vand.u32 %v258, 4294901760
    %v1581 = vsub.f32 %v258, %v1580
    %v1582 = vand.u32 %v1581, 4294901760
    %1583 = vmatpush2.msra.mxu0 %v1582
    %v1584 = vand.u32 %v255, 4294901760
    %v1585 = vsub.f32 %v255, %v1584
    %v1586 = vand.u32 %v1585, 4294901760
    %1587 = vmatprep.subr.mxu0 %v1586
    %v1588 = vand.u32 %v254, 4294901760
    %v1589 = vsub.f32 %v254, %v1588
    %v1590 = vand.u32 %v1589, 4294901760
    %1591 = vmatpush2.msra.mxu0 %v1590
    %v1592 = vand.u32 %v251, 4294901760
    %v1593 = vsub.f32 %v251, %v1592
    %v1594 = vand.u32 %v1593, 4294901760
    %1595 = vmatprep.subr.mxu0 %v1594
    %v1596 = vand.u32 %v250, 4294901760
    %v1597 = vsub.f32 %v250, %v1596
    %v1598 = vand.u32 %v1597, 4294901760
    %1599 = vmatpush2.msra.mxu0 %v1598
    %v1600 = vand.u32 %v247, 4294901760
    %v1601 = vsub.f32 %v247, %v1600
    %v1602 = vand.u32 %v1601, 4294901760
    %1603 = vmatprep.subr.mxu0 %v1602
    %v1604 = vand.u32 %v246, 4294901760
    %v1605 = vsub.f32 %v246, %v1604
    %v1606 = vand.u32 %v1605, 4294901760
    %1607 = vmatpush2.msra.mxu0 %v1606
    %v1608 = vand.u32 %v243, 4294901760
    %v1609 = vsub.f32 %v243, %v1608
    %v1610 = vand.u32 %v1609, 4294901760
    %1611 = vmatprep.subr.mxu0 %v1610
    %v1612 = vand.u32 %v242, 4294901760
    %v1613 = vsub.f32 %v242, %v1612
    %v1614 = vand.u32 %v1613, 4294901760
    %1615 = vmatpush2.msra.mxu0 %v1614
    %v1616 = vand.u32 %v239, 4294901760
    %v1617 = vsub.f32 %v239, %v1616
    %v1618 = vand.u32 %v1617, 4294901760
    %1619 = vmatprep.subr.mxu0 %v1618
    %v1620 = vand.u32 %v238, 4294901760
    %v1621 = vsub.f32 %v238, %v1620
    %v1622 = vand.u32 %v1621, 4294901760
    %1623 = vmatpush2.msra.mxu0 %v1622
    %v1624 = vand.u32 %v235, 4294901760
    %v1625 = vsub.f32 %v235, %v1624
    %v1626 = vand.u32 %v1625, 4294901760
    %1627 = vmatprep.subr.mxu0 %v1626
    %v1628 = vand.u32 %v234, 4294901760
    %v1629 = vsub.f32 %v234, %v1628
    %v1630 = vand.u32 %v1629, 4294901760
    %1631 = vmatpush2.msra.mxu0 %v1630
    %v1632 = vand.u32 %v163, 4294901760
    %1633 = vmatprep.mubr.f32.mxu0 %v1632
    %v1634 = vand.u32 %v162, 4294901760
    %1635 = vmatmul.mubr.f32.gmra.mxu0 %v1634
    %v1636 = vpop.f32.mrf.mxu0
    %v1637 = vadd.f32 %v1360, %v1636
    %v1638 = vpop.f32.mrf.mxu0
    %v1639 = vadd.f32 %v1362, %v1638
    %v1640 = vand.u32 %v167, 4294901760
    %1641 = vmatprep.mubr.f32.mxu0 %v1640
    %v1642 = vand.u32 %v166, 4294901760
    %1643 = vmatmul.mubr.f32.gmra.mxu0 %v1642
    %v1644 = vpop.f32.mrf.mxu0
    %v1645 = vadd.f32 %v1372, %v1644
    %v1646 = vpop.f32.mrf.mxu0
    %v1647 = vadd.f32 %v1374, %v1646
    %1648 = vdwg.mxu0
    %v1649 = vand.u32 %v231, 4294901760
    %1650 = vmatprep.subr.mxu0 %v1649
    %v1651 = vand.u32 %v230, 4294901760
    %1652 = vmatpush1.msra.mxu0 %v1651
    %v1653 = vand.u32 %v227, 4294901760
    %1654 = vmatprep.subr.mxu0 %v1653
    %v1655 = vand.u32 %v226, 4294901760
    %1656 = vmatpush1.msra.mxu0 %v1655
    %v1657 = vand.u32 %v223, 4294901760
    %1658 = vmatprep.subr.mxu0 %v1657
    %v1659 = vand.u32 %v222, 4294901760
    %1660 = vmatpush1.msra.mxu0 %v1659
    %v1661 = vand.u32 %v219, 4294901760
    %1662 = vmatprep.subr.mxu0 %v1661
    %v1663 = vand.u32 %v218, 4294901760
    %1664 = vmatpush1.msra.mxu0 %v1663
    %v1665 = vand.u32 %v215, 4294901760
    %1666 = vmatprep.subr.mxu0 %v1665
    %v1667 = vand.u32 %v214, 4294901760
    %1668 = vmatpush1.msra.mxu0 %v1667
    %v1669 = vand.u32 %v211, 4294901760
    %1670 = vmatprep.subr.mxu0 %v1669
    %v1671 = vand.u32 %v210, 4294901760
    %1672 = vmatpush1.msra.mxu0 %v1671
    %v1673 = vand.u32 %v207, 4294901760
    %1674 = vmatprep.subr.mxu0 %v1673
    %v1675 = vand.u32 %v206, 4294901760
    %1676 = vmatpush1.msra.mxu0 %v1675
    %v1677 = vand.u32 %v203, 4294901760
    %1678 = vmatprep.subr.mxu0 %v1677
    %v1679 = vand.u32 %v202, 4294901760
    %1680 = vmatpush1.msra.mxu0 %v1679
    %v1681 = vand.u32 %v199, 4294901760
    %1682 = vmatprep.subr.mxu0 %v1681
    %v1683 = vand.u32 %v198, 4294901760
    %1684 = vmatpush1.msra.mxu0 %v1683
    %v1685 = vand.u32 %v195, 4294901760
    %1686 = vmatprep.subr.mxu0 %v1685
    %v1687 = vand.u32 %v194, 4294901760
    %1688 = vmatpush1.msra.mxu0 %v1687
    %v1689 = vand.u32 %v191, 4294901760
    %1690 = vmatprep.subr.mxu0 %v1689
    %v1691 = vand.u32 %v190, 4294901760
    %1692 = vmatpush1.msra.mxu0 %v1691
    %v1693 = vand.u32 %v187, 4294901760
    %1694 = vmatprep.subr.mxu0 %v1693
    %v1695 = vand.u32 %v186, 4294901760
    %1696 = vmatpush1.msra.mxu0 %v1695
    %v1697 = vand.u32 %v183, 4294901760
    %1698 = vmatprep.subr.mxu0 %v1697
    %v1699 = vand.u32 %v182, 4294901760
    %1700 = vmatpush1.msra.mxu0 %v1699
    %v1701 = vand.u32 %v179, 4294901760
    %1702 = vmatprep.subr.mxu0 %v1701
    %v1703 = vand.u32 %v178, 4294901760
    %1704 = vmatpush1.msra.mxu0 %v1703
    %v1705 = vand.u32 %v175, 4294901760
    %1706 = vmatprep.subr.mxu0 %v1705
    %v1707 = vand.u32 %v174, 4294901760
    %1708 = vmatpush1.msra.mxu0 %v1707
    %v1709 = vand.u32 %v171, 4294901760
    %1710 = vmatprep.subr.mxu0 %v1709
    %v1711 = vand.u32 %v170, 4294901760
    %1712 = vmatpush1.msra.mxu0 %v1711
    %v1713 = vand.u32 %v295, 4294901760
    %1714 = vmatprep.subr.mxu0 %v1713
    %v1715 = vand.u32 %v294, 4294901760
    %1716 = vmatpush2.msra.mxu0 %v1715
    %v1717 = vand.u32 %v291, 4294901760
    %1718 = vmatprep.subr.mxu0 %v1717
    %v1719 = vand.u32 %v290, 4294901760
    %1720 = vmatpush2.msra.mxu0 %v1719
    %v1721 = vand.u32 %v287, 4294901760
    %1722 = vmatprep.subr.mxu0 %v1721
    %v1723 = vand.u32 %v286, 4294901760
    %1724 = vmatpush2.msra.mxu0 %v1723
    %v1725 = vand.u32 %v283, 4294901760
    %1726 = vmatprep.subr.mxu0 %v1725
    %v1727 = vand.u32 %v282, 4294901760
    %1728 = vmatpush2.msra.mxu0 %v1727
    %v1729 = vand.u32 %v279, 4294901760
    %1730 = vmatprep.subr.mxu0 %v1729
    %v1731 = vand.u32 %v278, 4294901760
    %1732 = vmatpush2.msra.mxu0 %v1731
    %v1733 = vand.u32 %v275, 4294901760
    %1734 = vmatprep.subr.mxu0 %v1733
    %v1735 = vand.u32 %v274, 4294901760
    %1736 = vmatpush2.msra.mxu0 %v1735
    %v1737 = vand.u32 %v271, 4294901760
    %1738 = vmatprep.subr.mxu0 %v1737
    %v1739 = vand.u32 %v270, 4294901760
    %1740 = vmatpush2.msra.mxu0 %v1739
    %v1741 = vand.u32 %v267, 4294901760
    %1742 = vmatprep.subr.mxu0 %v1741
    %v1743 = vand.u32 %v266, 4294901760
    %1744 = vmatpush2.msra.mxu0 %v1743
    %v1745 = vand.u32 %v263, 4294901760
    %1746 = vmatprep.subr.mxu0 %v1745
    %v1747 = vand.u32 %v262, 4294901760
    %1748 = vmatpush2.msra.mxu0 %v1747
    %v1749 = vand.u32 %v259, 4294901760
    %1750 = vmatprep.subr.mxu0 %v1749
    %v1751 = vand.u32 %v258, 4294901760
    %1752 = vmatpush2.msra.mxu0 %v1751
    %v1753 = vand.u32 %v255, 4294901760
    %1754 = vmatprep.subr.mxu0 %v1753
    %v1755 = vand.u32 %v254, 4294901760
    %1756 = vmatpush2.msra.mxu0 %v1755
    %v1757 = vand.u32 %v251, 4294901760
    %1758 = vmatprep.subr.mxu0 %v1757
    %v1759 = vand.u32 %v250, 4294901760
    %1760 = vmatpush2.msra.mxu0 %v1759
    %v1761 = vand.u32 %v247, 4294901760
    %1762 = vmatprep.subr.mxu0 %v1761
    %v1763 = vand.u32 %v246, 4294901760
    %1764 = vmatpush2.msra.mxu0 %v1763
    %v1765 = vand.u32 %v243, 4294901760
    %1766 = vmatprep.subr.mxu0 %v1765
    %v1767 = vand.u32 %v242, 4294901760
    %1768 = vmatpush2.msra.mxu0 %v1767
    %v1769 = vand.u32 %v239, 4294901760
    %1770 = vmatprep.subr.mxu0 %v1769
    %v1771 = vand.u32 %v238, 4294901760
    %1772 = vmatpush2.msra.mxu0 %v1771
    %v1773 = vand.u32 %v235, 4294901760
    %1774 = vmatprep.subr.mxu0 %v1773
    %v1775 = vand.u32 %v234, 4294901760
    %1776 = vmatpush2.msra.mxu0 %v1775
    %v1777 = vand.u32 %v163, 4294901760
    %1778 = vmatprep.mubr.f32.mxu0 %v1777
    %v1779 = vand.u32 %v162, 4294901760
    %1780 = vmatmul.mubr.f32.gmra.mxu0 %v1779
    %v1781 = vpop.f32.mrf.mxu0
    %v1782 = vadd.f32 %v1637, %v1781
    %v1783 = vpop.f32.mrf.mxu0
    %v1784 = vadd.f32 %v1639, %v1783
    %v1785 = vand.u32 %v167, 4294901760
    %1786 = vmatprep.mubr.f32.mxu0 %v1785
    %v1787 = vand.u32 %v166, 4294901760
    %1788 = vmatmul.mubr.f32.gmra.mxu0 %v1787
    %v1789 = vpop.f32.mrf.mxu0
    %v1790 = vadd.f32 %v1645, %v1789
    %v1791 = vpop.f32.mrf.mxu0
    %v1792 = vadd.f32 %v1647, %v1791
    %1793 = vdwg.mxu0
    %v1794 = vand.u32 %v359, 4294901760
    %1795 = vmatprep.subr.mxu0 %v1794
    %v1796 = vand.u32 %v358, 4294901760
    %1797 = vmatpush1.msra.mxu0 %v1796
    %v1798 = vand.u32 %v355, 4294901760
    %1799 = vmatprep.subr.mxu0 %v1798
    %v1800 = vand.u32 %v354, 4294901760
    %1801 = vmatpush1.msra.mxu0 %v1800
    %v1802 = vand.u32 %v351, 4294901760
    %1803 = vmatprep.subr.mxu0 %v1802
    %v1804 = vand.u32 %v350, 4294901760
    %1805 = vmatpush1.msra.mxu0 %v1804
    %v1806 = vand.u32 %v347, 4294901760
    %1807 = vmatprep.subr.mxu0 %v1806
    %v1808 = vand.u32 %v346, 4294901760
    %1809 = vmatpush1.msra.mxu0 %v1808
    %v1810 = vand.u32 %v343, 4294901760
    %1811 = vmatprep.subr.mxu0 %v1810
    %v1812 = vand.u32 %v342, 4294901760
    %1813 = vmatpush1.msra.mxu0 %v1812
    %v1814 = vand.u32 %v339, 4294901760
    %1815 = vmatprep.subr.mxu0 %v1814
    %v1816 = vand.u32 %v338, 4294901760
    %1817 = vmatpush1.msra.mxu0 %v1816
    %v1818 = vand.u32 %v335, 4294901760
    %1819 = vmatprep.subr.mxu0 %v1818
    %v1820 = vand.u32 %v334, 4294901760
    %1821 = vmatpush1.msra.mxu0 %v1820
    %v1822 = vand.u32 %v331, 4294901760
    %1823 = vmatprep.subr.mxu0 %v1822
    %v1824 = vand.u32 %v330, 4294901760
    %1825 = vmatpush1.msra.mxu0 %v1824
    %v1826 = vand.u32 %v327, 4294901760
    %1827 = vmatprep.subr.mxu0 %v1826
    %v1828 = vand.u32 %v326, 4294901760
    %1829 = vmatpush1.msra.mxu0 %v1828
    %v1830 = vand.u32 %v323, 4294901760
    %1831 = vmatprep.subr.mxu0 %v1830
    %v1832 = vand.u32 %v322, 4294901760
    %1833 = vmatpush1.msra.mxu0 %v1832
    %v1834 = vand.u32 %v319, 4294901760
    %1835 = vmatprep.subr.mxu0 %v1834
    %v1836 = vand.u32 %v318, 4294901760
    %1837 = vmatpush1.msra.mxu0 %v1836
    %v1838 = vand.u32 %v315, 4294901760
    %1839 = vmatprep.subr.mxu0 %v1838
    %v1840 = vand.u32 %v314, 4294901760
    %1841 = vmatpush1.msra.mxu0 %v1840
    %v1842 = vand.u32 %v311, 4294901760
    %1843 = vmatprep.subr.mxu0 %v1842
    %v1844 = vand.u32 %v310, 4294901760
    %1845 = vmatpush1.msra.mxu0 %v1844
    %v1846 = vand.u32 %v307, 4294901760
    %1847 = vmatprep.subr.mxu0 %v1846
    %v1848 = vand.u32 %v306, 4294901760
    %1849 = vmatpush1.msra.mxu0 %v1848
    %v1850 = vand.u32 %v303, 4294901760
    %1851 = vmatprep.subr.mxu0 %v1850
    %v1852 = vand.u32 %v302, 4294901760
    %1853 = vmatpush1.msra.mxu0 %v1852
    %v1854 = vand.u32 %v299, 4294901760
    %1855 = vmatprep.subr.mxu0 %v1854
    %v1856 = vand.u32 %v298, 4294901760
    %1857 = vmatpush1.msra.mxu0 %v1856
    %v1858 = vand.u32 %v423, 4294901760
    %1859 = vmatprep.subr.mxu0 %v1858
    %v1860 = vand.u32 %v422, 4294901760
    %1861 = vmatpush2.msra.mxu0 %v1860
    %v1862 = vand.u32 %v419, 4294901760
    %1863 = vmatprep.subr.mxu0 %v1862
    %v1864 = vand.u32 %v418, 4294901760
    %1865 = vmatpush2.msra.mxu0 %v1864
    %v1866 = vand.u32 %v415, 4294901760
    %1867 = vmatprep.subr.mxu0 %v1866
    %v1868 = vand.u32 %v414, 4294901760
    %1869 = vmatpush2.msra.mxu0 %v1868
    %v1870 = vand.u32 %v411, 4294901760
    %1871 = vmatprep.subr.mxu0 %v1870
    %v1872 = vand.u32 %v410, 4294901760
    %1873 = vmatpush2.msra.mxu0 %v1872
    %v1874 = vand.u32 %v407, 4294901760
    %1875 = vmatprep.subr.mxu0 %v1874
    %v1876 = vand.u32 %v406, 4294901760
    %1877 = vmatpush2.msra.mxu0 %v1876
    %v1878 = vand.u32 %v403, 4294901760
    %1879 = vmatprep.subr.mxu0 %v1878
    %v1880 = vand.u32 %v402, 4294901760
    %1881 = vmatpush2.msra.mxu0 %v1880
    %v1882 = vand.u32 %v399, 4294901760
    %1883 = vmatprep.subr.mxu0 %v1882
    %v1884 = vand.u32 %v398, 4294901760
    %1885 = vmatpush2.msra.mxu0 %v1884
    %v1886 = vand.u32 %v395, 4294901760
    %1887 = vmatprep.subr.mxu0 %v1886
    %v1888 = vand.u32 %v394, 4294901760
    %1889 = vmatpush2.msra.mxu0 %v1888
    %v1890 = vand.u32 %v391, 4294901760
    %1891 = vmatprep.subr.mxu0 %v1890
    %v1892 = vand.u32 %v390, 4294901760
    %1893 = vmatpush2.msra.mxu0 %v1892
    %v1894 = vand.u32 %v387, 4294901760
    %1895 = vmatprep.subr.mxu0 %v1894
    %v1896 = vand.u32 %v386, 4294901760
    %1897 = vmatpush2.msra.mxu0 %v1896
    %v1898 = vand.u32 %v383, 4294901760
    %1899 = vmatprep.subr.mxu0 %v1898
    %v1900 = vand.u32 %v382, 4294901760
    %1901 = vmatpush2.msra.mxu0 %v1900
    %v1902 = vand.u32 %v379, 4294901760
    %1903 = vmatprep.subr.mxu0 %v1902
    %v1904 = vand.u32 %v378, 4294901760
    %1905 = vmatpush2.msra.mxu0 %v1904
    %v1906 = vand.u32 %v375, 4294901760
    %1907 = vmatprep.subr.mxu0 %v1906
    %v1908 = vand.u32 %v374, 4294901760
    %1909 = vmatpush2.msra.mxu0 %v1908
    %v1910 = vand.u32 %v371, 4294901760
    %1911 = vmatprep.subr.mxu0 %v1910
    %v1912 = vand.u32 %v370, 4294901760
    %1913 = vmatpush2.msra.mxu0 %v1912
    %v1914 = vand.u32 %v367, 4294901760
    %1915 = vmatprep.subr.mxu0 %v1914
    %v1916 = vand.u32 %v366, 4294901760
    %1917 = vmatpush2.msra.mxu0 %v1916
    %v1918 = vand.u32 %v363, 4294901760
    %1919 = vmatprep.subr.mxu0 %v1918
    %v1920 = vand.u32 %v362, 4294901760
    %1921 = vmatpush2.msra.mxu0 %v1920
    %v1922 = vand.u32 %v165, 4294901760
    %v1923 = vsub.f32 %v165, %v1922
    %v1924 = vand.u32 %v1923, 4294901760
    %v1925 = vsub.f32 %v1923, %v1924
    %v1926 = vand.u32 %v1925, 4294901760
    %1927 = vmatprep.mubr.f32.mxu0 %v1926
    %v1928 = vand.u32 %v164, 4294901760
    %v1929 = vsub.f32 %v164, %v1928
    %v1930 = vand.u32 %v1929, 4294901760
    %v1931 = vsub.f32 %v1929, %v1930
    %v1932 = vand.u32 %v1931, 4294901760
    %1933 = vmatmul.mubr.f32.gmra.mxu0 %v1932
    %v1934 = vpop.f32.mrf.mxu0
    %v1935 = vadd.f32 %v1782, %v1934
    %v1936 = vpop.f32.mrf.mxu0
    %v1937 = vadd.f32 %v1784, %v1936
    %v1938 = vand.u32 %v169, 4294901760
    %v1939 = vsub.f32 %v169, %v1938
    %v1940 = vand.u32 %v1939, 4294901760
    %v1941 = vsub.f32 %v1939, %v1940
    %v1942 = vand.u32 %v1941, 4294901760
    %1943 = vmatprep.mubr.f32.mxu0 %v1942
    %v1944 = vand.u32 %v168, 4294901760
    %v1945 = vsub.f32 %v168, %v1944
    %v1946 = vand.u32 %v1945, 4294901760
    %v1947 = vsub.f32 %v1945, %v1946
    %v1948 = vand.u32 %v1947, 4294901760
    %1949 = vmatmul.mubr.f32.gmra.mxu0 %v1948
    %v1950 = vpop.f32.mrf.mxu0
    %v1951 = vadd.f32 %v1790, %v1950
    %v1952 = vpop.f32.mrf.mxu0
    %v1953 = vadd.f32 %v1792, %v1952
    %1954 = vdwg.mxu0
    %v1955 = vand.u32 %v359, 4294901760
    %v1956 = vsub.f32 %v359, %v1955
    %v1957 = vand.u32 %v1956, 4294901760
    %v1958 = vsub.f32 %v1956, %v1957
    %v1959 = vand.u32 %v1958, 4294901760
    %1960 = vmatprep.subr.mxu0 %v1959
    %v1961 = vand.u32 %v358, 4294901760
    %v1962 = vsub.f32 %v358, %v1961
    %v1963 = vand.u32 %v1962, 4294901760
    %v1964 = vsub.f32 %v1962, %v1963
    %v1965 = vand.u32 %v1964, 4294901760
    %1966 = vmatpush1.msra.mxu0 %v1965
    %v1967 = vand.u32 %v355, 4294901760
    %v1968 = vsub.f32 %v355, %v1967
    %v1969 = vand.u32 %v1968, 4294901760
    %v1970 = vsub.f32 %v1968, %v1969
    %v1971 = vand.u32 %v1970, 4294901760
    %1972 = vmatprep.subr.mxu0 %v1971
    %v1973 = vand.u32 %v354, 4294901760
    %v1974 = vsub.f32 %v354, %v1973
    %v1975 = vand.u32 %v1974, 4294901760
    %v1976 = vsub.f32 %v1974, %v1975
    %v1977 = vand.u32 %v1976, 4294901760
    %1978 = vmatpush1.msra.mxu0 %v1977
    %v1979 = vand.u32 %v351, 4294901760
    %v1980 = vsub.f32 %v351, %v1979
    %v1981 = vand.u32 %v1980, 4294901760
    %v1982 = vsub.f32 %v1980, %v1981
    %v1983 = vand.u32 %v1982, 4294901760
    %1984 = vmatprep.subr.mxu0 %v1983
    %v1985 = vand.u32 %v350, 4294901760
    %v1986 = vsub.f32 %v350, %v1985
    %v1987 = vand.u32 %v1986, 4294901760
    %v1988 = vsub.f32 %v1986, %v1987
    %v1989 = vand.u32 %v1988, 4294901760
    %1990 = vmatpush1.msra.mxu0 %v1989
    %v1991 = vand.u32 %v347, 4294901760
    %v1992 = vsub.f32 %v347, %v1991
    %v1993 = vand.u32 %v1992, 4294901760
    %v1994 = vsub.f32 %v1992, %v1993
    %v1995 = vand.u32 %v1994, 4294901760
    %1996 = vmatprep.subr.mxu0 %v1995
    %v1997 = vand.u32 %v346, 4294901760
    %v1998 = vsub.f32 %v346, %v1997
    %v1999 = vand.u32 %v1998, 4294901760
    %v2000 = vsub.f32 %v1998, %v1999
    %v2001 = vand.u32 %v2000, 4294901760
    %2002 = vmatpush1.msra.mxu0 %v2001
    %v2003 = vand.u32 %v343, 4294901760
    %v2004 = vsub.f32 %v343, %v2003
    %v2005 = vand.u32 %v2004, 4294901760
    %v2006 = vsub.f32 %v2004, %v2005
    %v2007 = vand.u32 %v2006, 4294901760
    %2008 = vmatprep.subr.mxu0 %v2007
    %v2009 = vand.u32 %v342, 4294901760
    %v2010 = vsub.f32 %v342, %v2009
    %v2011 = vand.u32 %v2010, 4294901760
    %v2012 = vsub.f32 %v2010, %v2011
    %v2013 = vand.u32 %v2012, 4294901760
    %2014 = vmatpush1.msra.mxu0 %v2013
    %v2015 = vand.u32 %v339, 4294901760
    %v2016 = vsub.f32 %v339, %v2015
    %v2017 = vand.u32 %v2016, 4294901760
    %v2018 = vsub.f32 %v2016, %v2017
    %v2019 = vand.u32 %v2018, 4294901760
    %2020 = vmatprep.subr.mxu0 %v2019
    %v2021 = vand.u32 %v338, 4294901760
    %v2022 = vsub.f32 %v338, %v2021
    %v2023 = vand.u32 %v2022, 4294901760
    %v2024 = vsub.f32 %v2022, %v2023
    %v2025 = vand.u32 %v2024, 4294901760
    %2026 = vmatpush1.msra.mxu0 %v2025
    %v2027 = vand.u32 %v335, 4294901760
    %v2028 = vsub.f32 %v335, %v2027
    %v2029 = vand.u32 %v2028, 4294901760
    %v2030 = vsub.f32 %v2028, %v2029
    %v2031 = vand.u32 %v2030, 4294901760
    %2032 = vmatprep.subr.mxu0 %v2031
    %v2033 = vand.u32 %v334, 4294901760
    %v2034 = vsub.f32 %v334, %v2033
    %v2035 = vand.u32 %v2034, 4294901760
    %v2036 = vsub.f32 %v2034, %v2035
    %v2037 = vand.u32 %v2036, 4294901760
    %2038 = vmatpush1.msra.mxu0 %v2037
    %v2039 = vand.u32 %v331, 4294901760
    %v2040 = vsub.f32 %v331, %v2039
    %v2041 = vand.u32 %v2040, 4294901760
    %v2042 = vsub.f32 %v2040, %v2041
    %v2043 = vand.u32 %v2042, 4294901760
    %2044 = vmatprep.subr.mxu0 %v2043
    %v2045 = vand.u32 %v330, 4294901760
    %v2046 = vsub.f32 %v330, %v2045
    %v2047 = vand.u32 %v2046, 4294901760
    %v2048 = vsub.f32 %v2046, %v2047
    %v2049 = vand.u32 %v2048, 4294901760
    %2050 = vmatpush1.msra.mxu0 %v2049
    %v2051 = vand.u32 %v327, 4294901760
    %v2052 = vsub.f32 %v327, %v2051
    %v2053 = vand.u32 %v2052, 4294901760
    %v2054 = vsub.f32 %v2052, %v2053
    %v2055 = vand.u32 %v2054, 4294901760
    %2056 = vmatprep.subr.mxu0 %v2055
    %v2057 = vand.u32 %v326, 4294901760
    %v2058 = vsub.f32 %v326, %v2057
    %v2059 = vand.u32 %v2058, 4294901760
    %v2060 = vsub.f32 %v2058, %v2059
    %v2061 = vand.u32 %v2060, 4294901760
    %2062 = vmatpush1.msra.mxu0 %v2061
    %v2063 = vand.u32 %v323, 4294901760
    %v2064 = vsub.f32 %v323, %v2063
    %v2065 = vand.u32 %v2064, 4294901760
    %v2066 = vsub.f32 %v2064, %v2065
    %v2067 = vand.u32 %v2066, 4294901760
    %2068 = vmatprep.subr.mxu0 %v2067
    %v2069 = vand.u32 %v322, 4294901760
    %v2070 = vsub.f32 %v322, %v2069
    %v2071 = vand.u32 %v2070, 4294901760
    %v2072 = vsub.f32 %v2070, %v2071
    %v2073 = vand.u32 %v2072, 4294901760
    %2074 = vmatpush1.msra.mxu0 %v2073
    %v2075 = vand.u32 %v319, 4294901760
    %v2076 = vsub.f32 %v319, %v2075
    %v2077 = vand.u32 %v2076, 4294901760
    %v2078 = vsub.f32 %v2076, %v2077
    %v2079 = vand.u32 %v2078, 4294901760
    %2080 = vmatprep.subr.mxu0 %v2079
    %v2081 = vand.u32 %v318, 4294901760
    %v2082 = vsub.f32 %v318, %v2081
    %v2083 = vand.u32 %v2082, 4294901760
    %v2084 = vsub.f32 %v2082, %v2083
    %v2085 = vand.u32 %v2084, 4294901760
    %2086 = vmatpush1.msra.mxu0 %v2085
    %v2087 = vand.u32 %v315, 4294901760
    %v2088 = vsub.f32 %v315, %v2087
    %v2089 = vand.u32 %v2088, 4294901760
    %v2090 = vsub.f32 %v2088, %v2089
    %v2091 = vand.u32 %v2090, 4294901760
    %2092 = vmatprep.subr.mxu0 %v2091
    %v2093 = vand.u32 %v314, 4294901760
    %v2094 = vsub.f32 %v314, %v2093
    %v2095 = vand.u32 %v2094, 4294901760
    %v2096 = vsub.f32 %v2094, %v2095
    %v2097 = vand.u32 %v2096, 4294901760
    %2098 = vmatpush1.msra.mxu0 %v2097
    %v2099 = vand.u32 %v311, 4294901760
    %v2100 = vsub.f32 %v311, %v2099
    %v2101 = vand.u32 %v2100, 4294901760
    %v2102 = vsub.f32 %v2100, %v2101
    %v2103 = vand.u32 %v2102, 4294901760
    %2104 = vmatprep.subr.mxu0 %v2103
    %v2105 = vand.u32 %v310, 4294901760
    %v2106 = vsub.f32 %v310, %v2105
    %v2107 = vand.u32 %v2106, 4294901760
    %v2108 = vsub.f32 %v2106, %v2107
    %v2109 = vand.u32 %v2108, 4294901760
    %2110 = vmatpush1.msra.mxu0 %v2109
    %v2111 = vand.u32 %v307, 4294901760
    %v2112 = vsub.f32 %v307, %v2111
    %v2113 = vand.u32 %v2112, 4294901760
    %v2114 = vsub.f32 %v2112, %v2113
    %v2115 = vand.u32 %v2114, 4294901760
    %2116 = vmatprep.subr.mxu0 %v2115
    %v2117 = vand.u32 %v306, 4294901760
    %v2118 = vsub.f32 %v306, %v2117
    %v2119 = vand.u32 %v2118, 4294901760
    %v2120 = vsub.f32 %v2118, %v2119
    %v2121 = vand.u32 %v2120, 4294901760
    %2122 = vmatpush1.msra.mxu0 %v2121
    %v2123 = vand.u32 %v303, 4294901760
    %v2124 = vsub.f32 %v303, %v2123
    %v2125 = vand.u32 %v2124, 4294901760
    %v2126 = vsub.f32 %v2124, %v2125
    %v2127 = vand.u32 %v2126, 4294901760
    %2128 = vmatprep.subr.mxu0 %v2127
    %v2129 = vand.u32 %v302, 4294901760
    %v2130 = vsub.f32 %v302, %v2129
    %v2131 = vand.u32 %v2130, 4294901760
    %v2132 = vsub.f32 %v2130, %v2131
    %v2133 = vand.u32 %v2132, 4294901760
    %2134 = vmatpush1.msra.mxu0 %v2133
    %v2135 = vand.u32 %v299, 4294901760
    %v2136 = vsub.f32 %v299, %v2135
    %v2137 = vand.u32 %v2136, 4294901760
    %v2138 = vsub.f32 %v2136, %v2137
    %v2139 = vand.u32 %v2138, 4294901760
    %2140 = vmatprep.subr.mxu0 %v2139
    %v2141 = vand.u32 %v298, 4294901760
    %v2142 = vsub.f32 %v298, %v2141
    %v2143 = vand.u32 %v2142, 4294901760
    %v2144 = vsub.f32 %v2142, %v2143
    %v2145 = vand.u32 %v2144, 4294901760
    %2146 = vmatpush1.msra.mxu0 %v2145
    %v2147 = vand.u32 %v423, 4294901760
    %v2148 = vsub.f32 %v423, %v2147
    %v2149 = vand.u32 %v2148, 4294901760
    %v2150 = vsub.f32 %v2148, %v2149
    %v2151 = vand.u32 %v2150, 4294901760
    %2152 = vmatprep.subr.mxu0 %v2151
    %v2153 = vand.u32 %v422, 4294901760
    %v2154 = vsub.f32 %v422, %v2153
    %v2155 = vand.u32 %v2154, 4294901760
    %v2156 = vsub.f32 %v2154, %v2155
    %v2157 = vand.u32 %v2156, 4294901760
    %2158 = vmatpush2.msra.mxu0 %v2157
    %v2159 = vand.u32 %v419, 4294901760
    %v2160 = vsub.f32 %v419, %v2159
    %v2161 = vand.u32 %v2160, 4294901760
    %v2162 = vsub.f32 %v2160, %v2161
    %v2163 = vand.u32 %v2162, 4294901760
    %2164 = vmatprep.subr.mxu0 %v2163
    %v2165 = vand.u32 %v418, 4294901760
    %v2166 = vsub.f32 %v418, %v2165
    %v2167 = vand.u32 %v2166, 4294901760
    %v2168 = vsub.f32 %v2166, %v2167
    %v2169 = vand.u32 %v2168, 4294901760
    %2170 = vmatpush2.msra.mxu0 %v2169
    %v2171 = vand.u32 %v415, 4294901760
    %v2172 = vsub.f32 %v415, %v2171
    %v2173 = vand.u32 %v2172, 4294901760
    %v2174 = vsub.f32 %v2172, %v2173
    %v2175 = vand.u32 %v2174, 4294901760
    %2176 = vmatprep.subr.mxu0 %v2175
    %v2177 = vand.u32 %v414, 4294901760
    %v2178 = vsub.f32 %v414, %v2177
    %v2179 = vand.u32 %v2178, 4294901760
    %v2180 = vsub.f32 %v2178, %v2179
    %v2181 = vand.u32 %v2180, 4294901760
    %2182 = vmatpush2.msra.mxu0 %v2181
    %v2183 = vand.u32 %v411, 4294901760
    %v2184 = vsub.f32 %v411, %v2183
    %v2185 = vand.u32 %v2184, 4294901760
    %v2186 = vsub.f32 %v2184, %v2185
    %v2187 = vand.u32 %v2186, 4294901760
    %2188 = vmatprep.subr.mxu0 %v2187
    %v2189 = vand.u32 %v410, 4294901760
    %v2190 = vsub.f32 %v410, %v2189
    %v2191 = vand.u32 %v2190, 4294901760
    %v2192 = vsub.f32 %v2190, %v2191
    %v2193 = vand.u32 %v2192, 4294901760
    %2194 = vmatpush2.msra.mxu0 %v2193
    %v2195 = vand.u32 %v407, 4294901760
    %v2196 = vsub.f32 %v407, %v2195
    %v2197 = vand.u32 %v2196, 4294901760
    %v2198 = vsub.f32 %v2196, %v2197
    %v2199 = vand.u32 %v2198, 4294901760
    %2200 = vmatprep.subr.mxu0 %v2199
    %v2201 = vand.u32 %v406, 4294901760
    %v2202 = vsub.f32 %v406, %v2201
    %v2203 = vand.u32 %v2202, 4294901760
    %v2204 = vsub.f32 %v2202, %v2203
    %v2205 = vand.u32 %v2204, 4294901760
    %2206 = vmatpush2.msra.mxu0 %v2205
    %v2207 = vand.u32 %v403, 4294901760
    %v2208 = vsub.f32 %v403, %v2207
    %v2209 = vand.u32 %v2208, 4294901760
    %v2210 = vsub.f32 %v2208, %v2209
    %v2211 = vand.u32 %v2210, 4294901760
    %2212 = vmatprep.subr.mxu0 %v2211
    %v2213 = vand.u32 %v402, 4294901760
    %v2214 = vsub.f32 %v402, %v2213
    %v2215 = vand.u32 %v2214, 4294901760
    %v2216 = vsub.f32 %v2214, %v2215
    %v2217 = vand.u32 %v2216, 4294901760
    %2218 = vmatpush2.msra.mxu0 %v2217
    %v2219 = vand.u32 %v399, 4294901760
    %v2220 = vsub.f32 %v399, %v2219
    %v2221 = vand.u32 %v2220, 4294901760
    %v2222 = vsub.f32 %v2220, %v2221
    %v2223 = vand.u32 %v2222, 4294901760
    %2224 = vmatprep.subr.mxu0 %v2223
    %v2225 = vand.u32 %v398, 4294901760
    %v2226 = vsub.f32 %v398, %v2225
    %v2227 = vand.u32 %v2226, 4294901760
    %v2228 = vsub.f32 %v2226, %v2227
    %v2229 = vand.u32 %v2228, 4294901760
    %2230 = vmatpush2.msra.mxu0 %v2229
    %v2231 = vand.u32 %v395, 4294901760
    %v2232 = vsub.f32 %v395, %v2231
    %v2233 = vand.u32 %v2232, 4294901760
    %v2234 = vsub.f32 %v2232, %v2233
    %v2235 = vand.u32 %v2234, 4294901760
    %2236 = vmatprep.subr.mxu0 %v2235
    %v2237 = vand.u32 %v394, 4294901760
    %v2238 = vsub.f32 %v394, %v2237
    %v2239 = vand.u32 %v2238, 4294901760
    %v2240 = vsub.f32 %v2238, %v2239
    %v2241 = vand.u32 %v2240, 4294901760
    %2242 = vmatpush2.msra.mxu0 %v2241
    %v2243 = vand.u32 %v391, 4294901760
    %v2244 = vsub.f32 %v391, %v2243
    %v2245 = vand.u32 %v2244, 4294901760
    %v2246 = vsub.f32 %v2244, %v2245
    %v2247 = vand.u32 %v2246, 4294901760
    %2248 = vmatprep.subr.mxu0 %v2247
    %v2249 = vand.u32 %v390, 4294901760
    %v2250 = vsub.f32 %v390, %v2249
    %v2251 = vand.u32 %v2250, 4294901760
    %v2252 = vsub.f32 %v2250, %v2251
    %v2253 = vand.u32 %v2252, 4294901760
    %2254 = vmatpush2.msra.mxu0 %v2253
    %v2255 = vand.u32 %v387, 4294901760
    %v2256 = vsub.f32 %v387, %v2255
    %v2257 = vand.u32 %v2256, 4294901760
    %v2258 = vsub.f32 %v2256, %v2257
    %v2259 = vand.u32 %v2258, 4294901760
    %2260 = vmatprep.subr.mxu0 %v2259
    %v2261 = vand.u32 %v386, 4294901760
    %v2262 = vsub.f32 %v386, %v2261
    %v2263 = vand.u32 %v2262, 4294901760
    %v2264 = vsub.f32 %v2262, %v2263
    %v2265 = vand.u32 %v2264, 4294901760
    %2266 = vmatpush2.msra.mxu0 %v2265
    %v2267 = vand.u32 %v383, 4294901760
    %v2268 = vsub.f32 %v383, %v2267
    %v2269 = vand.u32 %v2268, 4294901760
    %v2270 = vsub.f32 %v2268, %v2269
    %v2271 = vand.u32 %v2270, 4294901760
    %2272 = vmatprep.subr.mxu0 %v2271
    %v2273 = vand.u32 %v382, 4294901760
    %v2274 = vsub.f32 %v382, %v2273
    %v2275 = vand.u32 %v2274, 4294901760
    %v2276 = vsub.f32 %v2274, %v2275
    %v2277 = vand.u32 %v2276, 4294901760
    %2278 = vmatpush2.msra.mxu0 %v2277
    %v2279 = vand.u32 %v379, 4294901760
    %v2280 = vsub.f32 %v379, %v2279
    %v2281 = vand.u32 %v2280, 4294901760
    %v2282 = vsub.f32 %v2280, %v2281
    %v2283 = vand.u32 %v2282, 4294901760
    %2284 = vmatprep.subr.mxu0 %v2283
    %v2285 = vand.u32 %v378, 4294901760
    %v2286 = vsub.f32 %v378, %v2285
    %v2287 = vand.u32 %v2286, 4294901760
    %v2288 = vsub.f32 %v2286, %v2287
    %v2289 = vand.u32 %v2288, 4294901760
    %2290 = vmatpush2.msra.mxu0 %v2289
    %v2291 = vand.u32 %v375, 4294901760
    %v2292 = vsub.f32 %v375, %v2291
    %v2293 = vand.u32 %v2292, 4294901760
    %v2294 = vsub.f32 %v2292, %v2293
    %v2295 = vand.u32 %v2294, 4294901760
    %2296 = vmatprep.subr.mxu0 %v2295
    %v2297 = vand.u32 %v374, 4294901760
    %v2298 = vsub.f32 %v374, %v2297
    %v2299 = vand.u32 %v2298, 4294901760
    %v2300 = vsub.f32 %v2298, %v2299
    %v2301 = vand.u32 %v2300, 4294901760
    %2302 = vmatpush2.msra.mxu0 %v2301
    %v2303 = vand.u32 %v371, 4294901760
    %v2304 = vsub.f32 %v371, %v2303
    %v2305 = vand.u32 %v2304, 4294901760
    %v2306 = vsub.f32 %v2304, %v2305
    %v2307 = vand.u32 %v2306, 4294901760
    %2308 = vmatprep.subr.mxu0 %v2307
    %v2309 = vand.u32 %v370, 4294901760
    %v2310 = vsub.f32 %v370, %v2309
    %v2311 = vand.u32 %v2310, 4294901760
    %v2312 = vsub.f32 %v2310, %v2311
    %v2313 = vand.u32 %v2312, 4294901760
    %2314 = vmatpush2.msra.mxu0 %v2313
    %v2315 = vand.u32 %v367, 4294901760
    %v2316 = vsub.f32 %v367, %v2315
    %v2317 = vand.u32 %v2316, 4294901760
    %v2318 = vsub.f32 %v2316, %v2317
    %v2319 = vand.u32 %v2318, 4294901760
    %2320 = vmatprep.subr.mxu0 %v2319
    %v2321 = vand.u32 %v366, 4294901760
    %v2322 = vsub.f32 %v366, %v2321
    %v2323 = vand.u32 %v2322, 4294901760
    %v2324 = vsub.f32 %v2322, %v2323
    %v2325 = vand.u32 %v2324, 4294901760
    %2326 = vmatpush2.msra.mxu0 %v2325
    %v2327 = vand.u32 %v363, 4294901760
    %v2328 = vsub.f32 %v363, %v2327
    %v2329 = vand.u32 %v2328, 4294901760
    %v2330 = vsub.f32 %v2328, %v2329
    %v2331 = vand.u32 %v2330, 4294901760
    %2332 = vmatprep.subr.mxu0 %v2331
    %v2333 = vand.u32 %v362, 4294901760
    %v2334 = vsub.f32 %v362, %v2333
    %v2335 = vand.u32 %v2334, 4294901760
    %v2336 = vsub.f32 %v2334, %v2335
    %v2337 = vand.u32 %v2336, 4294901760
    %2338 = vmatpush2.msra.mxu0 %v2337
    %v2339 = vand.u32 %v165, 4294901760
    %2340 = vmatprep.mubr.f32.mxu0 %v2339
    %v2341 = vand.u32 %v164, 4294901760
    %2342 = vmatmul.mubr.f32.gmra.mxu0 %v2341
    %v2343 = vpop.f32.mrf.mxu0
    %v2344 = vadd.f32 %v1935, %v2343
    %v2345 = vpop.f32.mrf.mxu0
    %v2346 = vadd.f32 %v1937, %v2345
    %v2347 = vand.u32 %v169, 4294901760
    %2348 = vmatprep.mubr.f32.mxu0 %v2347
    %v2349 = vand.u32 %v168, 4294901760
    %2350 = vmatmul.mubr.f32.gmra.mxu0 %v2349
    %v2351 = vpop.f32.mrf.mxu0
    %v2352 = vadd.f32 %v1951, %v2351
    %v2353 = vpop.f32.mrf.mxu0
    %v2354 = vadd.f32 %v1953, %v2353
    %2355 = vdwg.mxu0
    %v2356 = vand.u32 %v359, 4294901760
    %v2357 = vsub.f32 %v359, %v2356
    %2358 = vmatprep.subr.mxu0 %v2357
    %v2359 = vand.u32 %v358, 4294901760
    %v2360 = vsub.f32 %v358, %v2359
    %2361 = vmatpush1.msra.mxu0 %v2360
    %v2362 = vand.u32 %v355, 4294901760
    %v2363 = vsub.f32 %v355, %v2362
    %2364 = vmatprep.subr.mxu0 %v2363
    %v2365 = vand.u32 %v354, 4294901760
    %v2366 = vsub.f32 %v354, %v2365
    %2367 = vmatpush1.msra.mxu0 %v2366
    %v2368 = vand.u32 %v351, 4294901760
    %v2369 = vsub.f32 %v351, %v2368
    %2370 = vmatprep.subr.mxu0 %v2369
    %v2371 = vand.u32 %v350, 4294901760
    %v2372 = vsub.f32 %v350, %v2371
    %2373 = vmatpush1.msra.mxu0 %v2372
    %v2374 = vand.u32 %v347, 4294901760
    %v2375 = vsub.f32 %v347, %v2374
    %2376 = vmatprep.subr.mxu0 %v2375
    %v2377 = vand.u32 %v346, 4294901760
    %v2378 = vsub.f32 %v346, %v2377
    %2379 = vmatpush1.msra.mxu0 %v2378
    %v2380 = vand.u32 %v343, 4294901760
    %v2381 = vsub.f32 %v343, %v2380
    %2382 = vmatprep.subr.mxu0 %v2381
    %v2383 = vand.u32 %v342, 4294901760
    %v2384 = vsub.f32 %v342, %v2383
    %2385 = vmatpush1.msra.mxu0 %v2384
    %v2386 = vand.u32 %v339, 4294901760
    %v2387 = vsub.f32 %v339, %v2386
    %2388 = vmatprep.subr.mxu0 %v2387
    %v2389 = vand.u32 %v338, 4294901760
    %v2390 = vsub.f32 %v338, %v2389
    %2391 = vmatpush1.msra.mxu0 %v2390
    %v2392 = vand.u32 %v335, 4294901760
    %v2393 = vsub.f32 %v335, %v2392
    %2394 = vmatprep.subr.mxu0 %v2393
    %v2395 = vand.u32 %v334, 4294901760
    %v2396 = vsub.f32 %v334, %v2395
    %2397 = vmatpush1.msra.mxu0 %v2396
    %v2398 = vand.u32 %v331, 4294901760
    %v2399 = vsub.f32 %v331, %v2398
    %2400 = vmatprep.subr.mxu0 %v2399
    %v2401 = vand.u32 %v330, 4294901760
    %v2402 = vsub.f32 %v330, %v2401
    %2403 = vmatpush1.msra.mxu0 %v2402
    %v2404 = vand.u32 %v327, 4294901760
    %v2405 = vsub.f32 %v327, %v2404
    %2406 = vmatprep.subr.mxu0 %v2405
    %v2407 = vand.u32 %v326, 4294901760
    %v2408 = vsub.f32 %v326, %v2407
    %2409 = vmatpush1.msra.mxu0 %v2408
    %v2410 = vand.u32 %v323, 4294901760
    %v2411 = vsub.f32 %v323, %v2410
    %2412 = vmatprep.subr.mxu0 %v2411
    %v2413 = vand.u32 %v322, 4294901760
    %v2414 = vsub.f32 %v322, %v2413
    %2415 = vmatpush1.msra.mxu0 %v2414
    %v2416 = vand.u32 %v319, 4294901760
    %v2417 = vsub.f32 %v319, %v2416
    %2418 = vmatprep.subr.mxu0 %v2417
    %v2419 = vand.u32 %v318, 4294901760
    %v2420 = vsub.f32 %v318, %v2419
    %2421 = vmatpush1.msra.mxu0 %v2420
    %v2422 = vand.u32 %v315, 4294901760
    %v2423 = vsub.f32 %v315, %v2422
    %2424 = vmatprep.subr.mxu0 %v2423
    %v2425 = vand.u32 %v314, 4294901760
    %v2426 = vsub.f32 %v314, %v2425
    %2427 = vmatpush1.msra.mxu0 %v2426
    %v2428 = vand.u32 %v311, 4294901760
    %v2429 = vsub.f32 %v311, %v2428
    %2430 = vmatprep.subr.mxu0 %v2429
    %v2431 = vand.u32 %v310, 4294901760
    %v2432 = vsub.f32 %v310, %v2431
    %2433 = vmatpush1.msra.mxu0 %v2432
    %v2434 = vand.u32 %v307, 4294901760
    %v2435 = vsub.f32 %v307, %v2434
    %2436 = vmatprep.subr.mxu0 %v2435
    %v2437 = vand.u32 %v306, 4294901760
    %v2438 = vsub.f32 %v306, %v2437
    %2439 = vmatpush1.msra.mxu0 %v2438
    %v2440 = vand.u32 %v303, 4294901760
    %v2441 = vsub.f32 %v303, %v2440
    %2442 = vmatprep.subr.mxu0 %v2441
    %v2443 = vand.u32 %v302, 4294901760
    %v2444 = vsub.f32 %v302, %v2443
    %2445 = vmatpush1.msra.mxu0 %v2444
    %v2446 = vand.u32 %v299, 4294901760
    %v2447 = vsub.f32 %v299, %v2446
    %2448 = vmatprep.subr.mxu0 %v2447
    %v2449 = vand.u32 %v298, 4294901760
    %v2450 = vsub.f32 %v298, %v2449
    %2451 = vmatpush1.msra.mxu0 %v2450
    %v2452 = vand.u32 %v423, 4294901760
    %v2453 = vsub.f32 %v423, %v2452
    %2454 = vmatprep.subr.mxu0 %v2453
    %v2455 = vand.u32 %v422, 4294901760
    %v2456 = vsub.f32 %v422, %v2455
    %2457 = vmatpush2.msra.mxu0 %v2456
    %v2458 = vand.u32 %v419, 4294901760
    %v2459 = vsub.f32 %v419, %v2458
    %2460 = vmatprep.subr.mxu0 %v2459
    %v2461 = vand.u32 %v418, 4294901760
    %v2462 = vsub.f32 %v418, %v2461
    %2463 = vmatpush2.msra.mxu0 %v2462
    %v2464 = vand.u32 %v415, 4294901760
    %v2465 = vsub.f32 %v415, %v2464
    %2466 = vmatprep.subr.mxu0 %v2465
    %v2467 = vand.u32 %v414, 4294901760
    %v2468 = vsub.f32 %v414, %v2467
    %2469 = vmatpush2.msra.mxu0 %v2468
    %v2470 = vand.u32 %v411, 4294901760
    %v2471 = vsub.f32 %v411, %v2470
    %2472 = vmatprep.subr.mxu0 %v2471
    %v2473 = vand.u32 %v410, 4294901760
    %v2474 = vsub.f32 %v410, %v2473
    %2475 = vmatpush2.msra.mxu0 %v2474
    %v2476 = vand.u32 %v407, 4294901760
    %v2477 = vsub.f32 %v407, %v2476
    %2478 = vmatprep.subr.mxu0 %v2477
    %v2479 = vand.u32 %v406, 4294901760
    %v2480 = vsub.f32 %v406, %v2479
    %2481 = vmatpush2.msra.mxu0 %v2480
    %v2482 = vand.u32 %v403, 4294901760
    %v2483 = vsub.f32 %v403, %v2482
    %2484 = vmatprep.subr.mxu0 %v2483
    %v2485 = vand.u32 %v402, 4294901760
    %v2486 = vsub.f32 %v402, %v2485
    %2487 = vmatpush2.msra.mxu0 %v2486
    %v2488 = vand.u32 %v399, 4294901760
    %v2489 = vsub.f32 %v399, %v2488
    %2490 = vmatprep.subr.mxu0 %v2489
    %v2491 = vand.u32 %v398, 4294901760
    %v2492 = vsub.f32 %v398, %v2491
    %2493 = vmatpush2.msra.mxu0 %v2492
    %v2494 = vand.u32 %v395, 4294901760
    %v2495 = vsub.f32 %v395, %v2494
    %2496 = vmatprep.subr.mxu0 %v2495
    %v2497 = vand.u32 %v394, 4294901760
    %v2498 = vsub.f32 %v394, %v2497
    %2499 = vmatpush2.msra.mxu0 %v2498
    %v2500 = vand.u32 %v391, 4294901760
    %v2501 = vsub.f32 %v391, %v2500
    %2502 = vmatprep.subr.mxu0 %v2501
    %v2503 = vand.u32 %v390, 4294901760
    %v2504 = vsub.f32 %v390, %v2503
    %2505 = vmatpush2.msra.mxu0 %v2504
    %v2506 = vand.u32 %v387, 4294901760
    %v2507 = vsub.f32 %v387, %v2506
    %2508 = vmatprep.subr.mxu0 %v2507
    %v2509 = vand.u32 %v386, 4294901760
    %v2510 = vsub.f32 %v386, %v2509
    %2511 = vmatpush2.msra.mxu0 %v2510
    %v2512 = vand.u32 %v383, 4294901760
    %v2513 = vsub.f32 %v383, %v2512
    %2514 = vmatprep.subr.mxu0 %v2513
    %v2515 = vand.u32 %v382, 4294901760
    %v2516 = vsub.f32 %v382, %v2515
    %2517 = vmatpush2.msra.mxu0 %v2516
    %v2518 = vand.u32 %v379, 4294901760
    %v2519 = vsub.f32 %v379, %v2518
    %2520 = vmatprep.subr.mxu0 %v2519
    %v2521 = vand.u32 %v378, 4294901760
    %v2522 = vsub.f32 %v378, %v2521
    %2523 = vmatpush2.msra.mxu0 %v2522
    %v2524 = vand.u32 %v375, 4294901760
    %v2525 = vsub.f32 %v375, %v2524
    %2526 = vmatprep.subr.mxu0 %v2525
    %v2527 = vand.u32 %v374, 4294901760
    %v2528 = vsub.f32 %v374, %v2527
    %2529 = vmatpush2.msra.mxu0 %v2528
    %v2530 = vand.u32 %v371, 4294901760
    %v2531 = vsub.f32 %v371, %v2530
    %2532 = vmatprep.subr.mxu0 %v2531
    %v2533 = vand.u32 %v370, 4294901760
    %v2534 = vsub.f32 %v370, %v2533
    %2535 = vmatpush2.msra.mxu0 %v2534
    %v2536 = vand.u32 %v367, 4294901760
    %v2537 = vsub.f32 %v367, %v2536
    %2538 = vmatprep.subr.mxu0 %v2537
    %v2539 = vand.u32 %v366, 4294901760
    %v2540 = vsub.f32 %v366, %v2539
    %2541 = vmatpush2.msra.mxu0 %v2540
    %v2542 = vand.u32 %v363, 4294901760
    %v2543 = vsub.f32 %v363, %v2542
    %2544 = vmatprep.subr.mxu0 %v2543
    %v2545 = vand.u32 %v362, 4294901760
    %v2546 = vsub.f32 %v362, %v2545
    %2547 = vmatpush2.msra.mxu0 %v2546
    %v2548 = vand.u32 %v165, 4294901760
    %v2549 = vsub.f32 %v165, %v2548
    %2550 = vmatprep.mubr.f32.mxu0 %v2549
    %v2551 = vand.u32 %v164, 4294901760
    %v2552 = vsub.f32 %v164, %v2551
    %2553 = vmatmul.mubr.f32.gmra.mxu0 %v2552
    %v2554 = vpop.f32.mrf.mxu0
    %v2555 = vadd.f32 %v2344, %v2554
    %v2556 = vpop.f32.mrf.mxu0
    %v2557 = vadd.f32 %v2346, %v2556
    %v2558 = vand.u32 %v169, 4294901760
    %v2559 = vsub.f32 %v169, %v2558
    %2560 = vmatprep.mubr.f32.mxu0 %v2559
    %v2561 = vand.u32 %v168, 4294901760
    %v2562 = vsub.f32 %v168, %v2561
    %2563 = vmatmul.mubr.f32.gmra.mxu0 %v2562
    %v2564 = vpop.f32.mrf.mxu0
    %v2565 = vadd.f32 %v2352, %v2564
    %v2566 = vpop.f32.mrf.mxu0
    %v2567 = vadd.f32 %v2354, %v2566
    %2568 = vdwg.mxu0
    %v2569 = vand.u32 %v359, 4294901760
    %2570 = vmatprep.subr.mxu0 %v2569
    %v2571 = vand.u32 %v358, 4294901760
    %2572 = vmatpush1.msra.mxu0 %v2571
    %v2573 = vand.u32 %v355, 4294901760
    %2574 = vmatprep.subr.mxu0 %v2573
    %v2575 = vand.u32 %v354, 4294901760
    %2576 = vmatpush1.msra.mxu0 %v2575
    %v2577 = vand.u32 %v351, 4294901760
    %2578 = vmatprep.subr.mxu0 %v2577
    %v2579 = vand.u32 %v350, 4294901760
    %2580 = vmatpush1.msra.mxu0 %v2579
    %v2581 = vand.u32 %v347, 4294901760
    %2582 = vmatprep.subr.mxu0 %v2581
    %v2583 = vand.u32 %v346, 4294901760
    %2584 = vmatpush1.msra.mxu0 %v2583
    %v2585 = vand.u32 %v343, 4294901760
    %2586 = vmatprep.subr.mxu0 %v2585
    %v2587 = vand.u32 %v342, 4294901760
    %2588 = vmatpush1.msra.mxu0 %v2587
    %v2589 = vand.u32 %v339, 4294901760
    %2590 = vmatprep.subr.mxu0 %v2589
    %v2591 = vand.u32 %v338, 4294901760
    %2592 = vmatpush1.msra.mxu0 %v2591
    %v2593 = vand.u32 %v335, 4294901760
    %2594 = vmatprep.subr.mxu0 %v2593
    %v2595 = vand.u32 %v334, 4294901760
    %2596 = vmatpush1.msra.mxu0 %v2595
    %v2597 = vand.u32 %v331, 4294901760
    %2598 = vmatprep.subr.mxu0 %v2597
    %v2599 = vand.u32 %v330, 4294901760
    %2600 = vmatpush1.msra.mxu0 %v2599
    %v2601 = vand.u32 %v327, 4294901760
    %2602 = vmatprep.subr.mxu0 %v2601
    %v2603 = vand.u32 %v326, 4294901760
    %2604 = vmatpush1.msra.mxu0 %v2603
    %v2605 = vand.u32 %v323, 4294901760
    %2606 = vmatprep.subr.mxu0 %v2605
    %v2607 = vand.u32 %v322, 4294901760
    %2608 = vmatpush1.msra.mxu0 %v2607
    %v2609 = vand.u32 %v319, 4294901760
    %2610 = vmatprep.subr.mxu0 %v2609
    %v2611 = vand.u32 %v318, 4294901760
    %2612 = vmatpush1.msra.mxu0 %v2611
    %v2613 = vand.u32 %v315, 4294901760
    %2614 = vmatprep.subr.mxu0 %v2613
    %v2615 = vand.u32 %v314, 4294901760
    %2616 = vmatpush1.msra.mxu0 %v2615
    %v2617 = vand.u32 %v311, 4294901760
    %2618 = vmatprep.subr.mxu0 %v2617
    %v2619 = vand.u32 %v310, 4294901760
    %2620 = vmatpush1.msra.mxu0 %v2619
    %v2621 = vand.u32 %v307, 4294901760
    %2622 = vmatprep.subr.mxu0 %v2621
    %v2623 = vand.u32 %v306, 4294901760
    %2624 = vmatpush1.msra.mxu0 %v2623
    %v2625 = vand.u32 %v303, 4294901760
    %2626 = vmatprep.subr.mxu0 %v2625
    %v2627 = vand.u32 %v302, 4294901760
    %2628 = vmatpush1.msra.mxu0 %v2627
    %v2629 = vand.u32 %v299, 4294901760
    %2630 = vmatprep.subr.mxu0 %v2629
    %v2631 = vand.u32 %v298, 4294901760
    %2632 = vmatpush1.msra.mxu0 %v2631
    %v2633 = vand.u32 %v423, 4294901760
    %2634 = vmatprep.subr.mxu0 %v2633
    %v2635 = vand.u32 %v422, 4294901760
    %2636 = vmatpush2.msra.mxu0 %v2635
    %v2637 = vand.u32 %v419, 4294901760
    %2638 = vmatprep.subr.mxu0 %v2637
    %v2639 = vand.u32 %v418, 4294901760
    %2640 = vmatpush2.msra.mxu0 %v2639
    %v2641 = vand.u32 %v415, 4294901760
    %2642 = vmatprep.subr.mxu0 %v2641
    %v2643 = vand.u32 %v414, 4294901760
    %2644 = vmatpush2.msra.mxu0 %v2643
    %v2645 = vand.u32 %v411, 4294901760
    %2646 = vmatprep.subr.mxu0 %v2645
    %v2647 = vand.u32 %v410, 4294901760
    %2648 = vmatpush2.msra.mxu0 %v2647
    %v2649 = vand.u32 %v407, 4294901760
    %2650 = vmatprep.subr.mxu0 %v2649
    %v2651 = vand.u32 %v406, 4294901760
    %2652 = vmatpush2.msra.mxu0 %v2651
    %v2653 = vand.u32 %v403, 4294901760
    %2654 = vmatprep.subr.mxu0 %v2653
    %v2655 = vand.u32 %v402, 4294901760
    %2656 = vmatpush2.msra.mxu0 %v2655
    %v2657 = vand.u32 %v399, 4294901760
    %2658 = vmatprep.subr.mxu0 %v2657
    %v2659 = vand.u32 %v398, 4294901760
    %2660 = vmatpush2.msra.mxu0 %v2659
    %v2661 = vand.u32 %v395, 4294901760
    %2662 = vmatprep.subr.mxu0 %v2661
    %v2663 = vand.u32 %v394, 4294901760
    %2664 = vmatpush2.msra.mxu0 %v2663
    %v2665 = vand.u32 %v391, 4294901760
    %2666 = vmatprep.subr.mxu0 %v2665
    %v2667 = vand.u32 %v390, 4294901760
    %2668 = vmatpush2.msra.mxu0 %v2667
    %v2669 = vand.u32 %v387, 4294901760
    %2670 = vmatprep.subr.mxu0 %v2669
    %v2671 = vand.u32 %v386, 4294901760
    %2672 = vmatpush2.msra.mxu0 %v2671
    %v2673 = vand.u32 %v383, 4294901760
    %2674 = vmatprep.subr.mxu0 %v2673
    %v2675 = vand.u32 %v382, 4294901760
    %2676 = vmatpush2.msra.mxu0 %v2675
    %v2677 = vand.u32 %v379, 4294901760
    %2678 = vmatprep.subr.mxu0 %v2677
    %v2679 = vand.u32 %v378, 4294901760
    %2680 = vmatpush2.msra.mxu0 %v2679
    %v2681 = vand.u32 %v375, 4294901760
    %2682 = vmatprep.subr.mxu0 %v2681
    %v2683 = vand.u32 %v374, 4294901760
    %2684 = vmatpush2.msra.mxu0 %v2683
    %v2685 = vand.u32 %v371, 4294901760
    %2686 = vmatprep.subr.mxu0 %v2685
    %v2687 = vand.u32 %v370, 4294901760
    %2688 = vmatpush2.msra.mxu0 %v2687
    %v2689 = vand.u32 %v367, 4294901760
    %2690 = vmatprep.subr.mxu0 %v2689
    %v2691 = vand.u32 %v366, 4294901760
    %2692 = vmatpush2.msra.mxu0 %v2691
    %v2693 = vand.u32 %v363, 4294901760
    %2694 = vmatprep.subr.mxu0 %v2693
    %v2695 = vand.u32 %v362, 4294901760
    %2696 = vmatpush2.msra.mxu0 %v2695
    %v2697 = vand.u32 %v165, 4294901760
    %v2698 = vsub.f32 %v165, %v2697
    %v2699 = vand.u32 %v2698, 4294901760
    %2700 = vmatprep.mubr.f32.mxu0 %v2699
    %v2701 = vand.u32 %v164, 4294901760
    %v2702 = vsub.f32 %v164, %v2701
    %v2703 = vand.u32 %v2702, 4294901760
    %2704 = vmatmul.mubr.f32.gmra.mxu0 %v2703
    %v2705 = vpop.f32.mrf.mxu0
    %v2706 = vadd.f32 %v2555, %v2705
    %v2707 = vpop.f32.mrf.mxu0
    %v2708 = vadd.f32 %v2557, %v2707
    %v2709 = vand.u32 %v169, 4294901760
    %v2710 = vsub.f32 %v169, %v2709
    %v2711 = vand.u32 %v2710, 4294901760
    %2712 = vmatprep.mubr.f32.mxu0 %v2711
    %v2713 = vand.u32 %v168, 4294901760
    %v2714 = vsub.f32 %v168, %v2713
    %v2715 = vand.u32 %v2714, 4294901760
    %2716 = vmatmul.mubr.f32.gmra.mxu0 %v2715
    %v2717 = vpop.f32.mrf.mxu0
    %v2718 = vadd.f32 %v2565, %v2717
    %v2719 = vpop.f32.mrf.mxu0
    %v2720 = vadd.f32 %v2567, %v2719
    %2721 = vdwg.mxu0
    %v2722 = vand.u32 %v359, 4294901760
    %v2723 = vsub.f32 %v359, %v2722
    %v2724 = vand.u32 %v2723, 4294901760
    %2725 = vmatprep.subr.mxu0 %v2724
    %v2726 = vand.u32 %v358, 4294901760
    %v2727 = vsub.f32 %v358, %v2726
    %v2728 = vand.u32 %v2727, 4294901760
    %2729 = vmatpush1.msra.mxu0 %v2728
    %v2730 = vand.u32 %v355, 4294901760
    %v2731 = vsub.f32 %v355, %v2730
    %v2732 = vand.u32 %v2731, 4294901760
    %2733 = vmatprep.subr.mxu0 %v2732
    %v2734 = vand.u32 %v354, 4294901760
    %v2735 = vsub.f32 %v354, %v2734
    %v2736 = vand.u32 %v2735, 4294901760
    %2737 = vmatpush1.msra.mxu0 %v2736
    %v2738 = vand.u32 %v351, 4294901760
    %v2739 = vsub.f32 %v351, %v2738
    %v2740 = vand.u32 %v2739, 4294901760
    %2741 = vmatprep.subr.mxu0 %v2740
    %v2742 = vand.u32 %v350, 4294901760
    %v2743 = vsub.f32 %v350, %v2742
    %v2744 = vand.u32 %v2743, 4294901760
    %2745 = vmatpush1.msra.mxu0 %v2744
    %v2746 = vand.u32 %v347, 4294901760
    %v2747 = vsub.f32 %v347, %v2746
    %v2748 = vand.u32 %v2747, 4294901760
    %2749 = vmatprep.subr.mxu0 %v2748
    %v2750 = vand.u32 %v346, 4294901760
    %v2751 = vsub.f32 %v346, %v2750
    %v2752 = vand.u32 %v2751, 4294901760
    %2753 = vmatpush1.msra.mxu0 %v2752
    %v2754 = vand.u32 %v343, 4294901760
    %v2755 = vsub.f32 %v343, %v2754
    %v2756 = vand.u32 %v2755, 4294901760
    %2757 = vmatprep.subr.mxu0 %v2756
    %v2758 = vand.u32 %v342, 4294901760
    %v2759 = vsub.f32 %v342, %v2758
    %v2760 = vand.u32 %v2759, 4294901760
    %2761 = vmatpush1.msra.mxu0 %v2760
    %v2762 = vand.u32 %v339, 4294901760
    %v2763 = vsub.f32 %v339, %v2762
    %v2764 = vand.u32 %v2763, 4294901760
    %2765 = vmatprep.subr.mxu0 %v2764
    %v2766 = vand.u32 %v338, 4294901760
    %v2767 = vsub.f32 %v338, %v2766
    %v2768 = vand.u32 %v2767, 4294901760
    %2769 = vmatpush1.msra.mxu0 %v2768
    %v2770 = vand.u32 %v335, 4294901760
    %v2771 = vsub.f32 %v335, %v2770
    %v2772 = vand.u32 %v2771, 4294901760
    %2773 = vmatprep.subr.mxu0 %v2772
    %v2774 = vand.u32 %v334, 4294901760
    %v2775 = vsub.f32 %v334, %v2774
    %v2776 = vand.u32 %v2775, 4294901760
    %2777 = vmatpush1.msra.mxu0 %v2776
    %v2778 = vand.u32 %v331, 4294901760
    %v2779 = vsub.f32 %v331, %v2778
    %v2780 = vand.u32 %v2779, 4294901760
    %2781 = vmatprep.subr.mxu0 %v2780
    %v2782 = vand.u32 %v330, 4294901760
    %v2783 = vsub.f32 %v330, %v2782
    %v2784 = vand.u32 %v2783, 4294901760
    %2785 = vmatpush1.msra.mxu0 %v2784
    %v2786 = vand.u32 %v327, 4294901760
    %v2787 = vsub.f32 %v327, %v2786
    %v2788 = vand.u32 %v2787, 4294901760
    %2789 = vmatprep.subr.mxu0 %v2788
    %v2790 = vand.u32 %v326, 4294901760
    %v2791 = vsub.f32 %v326, %v2790
    %v2792 = vand.u32 %v2791, 4294901760
    %2793 = vmatpush1.msra.mxu0 %v2792
    %v2794 = vand.u32 %v323, 4294901760
    %v2795 = vsub.f32 %v323, %v2794
    %v2796 = vand.u32 %v2795, 4294901760
    %2797 = vmatprep.subr.mxu0 %v2796
    %v2798 = vand.u32 %v322, 4294901760
    %v2799 = vsub.f32 %v322, %v2798
    %v2800 = vand.u32 %v2799, 4294901760
    %2801 = vmatpush1.msra.mxu0 %v2800
    %v2802 = vand.u32 %v319, 4294901760
    %v2803 = vsub.f32 %v319, %v2802
    %v2804 = vand.u32 %v2803, 4294901760
    %2805 = vmatprep.subr.mxu0 %v2804
    %v2806 = vand.u32 %v318, 4294901760
    %v2807 = vsub.f32 %v318, %v2806
    %v2808 = vand.u32 %v2807, 4294901760
    %2809 = vmatpush1.msra.mxu0 %v2808
    %v2810 = vand.u32 %v315, 4294901760
    %v2811 = vsub.f32 %v315, %v2810
    %v2812 = vand.u32 %v2811, 4294901760
    %2813 = vmatprep.subr.mxu0 %v2812
    %v2814 = vand.u32 %v314, 4294901760
    %v2815 = vsub.f32 %v314, %v2814
    %v2816 = vand.u32 %v2815, 4294901760
    %2817 = vmatpush1.msra.mxu0 %v2816
    %v2818 = vand.u32 %v311, 4294901760
    %v2819 = vsub.f32 %v311, %v2818
    %v2820 = vand.u32 %v2819, 4294901760
    %2821 = vmatprep.subr.mxu0 %v2820
    %v2822 = vand.u32 %v310, 4294901760
    %v2823 = vsub.f32 %v310, %v2822
    %v2824 = vand.u32 %v2823, 4294901760
    %2825 = vmatpush1.msra.mxu0 %v2824
    %v2826 = vand.u32 %v307, 4294901760
    %v2827 = vsub.f32 %v307, %v2826
    %v2828 = vand.u32 %v2827, 4294901760
    %2829 = vmatprep.subr.mxu0 %v2828
    %v2830 = vand.u32 %v306, 4294901760
    %v2831 = vsub.f32 %v306, %v2830
    %v2832 = vand.u32 %v2831, 4294901760
    %2833 = vmatpush1.msra.mxu0 %v2832
    %v2834 = vand.u32 %v303, 4294901760
    %v2835 = vsub.f32 %v303, %v2834
    %v2836 = vand.u32 %v2835, 4294901760
    %2837 = vmatprep.subr.mxu0 %v2836
    %v2838 = vand.u32 %v302, 4294901760
    %v2839 = vsub.f32 %v302, %v2838
    %v2840 = vand.u32 %v2839, 4294901760
    %2841 = vmatpush1.msra.mxu0 %v2840
    %v2842 = vand.u32 %v299, 4294901760
    %v2843 = vsub.f32 %v299, %v2842
    %v2844 = vand.u32 %v2843, 4294901760
    %2845 = vmatprep.subr.mxu0 %v2844
    %v2846 = vand.u32 %v298, 4294901760
    %v2847 = vsub.f32 %v298, %v2846
    %v2848 = vand.u32 %v2847, 4294901760
    %2849 = vmatpush1.msra.mxu0 %v2848
    %v2850 = vand.u32 %v423, 4294901760
    %v2851 = vsub.f32 %v423, %v2850
    %v2852 = vand.u32 %v2851, 4294901760
    %2853 = vmatprep.subr.mxu0 %v2852
    %v2854 = vand.u32 %v422, 4294901760
    %v2855 = vsub.f32 %v422, %v2854
    %v2856 = vand.u32 %v2855, 4294901760
    %2857 = vmatpush2.msra.mxu0 %v2856
    %v2858 = vand.u32 %v419, 4294901760
    %v2859 = vsub.f32 %v419, %v2858
    %v2860 = vand.u32 %v2859, 4294901760
    %2861 = vmatprep.subr.mxu0 %v2860
    %v2862 = vand.u32 %v418, 4294901760
    %v2863 = vsub.f32 %v418, %v2862
    %v2864 = vand.u32 %v2863, 4294901760
    %2865 = vmatpush2.msra.mxu0 %v2864
    %v2866 = vand.u32 %v415, 4294901760
    %v2867 = vsub.f32 %v415, %v2866
    %v2868 = vand.u32 %v2867, 4294901760
    %2869 = vmatprep.subr.mxu0 %v2868
    %v2870 = vand.u32 %v414, 4294901760
    %v2871 = vsub.f32 %v414, %v2870
    %v2872 = vand.u32 %v2871, 4294901760
    %2873 = vmatpush2.msra.mxu0 %v2872
    %v2874 = vand.u32 %v411, 4294901760
    %v2875 = vsub.f32 %v411, %v2874
    %v2876 = vand.u32 %v2875, 4294901760
    %2877 = vmatprep.subr.mxu0 %v2876
    %v2878 = vand.u32 %v410, 4294901760
    %v2879 = vsub.f32 %v410, %v2878
    %v2880 = vand.u32 %v2879, 4294901760
    %2881 = vmatpush2.msra.mxu0 %v2880
    %v2882 = vand.u32 %v407, 4294901760
    %v2883 = vsub.f32 %v407, %v2882
    %v2884 = vand.u32 %v2883, 4294901760
    %2885 = vmatprep.subr.mxu0 %v2884
    %v2886 = vand.u32 %v406, 4294901760
    %v2887 = vsub.f32 %v406, %v2886
    %v2888 = vand.u32 %v2887, 4294901760
    %2889 = vmatpush2.msra.mxu0 %v2888
    %v2890 = vand.u32 %v403, 4294901760
    %v2891 = vsub.f32 %v403, %v2890
    %v2892 = vand.u32 %v2891, 4294901760
    %2893 = vmatprep.subr.mxu0 %v2892
    %v2894 = vand.u32 %v402, 4294901760
    %v2895 = vsub.f32 %v402, %v2894
    %v2896 = vand.u32 %v2895, 4294901760
    %2897 = vmatpush2.msra.mxu0 %v2896
    %v2898 = vand.u32 %v399, 4294901760
    %v2899 = vsub.f32 %v399, %v2898
    %v2900 = vand.u32 %v2899, 4294901760
    %2901 = vmatprep.subr.mxu0 %v2900
    %v2902 = vand.u32 %v398, 4294901760
    %v2903 = vsub.f32 %v398, %v2902
    %v2904 = vand.u32 %v2903, 4294901760
    %2905 = vmatpush2.msra.mxu0 %v2904
    %v2906 = vand.u32 %v395, 4294901760
    %v2907 = vsub.f32 %v395, %v2906
    %v2908 = vand.u32 %v2907, 4294901760
    %2909 = vmatprep.subr.mxu0 %v2908
    %v2910 = vand.u32 %v394, 4294901760
    %v2911 = vsub.f32 %v394, %v2910
    %v2912 = vand.u32 %v2911, 4294901760
    %2913 = vmatpush2.msra.mxu0 %v2912
    %v2914 = vand.u32 %v391, 4294901760
    %v2915 = vsub.f32 %v391, %v2914
    %v2916 = vand.u32 %v2915, 4294901760
    %2917 = vmatprep.subr.mxu0 %v2916
    %v2918 = vand.u32 %v390, 4294901760
    %v2919 = vsub.f32 %v390, %v2918
    %v2920 = vand.u32 %v2919, 4294901760
    %2921 = vmatpush2.msra.mxu0 %v2920
    %v2922 = vand.u32 %v387, 4294901760
    %v2923 = vsub.f32 %v387, %v2922
    %v2924 = vand.u32 %v2923, 4294901760
    %2925 = vmatprep.subr.mxu0 %v2924
    %v2926 = vand.u32 %v386, 4294901760
    %v2927 = vsub.f32 %v386, %v2926
    %v2928 = vand.u32 %v2927, 4294901760
    %2929 = vmatpush2.msra.mxu0 %v2928
    %v2930 = vand.u32 %v383, 4294901760
    %v2931 = vsub.f32 %v383, %v2930
    %v2932 = vand.u32 %v2931, 4294901760
    %2933 = vmatprep.subr.mxu0 %v2932
    %v2934 = vand.u32 %v382, 4294901760
    %v2935 = vsub.f32 %v382, %v2934
    %v2936 = vand.u32 %v2935, 4294901760
    %2937 = vmatpush2.msra.mxu0 %v2936
    %v2938 = vand.u32 %v379, 4294901760
    %v2939 = vsub.f32 %v379, %v2938
    %v2940 = vand.u32 %v2939, 4294901760
    %2941 = vmatprep.subr.mxu0 %v2940
    %v2942 = vand.u32 %v378, 4294901760
    %v2943 = vsub.f32 %v378, %v2942
    %v2944 = vand.u32 %v2943, 4294901760
    %2945 = vmatpush2.msra.mxu0 %v2944
    %v2946 = vand.u32 %v375, 4294901760
    %v2947 = vsub.f32 %v375, %v2946
    %v2948 = vand.u32 %v2947, 4294901760
    %2949 = vmatprep.subr.mxu0 %v2948
    %v2950 = vand.u32 %v374, 4294901760
    %v2951 = vsub.f32 %v374, %v2950
    %v2952 = vand.u32 %v2951, 4294901760
    %2953 = vmatpush2.msra.mxu0 %v2952
    %v2954 = vand.u32 %v371, 4294901760
    %v2955 = vsub.f32 %v371, %v2954
    %v2956 = vand.u32 %v2955, 4294901760
    %2957 = vmatprep.subr.mxu0 %v2956
    %v2958 = vand.u32 %v370, 4294901760
    %v2959 = vsub.f32 %v370, %v2958
    %v2960 = vand.u32 %v2959, 4294901760
    %2961 = vmatpush2.msra.mxu0 %v2960
    %v2962 = vand.u32 %v367, 4294901760
    %v2963 = vsub.f32 %v367, %v2962
    %v2964 = vand.u32 %v2963, 4294901760
    %2965 = vmatprep.subr.mxu0 %v2964
    %v2966 = vand.u32 %v366, 4294901760
    %v2967 = vsub.f32 %v366, %v2966
    %v2968 = vand.u32 %v2967, 4294901760
    %2969 = vmatpush2.msra.mxu0 %v2968
    %v2970 = vand.u32 %v363, 4294901760
    %v2971 = vsub.f32 %v363, %v2970
    %v2972 = vand.u32 %v2971, 4294901760
    %2973 = vmatprep.subr.mxu0 %v2972
    %v2974 = vand.u32 %v362, 4294901760
    %v2975 = vsub.f32 %v362, %v2974
    %v2976 = vand.u32 %v2975, 4294901760
    %2977 = vmatpush2.msra.mxu0 %v2976
    %v2978 = vand.u32 %v165, 4294901760
    %2979 = vmatprep.mubr.f32.mxu0 %v2978
    %v2980 = vand.u32 %v164, 4294901760
    %2981 = vmatmul.mubr.f32.gmra.mxu0 %v2980
    %v2982 = vpop.f32.mrf.mxu0
    %v2983 = vadd.f32 %v2706, %v2982
    %v2984 = vpop.f32.mrf.mxu0
    %v2985 = vadd.f32 %v2708, %v2984
    %v2986 = vand.u32 %v169, 4294901760
    %2987 = vmatprep.mubr.f32.mxu0 %v2986
    %v2988 = vand.u32 %v168, 4294901760
    %2989 = vmatmul.mubr.f32.gmra.mxu0 %v2988
    %v2990 = vpop.f32.mrf.mxu0
    %v2991 = vadd.f32 %v2718, %v2990
    %v2992 = vpop.f32.mrf.mxu0
    %v2993 = vadd.f32 %v2720, %v2992
    %2994 = vdwg.mxu0
    %v2995 = vand.u32 %v359, 4294901760
    %2996 = vmatprep.subr.mxu0 %v2995
    %v2997 = vand.u32 %v358, 4294901760
    %2998 = vmatpush1.msra.mxu0 %v2997
    %v2999 = vand.u32 %v355, 4294901760
    %3000 = vmatprep.subr.mxu0 %v2999
    %v3001 = vand.u32 %v354, 4294901760
    %3002 = vmatpush1.msra.mxu0 %v3001
    %v3003 = vand.u32 %v351, 4294901760
    %3004 = vmatprep.subr.mxu0 %v3003
    %v3005 = vand.u32 %v350, 4294901760
    %3006 = vmatpush1.msra.mxu0 %v3005
    %v3007 = vand.u32 %v347, 4294901760
    %3008 = vmatprep.subr.mxu0 %v3007
    %v3009 = vand.u32 %v346, 4294901760
    %3010 = vmatpush1.msra.mxu0 %v3009
    %v3011 = vand.u32 %v343, 4294901760
    %3012 = vmatprep.subr.mxu0 %v3011
    %v3013 = vand.u32 %v342, 4294901760
    %3014 = vmatpush1.msra.mxu0 %v3013
    %v3015 = vand.u32 %v339, 4294901760
    %3016 = vmatprep.subr.mxu0 %v3015
    %v3017 = vand.u32 %v338, 4294901760
    %3018 = vmatpush1.msra.mxu0 %v3017
    %v3019 = vand.u32 %v335, 4294901760
    %3020 = vmatprep.subr.mxu0 %v3019
    %v3021 = vand.u32 %v334, 4294901760
    %3022 = vmatpush1.msra.mxu0 %v3021
    %v3023 = vand.u32 %v331, 4294901760
    %3024 = vmatprep.subr.mxu0 %v3023
    %v3025 = vand.u32 %v330, 4294901760
    %3026 = vmatpush1.msra.mxu0 %v3025
    %v3027 = vand.u32 %v327, 4294901760
    %3028 = vmatprep.subr.mxu0 %v3027
    %v3029 = vand.u32 %v326, 4294901760
    %3030 = vmatpush1.msra.mxu0 %v3029
    %v3031 = vand.u32 %v323, 4294901760
    %3032 = vmatprep.subr.mxu0 %v3031
    %v3033 = vand.u32 %v322, 4294901760
    %3034 = vmatpush1.msra.mxu0 %v3033
    %v3035 = vand.u32 %v319, 4294901760
    %3036 = vmatprep.subr.mxu0 %v3035
    %v3037 = vand.u32 %v318, 4294901760
    %3038 = vmatpush1.msra.mxu0 %v3037
    %v3039 = vand.u32 %v315, 4294901760
    %3040 = vmatprep.subr.mxu0 %v3039
    %v3041 = vand.u32 %v314, 4294901760
    %3042 = vmatpush1.msra.mxu0 %v3041
    %v3043 = vand.u32 %v311, 4294901760
    %3044 = vmatprep.subr.mxu0 %v3043
    %v3045 = vand.u32 %v310, 4294901760
    %3046 = vmatpush1.msra.mxu0 %v3045
    %v3047 = vand.u32 %v307, 4294901760
    %3048 = vmatprep.subr.mxu0 %v3047
    %v3049 = vand.u32 %v306, 4294901760
    %3050 = vmatpush1.msra.mxu0 %v3049
    %v3051 = vand.u32 %v303, 4294901760
    %3052 = vmatprep.subr.mxu0 %v3051
    %v3053 = vand.u32 %v302, 4294901760
    %3054 = vmatpush1.msra.mxu0 %v3053
    %v3055 = vand.u32 %v299, 4294901760
    %3056 = vmatprep.subr.mxu0 %v3055
    %v3057 = vand.u32 %v298, 4294901760
    %3058 = vmatpush1.msra.mxu0 %v3057
    %v3059 = vand.u32 %v423, 4294901760
    %3060 = vmatprep.subr.mxu0 %v3059
    %v3061 = vand.u32 %v422, 4294901760
    %3062 = vmatpush2.msra.mxu0 %v3061
    %v3063 = vand.u32 %v419, 4294901760
    %3064 = vmatprep.subr.mxu0 %v3063
    %v3065 = vand.u32 %v418, 4294901760
    %3066 = vmatpush2.msra.mxu0 %v3065
    %v3067 = vand.u32 %v415, 4294901760
    %3068 = vmatprep.subr.mxu0 %v3067
    %v3069 = vand.u32 %v414, 4294901760
    %3070 = vmatpush2.msra.mxu0 %v3069
    %v3071 = vand.u32 %v411, 4294901760
    %3072 = vmatprep.subr.mxu0 %v3071
    %v3073 = vand.u32 %v410, 4294901760
    %3074 = vmatpush2.msra.mxu0 %v3073
    %v3075 = vand.u32 %v407, 4294901760
    %3076 = vmatprep.subr.mxu0 %v3075
    %v3077 = vand.u32 %v406, 4294901760
    %3078 = vmatpush2.msra.mxu0 %v3077
    %v3079 = vand.u32 %v403, 4294901760
    %3080 = vmatprep.subr.mxu0 %v3079
    %v3081 = vand.u32 %v402, 4294901760
    %3082 = vmatpush2.msra.mxu0 %v3081
    %v3083 = vand.u32 %v399, 4294901760
    %3084 = vmatprep.subr.mxu0 %v3083
    %v3085 = vand.u32 %v398, 4294901760
    %3086 = vmatpush2.msra.mxu0 %v3085
    %v3087 = vand.u32 %v395, 4294901760
    %3088 = vmatprep.subr.mxu0 %v3087
    %v3089 = vand.u32 %v394, 4294901760
    %3090 = vmatpush2.msra.mxu0 %v3089
    %v3091 = vand.u32 %v391, 4294901760
    %3092 = vmatprep.subr.mxu0 %v3091
    %v3093 = vand.u32 %v390, 4294901760
    %3094 = vmatpush2.msra.mxu0 %v3093
    %v3095 = vand.u32 %v387, 4294901760
    %3096 = vmatprep.subr.mxu0 %v3095
    %v3097 = vand.u32 %v386, 4294901760
    %3098 = vmatpush2.msra.mxu0 %v3097
    %v3099 = vand.u32 %v383, 4294901760
    %3100 = vmatprep.subr.mxu0 %v3099
    %v3101 = vand.u32 %v382, 4294901760
    %3102 = vmatpush2.msra.mxu0 %v3101
    %v3103 = vand.u32 %v379, 4294901760
    %3104 = vmatprep.subr.mxu0 %v3103
    %v3105 = vand.u32 %v378, 4294901760
    %3106 = vmatpush2.msra.mxu0 %v3105
    %v3107 = vand.u32 %v375, 4294901760
    %3108 = vmatprep.subr.mxu0 %v3107
    %v3109 = vand.u32 %v374, 4294901760
    %3110 = vmatpush2.msra.mxu0 %v3109
    %v3111 = vand.u32 %v371, 4294901760
    %3112 = vmatprep.subr.mxu0 %v3111
    %v3113 = vand.u32 %v370, 4294901760
    %3114 = vmatpush2.msra.mxu0 %v3113
    %v3115 = vand.u32 %v367, 4294901760
    %3116 = vmatprep.subr.mxu0 %v3115
    %v3117 = vand.u32 %v366, 4294901760
    %3118 = vmatpush2.msra.mxu0 %v3117
    %v3119 = vand.u32 %v363, 4294901760
    %3120 = vmatprep.subr.mxu0 %v3119
    %v3121 = vand.u32 %v362, 4294901760
    %3122 = vmatpush2.msra.mxu0 %v3121
    %v3123 = vand.u32 %v165, 4294901760
    %3124 = vmatprep.mubr.f32.mxu0 %v3123
    %v3125 = vand.u32 %v164, 4294901760
    %3126 = vmatmul.mubr.f32.gmra.mxu0 %v3125
    %v3127 = vpop.f32.mrf.mxu0
    %v3128 = vadd.f32 %v2983, %v3127
    %v3129 = vpop.f32.mrf.mxu0
    %v3130 = vadd.f32 %v2985, %v3129
    %v3131 = vand.u32 %v169, 4294901760
    %3132 = vmatprep.mubr.f32.mxu0 %v3131
    %v3133 = vand.u32 %v168, 4294901760
    %3134 = vmatmul.mubr.f32.gmra.mxu0 %v3133
    %v3135 = vpop.f32.mrf.mxu0
    %v3136 = vadd.f32 %v2991, %v3135
    %v3137 = vpop.f32.mrf.mxu0
    %v3138 = vadd.f32 %v2993, %v3137
    %3139 = vdwg.mxu0
    %v3140 = vand.u32 %v233, 4294901760
    %3141 = vmatprep.subr.mxu0 %v3140
    %v3142 = vand.u32 %v232, 4294901760
    %3143 = vmatpush1.msra.mxu0 %v3142
    %v3144 = vand.u32 %v229, 4294901760
    %3145 = vmatprep.subr.mxu0 %v3144
    %v3146 = vand.u32 %v228, 4294901760
    %3147 = vmatpush1.msra.mxu0 %v3146
    %v3148 = vand.u32 %v225, 4294901760
    %3149 = vmatprep.subr.mxu0 %v3148
    %v3150 = vand.u32 %v224, 4294901760
    %3151 = vmatpush1.msra.mxu0 %v3150
    %v3152 = vand.u32 %v221, 4294901760
    %3153 = vmatprep.subr.mxu0 %v3152
    %v3154 = vand.u32 %v220, 4294901760
    %3155 = vmatpush1.msra.mxu0 %v3154
    %v3156 = vand.u32 %v217, 4294901760
    %3157 = vmatprep.subr.mxu0 %v3156
    %v3158 = vand.u32 %v216, 4294901760
    %3159 = vmatpush1.msra.mxu0 %v3158
    %v3160 = vand.u32 %v213, 4294901760
    %3161 = vmatprep.subr.mxu0 %v3160
    %v3162 = vand.u32 %v212, 4294901760
    %3163 = vmatpush1.msra.mxu0 %v3162
    %v3164 = vand.u32 %v209, 4294901760
    %3165 = vmatprep.subr.mxu0 %v3164
    %v3166 = vand.u32 %v208, 4294901760
    %3167 = vmatpush1.msra.mxu0 %v3166
    %v3168 = vand.u32 %v205, 4294901760
    %3169 = vmatprep.subr.mxu0 %v3168
    %v3170 = vand.u32 %v204, 4294901760
    %3171 = vmatpush1.msra.mxu0 %v3170
    %v3172 = vand.u32 %v201, 4294901760
    %3173 = vmatprep.subr.mxu0 %v3172
    %v3174 = vand.u32 %v200, 4294901760
    %3175 = vmatpush1.msra.mxu0 %v3174
    %v3176 = vand.u32 %v197, 4294901760
    %3177 = vmatprep.subr.mxu0 %v3176
    %v3178 = vand.u32 %v196, 4294901760
    %3179 = vmatpush1.msra.mxu0 %v3178
    %v3180 = vand.u32 %v193, 4294901760
    %3181 = vmatprep.subr.mxu0 %v3180
    %v3182 = vand.u32 %v192, 4294901760
    %3183 = vmatpush1.msra.mxu0 %v3182
    %v3184 = vand.u32 %v189, 4294901760
    %3185 = vmatprep.subr.mxu0 %v3184
    %v3186 = vand.u32 %v188, 4294901760
    %3187 = vmatpush1.msra.mxu0 %v3186
    %v3188 = vand.u32 %v185, 4294901760
    %3189 = vmatprep.subr.mxu0 %v3188
    %v3190 = vand.u32 %v184, 4294901760
    %3191 = vmatpush1.msra.mxu0 %v3190
    %v3192 = vand.u32 %v181, 4294901760
    %3193 = vmatprep.subr.mxu0 %v3192
    %v3194 = vand.u32 %v180, 4294901760
    %3195 = vmatpush1.msra.mxu0 %v3194
    %v3196 = vand.u32 %v177, 4294901760
    %3197 = vmatprep.subr.mxu0 %v3196
    %v3198 = vand.u32 %v176, 4294901760
    %3199 = vmatpush1.msra.mxu0 %v3198
    %v3200 = vand.u32 %v173, 4294901760
    %3201 = vmatprep.subr.mxu0 %v3200
    %v3202 = vand.u32 %v172, 4294901760
    %3203 = vmatpush1.msra.mxu0 %v3202
    %v3204 = vand.u32 %v297, 4294901760
    %3205 = vmatprep.subr.mxu0 %v3204
    %v3206 = vand.u32 %v296, 4294901760
    %3207 = vmatpush2.msra.mxu0 %v3206
    %v3208 = vand.u32 %v293, 4294901760
    %3209 = vmatprep.subr.mxu0 %v3208
    %v3210 = vand.u32 %v292, 4294901760
    %3211 = vmatpush2.msra.mxu0 %v3210
    %v3212 = vand.u32 %v289, 4294901760
    %3213 = vmatprep.subr.mxu0 %v3212
    %v3214 = vand.u32 %v288, 4294901760
    %3215 = vmatpush2.msra.mxu0 %v3214
    %v3216 = vand.u32 %v285, 4294901760
    %3217 = vmatprep.subr.mxu0 %v3216
    %v3218 = vand.u32 %v284, 4294901760
    %3219 = vmatpush2.msra.mxu0 %v3218
    %v3220 = vand.u32 %v281, 4294901760
    %3221 = vmatprep.subr.mxu0 %v3220
    %v3222 = vand.u32 %v280, 4294901760
    %3223 = vmatpush2.msra.mxu0 %v3222
    %v3224 = vand.u32 %v277, 4294901760
    %3225 = vmatprep.subr.mxu0 %v3224
    %v3226 = vand.u32 %v276, 4294901760
    %3227 = vmatpush2.msra.mxu0 %v3226
    %v3228 = vand.u32 %v273, 4294901760
    %3229 = vmatprep.subr.mxu0 %v3228
    %v3230 = vand.u32 %v272, 4294901760
    %3231 = vmatpush2.msra.mxu0 %v3230
    %v3232 = vand.u32 %v269, 4294901760
    %3233 = vmatprep.subr.mxu0 %v3232
    %v3234 = vand.u32 %v268, 4294901760
    %3235 = vmatpush2.msra.mxu0 %v3234
    %v3236 = vand.u32 %v265, 4294901760
    %3237 = vmatprep.subr.mxu0 %v3236
    %v3238 = vand.u32 %v264, 4294901760
    %3239 = vmatpush2.msra.mxu0 %v3238
    %v3240 = vand.u32 %v261, 4294901760
    %3241 = vmatprep.subr.mxu0 %v3240
    %v3242 = vand.u32 %v260, 4294901760
    %3243 = vmatpush2.msra.mxu0 %v3242
    %v3244 = vand.u32 %v257, 4294901760
    %3245 = vmatprep.subr.mxu0 %v3244
    %v3246 = vand.u32 %v256, 4294901760
    %3247 = vmatpush2.msra.mxu0 %v3246
    %v3248 = vand.u32 %v253, 4294901760
    %3249 = vmatprep.subr.mxu0 %v3248
    %v3250 = vand.u32 %v252, 4294901760
    %3251 = vmatpush2.msra.mxu0 %v3250
    %v3252 = vand.u32 %v249, 4294901760
    %3253 = vmatprep.subr.mxu0 %v3252
    %v3254 = vand.u32 %v248, 4294901760
    %3255 = vmatpush2.msra.mxu0 %v3254
    %v3256 = vand.u32 %v245, 4294901760
    %3257 = vmatprep.subr.mxu0 %v3256
    %v3258 = vand.u32 %v244, 4294901760
    %3259 = vmatpush2.msra.mxu0 %v3258
    %v3260 = vand.u32 %v241, 4294901760
    %3261 = vmatprep.subr.mxu0 %v3260
    %v3262 = vand.u32 %v240, 4294901760
    %3263 = vmatpush2.msra.mxu0 %v3262
    %v3264 = vand.u32 %v237, 4294901760
    %3265 = vmatprep.subr.mxu0 %v3264
    %v3266 = vand.u32 %v236, 4294901760
    %3267 = vmatpush2.msra.mxu0 %v3266
    %v3268 = vand.u32 %v163, 4294901760
    %v3269 = vsub.f32 %v163, %v3268
    %v3270 = vand.u32 %v3269, 4294901760
    %v3271 = vsub.f32 %v3269, %v3270
    %v3272 = vand.u32 %v3271, 4294901760
    %3273 = vmatprep.mubr.f32.mxu0 %v3272
    %v3274 = vand.u32 %v162, 4294901760
    %v3275 = vsub.f32 %v162, %v3274
    %v3276 = vand.u32 %v3275, 4294901760
    %v3277 = vsub.f32 %v3275, %v3276
    %v3278 = vand.u32 %v3277, 4294901760
    %3279 = vmatmul.mubr.f32.gmra.mxu0 %v3278
    %v3280 = vpop.f32.mrf.mxu0
    %v3281 = vadd.f32 %v439, %v3280
    %v3282 = vpop.f32.mrf.mxu0
    %v3283 = vadd.f32 %v443, %v3282
    %v3284 = vand.u32 %v167, 4294901760
    %v3285 = vsub.f32 %v167, %v3284
    %v3286 = vand.u32 %v3285, 4294901760
    %v3287 = vsub.f32 %v3285, %v3286
    %v3288 = vand.u32 %v3287, 4294901760
    %3289 = vmatprep.mubr.f32.mxu0 %v3288
    %v3290 = vand.u32 %v166, 4294901760
    %v3291 = vsub.f32 %v166, %v3290
    %v3292 = vand.u32 %v3291, 4294901760
    %v3293 = vsub.f32 %v3291, %v3292
    %v3294 = vand.u32 %v3293, 4294901760
    %3295 = vmatmul.mubr.f32.gmra.mxu0 %v3294
    %v3296 = vpop.f32.mrf.mxu0
    %v3297 = vadd.f32 %v439, %v3296
    %v3298 = vpop.f32.mrf.mxu0
    %v3299 = vadd.f32 %v443, %v3298
    %3300 = vdwg.mxu0
    %v3301 = vand.u32 %v233, 4294901760
    %v3302 = vsub.f32 %v233, %v3301
    %v3303 = vand.u32 %v3302, 4294901760
    %v3304 = vsub.f32 %v3302, %v3303
    %v3305 = vand.u32 %v3304, 4294901760
    %3306 = vmatprep.subr.mxu0 %v3305
    %v3307 = vand.u32 %v232, 4294901760
    %v3308 = vsub.f32 %v232, %v3307
    %v3309 = vand.u32 %v3308, 4294901760
    %v3310 = vsub.f32 %v3308, %v3309
    %v3311 = vand.u32 %v3310, 4294901760
    %3312 = vmatpush1.msra.mxu0 %v3311
    %v3313 = vand.u32 %v229, 4294901760
    %v3314 = vsub.f32 %v229, %v3313
    %v3315 = vand.u32 %v3314, 4294901760
    %v3316 = vsub.f32 %v3314, %v3315
    %v3317 = vand.u32 %v3316, 4294901760
    %3318 = vmatprep.subr.mxu0 %v3317
    %v3319 = vand.u32 %v228, 4294901760
    %v3320 = vsub.f32 %v228, %v3319
    %v3321 = vand.u32 %v3320, 4294901760
    %v3322 = vsub.f32 %v3320, %v3321
    %v3323 = vand.u32 %v3322, 4294901760
    %3324 = vmatpush1.msra.mxu0 %v3323
    %v3325 = vand.u32 %v225, 4294901760
    %v3326 = vsub.f32 %v225, %v3325
    %v3327 = vand.u32 %v3326, 4294901760
    %v3328 = vsub.f32 %v3326, %v3327
    %v3329 = vand.u32 %v3328, 4294901760
    %3330 = vmatprep.subr.mxu0 %v3329
    %v3331 = vand.u32 %v224, 4294901760
    %v3332 = vsub.f32 %v224, %v3331
    %v3333 = vand.u32 %v3332, 4294901760
    %v3334 = vsub.f32 %v3332, %v3333
    %v3335 = vand.u32 %v3334, 4294901760
    %3336 = vmatpush1.msra.mxu0 %v3335
    %v3337 = vand.u32 %v221, 4294901760
    %v3338 = vsub.f32 %v221, %v3337
    %v3339 = vand.u32 %v3338, 4294901760
    %v3340 = vsub.f32 %v3338, %v3339
    %v3341 = vand.u32 %v3340, 4294901760
    %3342 = vmatprep.subr.mxu0 %v3341
    %v3343 = vand.u32 %v220, 4294901760
    %v3344 = vsub.f32 %v220, %v3343
    %v3345 = vand.u32 %v3344, 4294901760
    %v3346 = vsub.f32 %v3344, %v3345
    %v3347 = vand.u32 %v3346, 4294901760
    %3348 = vmatpush1.msra.mxu0 %v3347
    %v3349 = vand.u32 %v217, 4294901760
    %v3350 = vsub.f32 %v217, %v3349
    %v3351 = vand.u32 %v3350, 4294901760
    %v3352 = vsub.f32 %v3350, %v3351
    %v3353 = vand.u32 %v3352, 4294901760
    %3354 = vmatprep.subr.mxu0 %v3353
    %v3355 = vand.u32 %v216, 4294901760
    %v3356 = vsub.f32 %v216, %v3355
    %v3357 = vand.u32 %v3356, 4294901760
    %v3358 = vsub.f32 %v3356, %v3357
    %v3359 = vand.u32 %v3358, 4294901760
    %3360 = vmatpush1.msra.mxu0 %v3359
    %v3361 = vand.u32 %v213, 4294901760
    %v3362 = vsub.f32 %v213, %v3361
    %v3363 = vand.u32 %v3362, 4294901760
    %v3364 = vsub.f32 %v3362, %v3363
    %v3365 = vand.u32 %v3364, 4294901760
    %3366 = vmatprep.subr.mxu0 %v3365
    %v3367 = vand.u32 %v212, 4294901760
    %v3368 = vsub.f32 %v212, %v3367
    %v3369 = vand.u32 %v3368, 4294901760
    %v3370 = vsub.f32 %v3368, %v3369
    %v3371 = vand.u32 %v3370, 4294901760
    %3372 = vmatpush1.msra.mxu0 %v3371
    %v3373 = vand.u32 %v209, 4294901760
    %v3374 = vsub.f32 %v209, %v3373
    %v3375 = vand.u32 %v3374, 4294901760
    %v3376 = vsub.f32 %v3374, %v3375
    %v3377 = vand.u32 %v3376, 4294901760
    %3378 = vmatprep.subr.mxu0 %v3377
    %v3379 = vand.u32 %v208, 4294901760
    %v3380 = vsub.f32 %v208, %v3379
    %v3381 = vand.u32 %v3380, 4294901760
    %v3382 = vsub.f32 %v3380, %v3381
    %v3383 = vand.u32 %v3382, 4294901760
    %3384 = vmatpush1.msra.mxu0 %v3383
    %v3385 = vand.u32 %v205, 4294901760
    %v3386 = vsub.f32 %v205, %v3385
    %v3387 = vand.u32 %v3386, 4294901760
    %v3388 = vsub.f32 %v3386, %v3387
    %v3389 = vand.u32 %v3388, 4294901760
    %3390 = vmatprep.subr.mxu0 %v3389
    %v3391 = vand.u32 %v204, 4294901760
    %v3392 = vsub.f32 %v204, %v3391
    %v3393 = vand.u32 %v3392, 4294901760
    %v3394 = vsub.f32 %v3392, %v3393
    %v3395 = vand.u32 %v3394, 4294901760
    %3396 = vmatpush1.msra.mxu0 %v3395
    %v3397 = vand.u32 %v201, 4294901760
    %v3398 = vsub.f32 %v201, %v3397
    %v3399 = vand.u32 %v3398, 4294901760
    %v3400 = vsub.f32 %v3398, %v3399
    %v3401 = vand.u32 %v3400, 4294901760
    %3402 = vmatprep.subr.mxu0 %v3401
    %v3403 = vand.u32 %v200, 4294901760
    %v3404 = vsub.f32 %v200, %v3403
    %v3405 = vand.u32 %v3404, 4294901760
    %v3406 = vsub.f32 %v3404, %v3405
    %v3407 = vand.u32 %v3406, 4294901760
    %3408 = vmatpush1.msra.mxu0 %v3407
    %v3409 = vand.u32 %v197, 4294901760
    %v3410 = vsub.f32 %v197, %v3409
    %v3411 = vand.u32 %v3410, 4294901760
    %v3412 = vsub.f32 %v3410, %v3411
    %v3413 = vand.u32 %v3412, 4294901760
    %3414 = vmatprep.subr.mxu0 %v3413
    %v3415 = vand.u32 %v196, 4294901760
    %v3416 = vsub.f32 %v196, %v3415
    %v3417 = vand.u32 %v3416, 4294901760
    %v3418 = vsub.f32 %v3416, %v3417
    %v3419 = vand.u32 %v3418, 4294901760
    %3420 = vmatpush1.msra.mxu0 %v3419
    %v3421 = vand.u32 %v193, 4294901760
    %v3422 = vsub.f32 %v193, %v3421
    %v3423 = vand.u32 %v3422, 4294901760
    %v3424 = vsub.f32 %v3422, %v3423
    %v3425 = vand.u32 %v3424, 4294901760
    %3426 = vmatprep.subr.mxu0 %v3425
    %v3427 = vand.u32 %v192, 4294901760
    %v3428 = vsub.f32 %v192, %v3427
    %v3429 = vand.u32 %v3428, 4294901760
    %v3430 = vsub.f32 %v3428, %v3429
    %v3431 = vand.u32 %v3430, 4294901760
    %3432 = vmatpush1.msra.mxu0 %v3431
    %v3433 = vand.u32 %v189, 4294901760
    %v3434 = vsub.f32 %v189, %v3433
    %v3435 = vand.u32 %v3434, 4294901760
    %v3436 = vsub.f32 %v3434, %v3435
    %v3437 = vand.u32 %v3436, 4294901760
    %3438 = vmatprep.subr.mxu0 %v3437
    %v3439 = vand.u32 %v188, 4294901760
    %v3440 = vsub.f32 %v188, %v3439
    %v3441 = vand.u32 %v3440, 4294901760
    %v3442 = vsub.f32 %v3440, %v3441
    %v3443 = vand.u32 %v3442, 4294901760
    %3444 = vmatpush1.msra.mxu0 %v3443
    %v3445 = vand.u32 %v185, 4294901760
    %v3446 = vsub.f32 %v185, %v3445
    %v3447 = vand.u32 %v3446, 4294901760
    %v3448 = vsub.f32 %v3446, %v3447
    %v3449 = vand.u32 %v3448, 4294901760
    %3450 = vmatprep.subr.mxu0 %v3449
    %v3451 = vand.u32 %v184, 4294901760
    %v3452 = vsub.f32 %v184, %v3451
    %v3453 = vand.u32 %v3452, 4294901760
    %v3454 = vsub.f32 %v3452, %v3453
    %v3455 = vand.u32 %v3454, 4294901760
    %3456 = vmatpush1.msra.mxu0 %v3455
    %v3457 = vand.u32 %v181, 4294901760
    %v3458 = vsub.f32 %v181, %v3457
    %v3459 = vand.u32 %v3458, 4294901760
    %v3460 = vsub.f32 %v3458, %v3459
    %v3461 = vand.u32 %v3460, 4294901760
    %3462 = vmatprep.subr.mxu0 %v3461
    %v3463 = vand.u32 %v180, 4294901760
    %v3464 = vsub.f32 %v180, %v3463
    %v3465 = vand.u32 %v3464, 4294901760
    %v3466 = vsub.f32 %v3464, %v3465
    %v3467 = vand.u32 %v3466, 4294901760
    %3468 = vmatpush1.msra.mxu0 %v3467
    %v3469 = vand.u32 %v177, 4294901760
    %v3470 = vsub.f32 %v177, %v3469
    %v3471 = vand.u32 %v3470, 4294901760
    %v3472 = vsub.f32 %v3470, %v3471
    %v3473 = vand.u32 %v3472, 4294901760
    %3474 = vmatprep.subr.mxu0 %v3473
    %v3475 = vand.u32 %v176, 4294901760
    %v3476 = vsub.f32 %v176, %v3475
    %v3477 = vand.u32 %v3476, 4294901760
    %v3478 = vsub.f32 %v3476, %v3477
    %v3479 = vand.u32 %v3478, 4294901760
    %3480 = vmatpush1.msra.mxu0 %v3479
    %v3481 = vand.u32 %v173, 4294901760
    %v3482 = vsub.f32 %v173, %v3481
    %v3483 = vand.u32 %v3482, 4294901760
    %v3484 = vsub.f32 %v3482, %v3483
    %v3485 = vand.u32 %v3484, 4294901760
    %3486 = vmatprep.subr.mxu0 %v3485
    %v3487 = vand.u32 %v172, 4294901760
    %v3488 = vsub.f32 %v172, %v3487
    %v3489 = vand.u32 %v3488, 4294901760
    %v3490 = vsub.f32 %v3488, %v3489
    %v3491 = vand.u32 %v3490, 4294901760
    %3492 = vmatpush1.msra.mxu0 %v3491
    %v3493 = vand.u32 %v297, 4294901760
    %v3494 = vsub.f32 %v297, %v3493
    %v3495 = vand.u32 %v3494, 4294901760
    %v3496 = vsub.f32 %v3494, %v3495
    %v3497 = vand.u32 %v3496, 4294901760
    %3498 = vmatprep.subr.mxu0 %v3497
    %v3499 = vand.u32 %v296, 4294901760
    %v3500 = vsub.f32 %v296, %v3499
    %v3501 = vand.u32 %v3500, 4294901760
    %v3502 = vsub.f32 %v3500, %v3501
    %v3503 = vand.u32 %v3502, 4294901760
    %3504 = vmatpush2.msra.mxu0 %v3503
    %v3505 = vand.u32 %v293, 4294901760
    %v3506 = vsub.f32 %v293, %v3505
    %v3507 = vand.u32 %v3506, 4294901760
    %v3508 = vsub.f32 %v3506, %v3507
    %v3509 = vand.u32 %v3508, 4294901760
    %3510 = vmatprep.subr.mxu0 %v3509
    %v3511 = vand.u32 %v292, 4294901760
    %v3512 = vsub.f32 %v292, %v3511
    %v3513 = vand.u32 %v3512, 4294901760
    %v3514 = vsub.f32 %v3512, %v3513
    %v3515 = vand.u32 %v3514, 4294901760
    %3516 = vmatpush2.msra.mxu0 %v3515
    %v3517 = vand.u32 %v289, 4294901760
    %v3518 = vsub.f32 %v289, %v3517
    %v3519 = vand.u32 %v3518, 4294901760
    %v3520 = vsub.f32 %v3518, %v3519
    %v3521 = vand.u32 %v3520, 4294901760
    %3522 = vmatprep.subr.mxu0 %v3521
    %v3523 = vand.u32 %v288, 4294901760
    %v3524 = vsub.f32 %v288, %v3523
    %v3525 = vand.u32 %v3524, 4294901760
    %v3526 = vsub.f32 %v3524, %v3525
    %v3527 = vand.u32 %v3526, 4294901760
    %3528 = vmatpush2.msra.mxu0 %v3527
    %v3529 = vand.u32 %v285, 4294901760
    %v3530 = vsub.f32 %v285, %v3529
    %v3531 = vand.u32 %v3530, 4294901760
    %v3532 = vsub.f32 %v3530, %v3531
    %v3533 = vand.u32 %v3532, 4294901760
    %3534 = vmatprep.subr.mxu0 %v3533
    %v3535 = vand.u32 %v284, 4294901760
    %v3536 = vsub.f32 %v284, %v3535
    %v3537 = vand.u32 %v3536, 4294901760
    %v3538 = vsub.f32 %v3536, %v3537
    %v3539 = vand.u32 %v3538, 4294901760
    %3540 = vmatpush2.msra.mxu0 %v3539
    %v3541 = vand.u32 %v281, 4294901760
    %v3542 = vsub.f32 %v281, %v3541
    %v3543 = vand.u32 %v3542, 4294901760
    %v3544 = vsub.f32 %v3542, %v3543
    %v3545 = vand.u32 %v3544, 4294901760
    %3546 = vmatprep.subr.mxu0 %v3545
    %v3547 = vand.u32 %v280, 4294901760
    %v3548 = vsub.f32 %v280, %v3547
    %v3549 = vand.u32 %v3548, 4294901760
    %v3550 = vsub.f32 %v3548, %v3549
    %v3551 = vand.u32 %v3550, 4294901760
    %3552 = vmatpush2.msra.mxu0 %v3551
    %v3553 = vand.u32 %v277, 4294901760
    %v3554 = vsub.f32 %v277, %v3553
    %v3555 = vand.u32 %v3554, 4294901760
    %v3556 = vsub.f32 %v3554, %v3555
    %v3557 = vand.u32 %v3556, 4294901760
    %3558 = vmatprep.subr.mxu0 %v3557
    %v3559 = vand.u32 %v276, 4294901760
    %v3560 = vsub.f32 %v276, %v3559
    %v3561 = vand.u32 %v3560, 4294901760
    %v3562 = vsub.f32 %v3560, %v3561
    %v3563 = vand.u32 %v3562, 4294901760
    %3564 = vmatpush2.msra.mxu0 %v3563
    %v3565 = vand.u32 %v273, 4294901760
    %v3566 = vsub.f32 %v273, %v3565
    %v3567 = vand.u32 %v3566, 4294901760
    %v3568 = vsub.f32 %v3566, %v3567
    %v3569 = vand.u32 %v3568, 4294901760
    %3570 = vmatprep.subr.mxu0 %v3569
    %v3571 = vand.u32 %v272, 4294901760
    %v3572 = vsub.f32 %v272, %v3571
    %v3573 = vand.u32 %v3572, 4294901760
    %v3574 = vsub.f32 %v3572, %v3573
    %v3575 = vand.u32 %v3574, 4294901760
    %3576 = vmatpush2.msra.mxu0 %v3575
    %v3577 = vand.u32 %v269, 4294901760
    %v3578 = vsub.f32 %v269, %v3577
    %v3579 = vand.u32 %v3578, 4294901760
    %v3580 = vsub.f32 %v3578, %v3579
    %v3581 = vand.u32 %v3580, 4294901760
    %3582 = vmatprep.subr.mxu0 %v3581
    %v3583 = vand.u32 %v268, 4294901760
    %v3584 = vsub.f32 %v268, %v3583
    %v3585 = vand.u32 %v3584, 4294901760
    %v3586 = vsub.f32 %v3584, %v3585
    %v3587 = vand.u32 %v3586, 4294901760
    %3588 = vmatpush2.msra.mxu0 %v3587
    %v3589 = vand.u32 %v265, 4294901760
    %v3590 = vsub.f32 %v265, %v3589
    %v3591 = vand.u32 %v3590, 4294901760
    %v3592 = vsub.f32 %v3590, %v3591
    %v3593 = vand.u32 %v3592, 4294901760
    %3594 = vmatprep.subr.mxu0 %v3593
    %v3595 = vand.u32 %v264, 4294901760
    %v3596 = vsub.f32 %v264, %v3595
    %v3597 = vand.u32 %v3596, 4294901760
    %v3598 = vsub.f32 %v3596, %v3597
    %v3599 = vand.u32 %v3598, 4294901760
    %3600 = vmatpush2.msra.mxu0 %v3599
    %v3601 = vand.u32 %v261, 4294901760
    %v3602 = vsub.f32 %v261, %v3601
    %v3603 = vand.u32 %v3602, 4294901760
    %v3604 = vsub.f32 %v3602, %v3603
    %v3605 = vand.u32 %v3604, 4294901760
    %3606 = vmatprep.subr.mxu0 %v3605
    %v3607 = vand.u32 %v260, 4294901760
    %v3608 = vsub.f32 %v260, %v3607
    %v3609 = vand.u32 %v3608, 4294901760
    %v3610 = vsub.f32 %v3608, %v3609
    %v3611 = vand.u32 %v3610, 4294901760
    %3612 = vmatpush2.msra.mxu0 %v3611
    %v3613 = vand.u32 %v257, 4294901760
    %v3614 = vsub.f32 %v257, %v3613
    %v3615 = vand.u32 %v3614, 4294901760
    %v3616 = vsub.f32 %v3614, %v3615
    %v3617 = vand.u32 %v3616, 4294901760
    %3618 = vmatprep.subr.mxu0 %v3617
    %v3619 = vand.u32 %v256, 4294901760
    %v3620 = vsub.f32 %v256, %v3619
    %v3621 = vand.u32 %v3620, 4294901760
    %v3622 = vsub.f32 %v3620, %v3621
    %v3623 = vand.u32 %v3622, 4294901760
    %3624 = vmatpush2.msra.mxu0 %v3623
    %v3625 = vand.u32 %v253, 4294901760
    %v3626 = vsub.f32 %v253, %v3625
    %v3627 = vand.u32 %v3626, 4294901760
    %v3628 = vsub.f32 %v3626, %v3627
    %v3629 = vand.u32 %v3628, 4294901760
    %3630 = vmatprep.subr.mxu0 %v3629
    %v3631 = vand.u32 %v252, 4294901760
    %v3632 = vsub.f32 %v252, %v3631
    %v3633 = vand.u32 %v3632, 4294901760
    %v3634 = vsub.f32 %v3632, %v3633
    %v3635 = vand.u32 %v3634, 4294901760
    %3636 = vmatpush2.msra.mxu0 %v3635
    %v3637 = vand.u32 %v249, 4294901760
    %v3638 = vsub.f32 %v249, %v3637
    %v3639 = vand.u32 %v3638, 4294901760
    %v3640 = vsub.f32 %v3638, %v3639
    %v3641 = vand.u32 %v3640, 4294901760
    %3642 = vmatprep.subr.mxu0 %v3641
    %v3643 = vand.u32 %v248, 4294901760
    %v3644 = vsub.f32 %v248, %v3643
    %v3645 = vand.u32 %v3644, 4294901760
    %v3646 = vsub.f32 %v3644, %v3645
    %v3647 = vand.u32 %v3646, 4294901760
    %3648 = vmatpush2.msra.mxu0 %v3647
    %v3649 = vand.u32 %v245, 4294901760
    %v3650 = vsub.f32 %v245, %v3649
    %v3651 = vand.u32 %v3650, 4294901760
    %v3652 = vsub.f32 %v3650, %v3651
    %v3653 = vand.u32 %v3652, 4294901760
    %3654 = vmatprep.subr.mxu0 %v3653
    %v3655 = vand.u32 %v244, 4294901760
    %v3656 = vsub.f32 %v244, %v3655
    %v3657 = vand.u32 %v3656, 4294901760
    %v3658 = vsub.f32 %v3656, %v3657
    %v3659 = vand.u32 %v3658, 4294901760
    %3660 = vmatpush2.msra.mxu0 %v3659
    %v3661 = vand.u32 %v241, 4294901760
    %v3662 = vsub.f32 %v241, %v3661
    %v3663 = vand.u32 %v3662, 4294901760
    %v3664 = vsub.f32 %v3662, %v3663
    %v3665 = vand.u32 %v3664, 4294901760
    %3666 = vmatprep.subr.mxu0 %v3665
    %v3667 = vand.u32 %v240, 4294901760
    %v3668 = vsub.f32 %v240, %v3667
    %v3669 = vand.u32 %v3668, 4294901760
    %v3670 = vsub.f32 %v3668, %v3669
    %v3671 = vand.u32 %v3670, 4294901760
    %3672 = vmatpush2.msra.mxu0 %v3671
    %v3673 = vand.u32 %v237, 4294901760
    %v3674 = vsub.f32 %v237, %v3673
    %v3675 = vand.u32 %v3674, 4294901760
    %v3676 = vsub.f32 %v3674, %v3675
    %v3677 = vand.u32 %v3676, 4294901760
    %3678 = vmatprep.subr.mxu0 %v3677
    %v3679 = vand.u32 %v236, 4294901760
    %v3680 = vsub.f32 %v236, %v3679
    %v3681 = vand.u32 %v3680, 4294901760
    %v3682 = vsub.f32 %v3680, %v3681
    %v3683 = vand.u32 %v3682, 4294901760
    %3684 = vmatpush2.msra.mxu0 %v3683
    %v3685 = vand.u32 %v163, 4294901760
    %3686 = vmatprep.mubr.f32.mxu0 %v3685
    %v3687 = vand.u32 %v162, 4294901760
    %3688 = vmatmul.mubr.f32.gmra.mxu0 %v3687
    %v3689 = vpop.f32.mrf.mxu0
    %v3690 = vadd.f32 %v3281, %v3689
    %v3691 = vpop.f32.mrf.mxu0
    %v3692 = vadd.f32 %v3283, %v3691
    %v3693 = vand.u32 %v167, 4294901760
    %3694 = vmatprep.mubr.f32.mxu0 %v3693
    %v3695 = vand.u32 %v166, 4294901760
    %3696 = vmatmul.mubr.f32.gmra.mxu0 %v3695
    %v3697 = vpop.f32.mrf.mxu0
    %v3698 = vadd.f32 %v3297, %v3697
    %v3699 = vpop.f32.mrf.mxu0
    %v3700 = vadd.f32 %v3299, %v3699
    %3701 = vdwg.mxu0
    %v3702 = vand.u32 %v233, 4294901760
    %v3703 = vsub.f32 %v233, %v3702
    %3704 = vmatprep.subr.mxu0 %v3703
    %v3705 = vand.u32 %v232, 4294901760
    %v3706 = vsub.f32 %v232, %v3705
    %3707 = vmatpush1.msra.mxu0 %v3706
    %v3708 = vand.u32 %v229, 4294901760
    %v3709 = vsub.f32 %v229, %v3708
    %3710 = vmatprep.subr.mxu0 %v3709
    %v3711 = vand.u32 %v228, 4294901760
    %v3712 = vsub.f32 %v228, %v3711
    %3713 = vmatpush1.msra.mxu0 %v3712
    %v3714 = vand.u32 %v225, 4294901760
    %v3715 = vsub.f32 %v225, %v3714
    %3716 = vmatprep.subr.mxu0 %v3715
    %v3717 = vand.u32 %v224, 4294901760
    %v3718 = vsub.f32 %v224, %v3717
    %3719 = vmatpush1.msra.mxu0 %v3718
    %v3720 = vand.u32 %v221, 4294901760
    %v3721 = vsub.f32 %v221, %v3720
    %3722 = vmatprep.subr.mxu0 %v3721
    %v3723 = vand.u32 %v220, 4294901760
    %v3724 = vsub.f32 %v220, %v3723
    %3725 = vmatpush1.msra.mxu0 %v3724
    %v3726 = vand.u32 %v217, 4294901760
    %v3727 = vsub.f32 %v217, %v3726
    %3728 = vmatprep.subr.mxu0 %v3727
    %v3729 = vand.u32 %v216, 4294901760
    %v3730 = vsub.f32 %v216, %v3729
    %3731 = vmatpush1.msra.mxu0 %v3730
    %v3732 = vand.u32 %v213, 4294901760
    %v3733 = vsub.f32 %v213, %v3732
    %3734 = vmatprep.subr.mxu0 %v3733
    %v3735 = vand.u32 %v212, 4294901760
    %v3736 = vsub.f32 %v212, %v3735
    %3737 = vmatpush1.msra.mxu0 %v3736
    %v3738 = vand.u32 %v209, 4294901760
    %v3739 = vsub.f32 %v209, %v3738
    %3740 = vmatprep.subr.mxu0 %v3739
    %v3741 = vand.u32 %v208, 4294901760
    %v3742 = vsub.f32 %v208, %v3741
    %3743 = vmatpush1.msra.mxu0 %v3742
    %v3744 = vand.u32 %v205, 4294901760
    %v3745 = vsub.f32 %v205, %v3744
    %3746 = vmatprep.subr.mxu0 %v3745
    %v3747 = vand.u32 %v204, 4294901760
    %v3748 = vsub.f32 %v204, %v3747
    %3749 = vmatpush1.msra.mxu0 %v3748
    %v3750 = vand.u32 %v201, 4294901760
    %v3751 = vsub.f32 %v201, %v3750
    %3752 = vmatprep.subr.mxu0 %v3751
    %v3753 = vand.u32 %v200, 4294901760
    %v3754 = vsub.f32 %v200, %v3753
    %3755 = vmatpush1.msra.mxu0 %v3754
    %v3756 = vand.u32 %v197, 4294901760
    %v3757 = vsub.f32 %v197, %v3756
    %3758 = vmatprep.subr.mxu0 %v3757
    %v3759 = vand.u32 %v196, 4294901760
    %v3760 = vsub.f32 %v196, %v3759
    %3761 = vmatpush1.msra.mxu0 %v3760
    %v3762 = vand.u32 %v193, 4294901760
    %v3763 = vsub.f32 %v193, %v3762
    %3764 = vmatprep.subr.mxu0 %v3763
    %v3765 = vand.u32 %v192, 4294901760
    %v3766 = vsub.f32 %v192, %v3765
    %3767 = vmatpush1.msra.mxu0 %v3766
    %v3768 = vand.u32 %v189, 4294901760
    %v3769 = vsub.f32 %v189, %v3768
    %3770 = vmatprep.subr.mxu0 %v3769
    %v3771 = vand.u32 %v188, 4294901760
    %v3772 = vsub.f32 %v188, %v3771
    %3773 = vmatpush1.msra.mxu0 %v3772
    %v3774 = vand.u32 %v185, 4294901760
    %v3775 = vsub.f32 %v185, %v3774
    %3776 = vmatprep.subr.mxu0 %v3775
    %v3777 = vand.u32 %v184, 4294901760
    %v3778 = vsub.f32 %v184, %v3777
    %3779 = vmatpush1.msra.mxu0 %v3778
    %v3780 = vand.u32 %v181, 4294901760
    %v3781 = vsub.f32 %v181, %v3780
    %3782 = vmatprep.subr.mxu0 %v3781
    %v3783 = vand.u32 %v180, 4294901760
    %v3784 = vsub.f32 %v180, %v3783
    %3785 = vmatpush1.msra.mxu0 %v3784
    %v3786 = vand.u32 %v177, 4294901760
    %v3787 = vsub.f32 %v177, %v3786
    %3788 = vmatprep.subr.mxu0 %v3787
    %v3789 = vand.u32 %v176, 4294901760
    %v3790 = vsub.f32 %v176, %v3789
    %3791 = vmatpush1.msra.mxu0 %v3790
    %v3792 = vand.u32 %v173, 4294901760
    %v3793 = vsub.f32 %v173, %v3792
    %3794 = vmatprep.subr.mxu0 %v3793
    %v3795 = vand.u32 %v172, 4294901760
    %v3796 = vsub.f32 %v172, %v3795
    %3797 = vmatpush1.msra.mxu0 %v3796
    %v3798 = vand.u32 %v297, 4294901760
    %v3799 = vsub.f32 %v297, %v3798
    %3800 = vmatprep.subr.mxu0 %v3799
    %v3801 = vand.u32 %v296, 4294901760
    %v3802 = vsub.f32 %v296, %v3801
    %3803 = vmatpush2.msra.mxu0 %v3802
    %v3804 = vand.u32 %v293, 4294901760
    %v3805 = vsub.f32 %v293, %v3804
    %3806 = vmatprep.subr.mxu0 %v3805
    %v3807 = vand.u32 %v292, 4294901760
    %v3808 = vsub.f32 %v292, %v3807
    %3809 = vmatpush2.msra.mxu0 %v3808
    %v3810 = vand.u32 %v289, 4294901760
    %v3811 = vsub.f32 %v289, %v3810
    %3812 = vmatprep.subr.mxu0 %v3811
    %v3813 = vand.u32 %v288, 4294901760
    %v3814 = vsub.f32 %v288, %v3813
    %3815 = vmatpush2.msra.mxu0 %v3814
    %v3816 = vand.u32 %v285, 4294901760
    %v3817 = vsub.f32 %v285, %v3816
    %3818 = vmatprep.subr.mxu0 %v3817
    %v3819 = vand.u32 %v284, 4294901760
    %v3820 = vsub.f32 %v284, %v3819
    %3821 = vmatpush2.msra.mxu0 %v3820
    %v3822 = vand.u32 %v281, 4294901760
    %v3823 = vsub.f32 %v281, %v3822
    %3824 = vmatprep.subr.mxu0 %v3823
    %v3825 = vand.u32 %v280, 4294901760
    %v3826 = vsub.f32 %v280, %v3825
    %3827 = vmatpush2.msra.mxu0 %v3826
    %v3828 = vand.u32 %v277, 4294901760
    %v3829 = vsub.f32 %v277, %v3828
    %3830 = vmatprep.subr.mxu0 %v3829
    %v3831 = vand.u32 %v276, 4294901760
    %v3832 = vsub.f32 %v276, %v3831
    %3833 = vmatpush2.msra.mxu0 %v3832
    %v3834 = vand.u32 %v273, 4294901760
    %v3835 = vsub.f32 %v273, %v3834
    %3836 = vmatprep.subr.mxu0 %v3835
    %v3837 = vand.u32 %v272, 4294901760
    %v3838 = vsub.f32 %v272, %v3837
    %3839 = vmatpush2.msra.mxu0 %v3838
    %v3840 = vand.u32 %v269, 4294901760
    %v3841 = vsub.f32 %v269, %v3840
    %3842 = vmatprep.subr.mxu0 %v3841
    %v3843 = vand.u32 %v268, 4294901760
    %v3844 = vsub.f32 %v268, %v3843
    %3845 = vmatpush2.msra.mxu0 %v3844
    %v3846 = vand.u32 %v265, 4294901760
    %v3847 = vsub.f32 %v265, %v3846
    %3848 = vmatprep.subr.mxu0 %v3847
    %v3849 = vand.u32 %v264, 4294901760
    %v3850 = vsub.f32 %v264, %v3849
    %3851 = vmatpush2.msra.mxu0 %v3850
    %v3852 = vand.u32 %v261, 4294901760
    %v3853 = vsub.f32 %v261, %v3852
    %3854 = vmatprep.subr.mxu0 %v3853
    %v3855 = vand.u32 %v260, 4294901760
    %v3856 = vsub.f32 %v260, %v3855
    %3857 = vmatpush2.msra.mxu0 %v3856
    %v3858 = vand.u32 %v257, 4294901760
    %v3859 = vsub.f32 %v257, %v3858
    %3860 = vmatprep.subr.mxu0 %v3859
    %v3861 = vand.u32 %v256, 4294901760
    %v3862 = vsub.f32 %v256, %v3861
    %3863 = vmatpush2.msra.mxu0 %v3862
    %v3864 = vand.u32 %v253, 4294901760
    %v3865 = vsub.f32 %v253, %v3864
    %3866 = vmatprep.subr.mxu0 %v3865
    %v3867 = vand.u32 %v252, 4294901760
    %v3868 = vsub.f32 %v252, %v3867
    %3869 = vmatpush2.msra.mxu0 %v3868
    %v3870 = vand.u32 %v249, 4294901760
    %v3871 = vsub.f32 %v249, %v3870
    %3872 = vmatprep.subr.mxu0 %v3871
    %v3873 = vand.u32 %v248, 4294901760
    %v3874 = vsub.f32 %v248, %v3873
    %3875 = vmatpush2.msra.mxu0 %v3874
    %v3876 = vand.u32 %v245, 4294901760
    %v3877 = vsub.f32 %v245, %v3876
    %3878 = vmatprep.subr.mxu0 %v3877
    %v3879 = vand.u32 %v244, 4294901760
    %v3880 = vsub.f32 %v244, %v3879
    %3881 = vmatpush2.msra.mxu0 %v3880
    %v3882 = vand.u32 %v241, 4294901760
    %v3883 = vsub.f32 %v241, %v3882
    %3884 = vmatprep.subr.mxu0 %v3883
    %v3885 = vand.u32 %v240, 4294901760
    %v3886 = vsub.f32 %v240, %v3885
    %3887 = vmatpush2.msra.mxu0 %v3886
    %v3888 = vand.u32 %v237, 4294901760
    %v3889 = vsub.f32 %v237, %v3888
    %3890 = vmatprep.subr.mxu0 %v3889
    %v3891 = vand.u32 %v236, 4294901760
    %v3892 = vsub.f32 %v236, %v3891
    %3893 = vmatpush2.msra.mxu0 %v3892
    %v3894 = vand.u32 %v163, 4294901760
    %v3895 = vsub.f32 %v163, %v3894
    %3896 = vmatprep.mubr.f32.mxu0 %v3895
    %v3897 = vand.u32 %v162, 4294901760
    %v3898 = vsub.f32 %v162, %v3897
    %3899 = vmatmul.mubr.f32.gmra.mxu0 %v3898
    %v3900 = vpop.f32.mrf.mxu0
    %v3901 = vadd.f32 %v3690, %v3900
    %v3902 = vpop.f32.mrf.mxu0
    %v3903 = vadd.f32 %v3692, %v3902
    %v3904 = vand.u32 %v167, 4294901760
    %v3905 = vsub.f32 %v167, %v3904
    %3906 = vmatprep.mubr.f32.mxu0 %v3905
    %v3907 = vand.u32 %v166, 4294901760
    %v3908 = vsub.f32 %v166, %v3907
    %3909 = vmatmul.mubr.f32.gmra.mxu0 %v3908
    %v3910 = vpop.f32.mrf.mxu0
    %v3911 = vadd.f32 %v3698, %v3910
    %v3912 = vpop.f32.mrf.mxu0
    %v3913 = vadd.f32 %v3700, %v3912
    %3914 = vdwg.mxu0
    %v3915 = vand.u32 %v233, 4294901760
    %3916 = vmatprep.subr.mxu0 %v3915
    %v3917 = vand.u32 %v232, 4294901760
    %3918 = vmatpush1.msra.mxu0 %v3917
    %v3919 = vand.u32 %v229, 4294901760
    %3920 = vmatprep.subr.mxu0 %v3919
    %v3921 = vand.u32 %v228, 4294901760
    %3922 = vmatpush1.msra.mxu0 %v3921
    %v3923 = vand.u32 %v225, 4294901760
    %3924 = vmatprep.subr.mxu0 %v3923
    %v3925 = vand.u32 %v224, 4294901760
    %3926 = vmatpush1.msra.mxu0 %v3925
    %v3927 = vand.u32 %v221, 4294901760
    %3928 = vmatprep.subr.mxu0 %v3927
    %v3929 = vand.u32 %v220, 4294901760
    %3930 = vmatpush1.msra.mxu0 %v3929
    %v3931 = vand.u32 %v217, 4294901760
    %3932 = vmatprep.subr.mxu0 %v3931
    %v3933 = vand.u32 %v216, 4294901760
    %3934 = vmatpush1.msra.mxu0 %v3933
    %v3935 = vand.u32 %v213, 4294901760
    %3936 = vmatprep.subr.mxu0 %v3935
    %v3937 = vand.u32 %v212, 4294901760
    %3938 = vmatpush1.msra.mxu0 %v3937
    %v3939 = vand.u32 %v209, 4294901760
    %3940 = vmatprep.subr.mxu0 %v3939
    %v3941 = vand.u32 %v208, 4294901760
    %3942 = vmatpush1.msra.mxu0 %v3941
    %v3943 = vand.u32 %v205, 4294901760
    %3944 = vmatprep.subr.mxu0 %v3943
    %v3945 = vand.u32 %v204, 4294901760
    %3946 = vmatpush1.msra.mxu0 %v3945
    %v3947 = vand.u32 %v201, 4294901760
    %3948 = vmatprep.subr.mxu0 %v3947
    %v3949 = vand.u32 %v200, 4294901760
    %3950 = vmatpush1.msra.mxu0 %v3949
    %v3951 = vand.u32 %v197, 4294901760
    %3952 = vmatprep.subr.mxu0 %v3951
    %v3953 = vand.u32 %v196, 4294901760
    %3954 = vmatpush1.msra.mxu0 %v3953
    %v3955 = vand.u32 %v193, 4294901760
    %3956 = vmatprep.subr.mxu0 %v3955
    %v3957 = vand.u32 %v192, 4294901760
    %3958 = vmatpush1.msra.mxu0 %v3957
    %v3959 = vand.u32 %v189, 4294901760
    %3960 = vmatprep.subr.mxu0 %v3959
    %v3961 = vand.u32 %v188, 4294901760
    %3962 = vmatpush1.msra.mxu0 %v3961
    %v3963 = vand.u32 %v185, 4294901760
    %3964 = vmatprep.subr.mxu0 %v3963
    %v3965 = vand.u32 %v184, 4294901760
    %3966 = vmatpush1.msra.mxu0 %v3965
    %v3967 = vand.u32 %v181, 4294901760
    %3968 = vmatprep.subr.mxu0 %v3967
    %v3969 = vand.u32 %v180, 4294901760
    %3970 = vmatpush1.msra.mxu0 %v3969
    %v3971 = vand.u32 %v177, 4294901760
    %3972 = vmatprep.subr.mxu0 %v3971
    %v3973 = vand.u32 %v176, 4294901760
    %3974 = vmatpush1.msra.mxu0 %v3973
    %v3975 = vand.u32 %v173, 4294901760
    %3976 = vmatprep.subr.mxu0 %v3975
    %v3977 = vand.u32 %v172, 4294901760
    %3978 = vmatpush1.msra.mxu0 %v3977
    %v3979 = vand.u32 %v297, 4294901760
    %3980 = vmatprep.subr.mxu0 %v3979
    %v3981 = vand.u32 %v296, 4294901760
    %3982 = vmatpush2.msra.mxu0 %v3981
    %v3983 = vand.u32 %v293, 4294901760
    %3984 = vmatprep.subr.mxu0 %v3983
    %v3985 = vand.u32 %v292, 4294901760
    %3986 = vmatpush2.msra.mxu0 %v3985
    %v3987 = vand.u32 %v289, 4294901760
    %3988 = vmatprep.subr.mxu0 %v3987
    %v3989 = vand.u32 %v288, 4294901760
    %3990 = vmatpush2.msra.mxu0 %v3989
    %v3991 = vand.u32 %v285, 4294901760
    %3992 = vmatprep.subr.mxu0 %v3991
    %v3993 = vand.u32 %v284, 4294901760
    %3994 = vmatpush2.msra.mxu0 %v3993
    %v3995 = vand.u32 %v281, 4294901760
    %3996 = vmatprep.subr.mxu0 %v3995
    %v3997 = vand.u32 %v280, 4294901760
    %3998 = vmatpush2.msra.mxu0 %v3997
    %v3999 = vand.u32 %v277, 4294901760
    %4000 = vmatprep.subr.mxu0 %v3999
    %v4001 = vand.u32 %v276, 4294901760
    %4002 = vmatpush2.msra.mxu0 %v4001
    %v4003 = vand.u32 %v273, 4294901760
    %4004 = vmatprep.subr.mxu0 %v4003
    %v4005 = vand.u32 %v272, 4294901760
    %4006 = vmatpush2.msra.mxu0 %v4005
    %v4007 = vand.u32 %v269, 4294901760
    %4008 = vmatprep.subr.mxu0 %v4007
    %v4009 = vand.u32 %v268, 4294901760
    %4010 = vmatpush2.msra.mxu0 %v4009
    %v4011 = vand.u32 %v265, 4294901760
    %4012 = vmatprep.subr.mxu0 %v4011
    %v4013 = vand.u32 %v264, 4294901760
    %4014 = vmatpush2.msra.mxu0 %v4013
    %v4015 = vand.u32 %v261, 4294901760
    %4016 = vmatprep.subr.mxu0 %v4015
    %v4017 = vand.u32 %v260, 4294901760
    %4018 = vmatpush2.msra.mxu0 %v4017
    %v4019 = vand.u32 %v257, 4294901760
    %4020 = vmatprep.subr.mxu0 %v4019
    %v4021 = vand.u32 %v256, 4294901760
    %4022 = vmatpush2.msra.mxu0 %v4021
    %v4023 = vand.u32 %v253, 4294901760
    %4024 = vmatprep.subr.mxu0 %v4023
    %v4025 = vand.u32 %v252, 4294901760
    %4026 = vmatpush2.msra.mxu0 %v4025
    %v4027 = vand.u32 %v249, 4294901760
    %4028 = vmatprep.subr.mxu0 %v4027
    %v4029 = vand.u32 %v248, 4294901760
    %4030 = vmatpush2.msra.mxu0 %v4029
    %v4031 = vand.u32 %v245, 4294901760
    %4032 = vmatprep.subr.mxu0 %v4031
    %v4033 = vand.u32 %v244, 4294901760
    %4034 = vmatpush2.msra.mxu0 %v4033
    %v4035 = vand.u32 %v241, 4294901760
    %4036 = vmatprep.subr.mxu0 %v4035
    %v4037 = vand.u32 %v240, 4294901760
    %4038 = vmatpush2.msra.mxu0 %v4037
    %v4039 = vand.u32 %v237, 4294901760
    %4040 = vmatprep.subr.mxu0 %v4039
    %v4041 = vand.u32 %v236, 4294901760
    %4042 = vmatpush2.msra.mxu0 %v4041
    %v4043 = vand.u32 %v163, 4294901760
    %v4044 = vsub.f32 %v163, %v4043
    %v4045 = vand.u32 %v4044, 4294901760
    %4046 = vmatprep.mubr.f32.mxu0 %v4045
    %v4047 = vand.u32 %v162, 4294901760
    %v4048 = vsub.f32 %v162, %v4047
    %v4049 = vand.u32 %v4048, 4294901760
    %4050 = vmatmul.mubr.f32.gmra.mxu0 %v4049
    %v4051 = vpop.f32.mrf.mxu0
    %v4052 = vadd.f32 %v3901, %v4051
    %v4053 = vpop.f32.mrf.mxu0
    %v4054 = vadd.f32 %v3903, %v4053
    %v4055 = vand.u32 %v167, 4294901760
    %v4056 = vsub.f32 %v167, %v4055
    %v4057 = vand.u32 %v4056, 4294901760
    %4058 = vmatprep.mubr.f32.mxu0 %v4057
    %v4059 = vand.u32 %v166, 4294901760
    %v4060 = vsub.f32 %v166, %v4059
    %v4061 = vand.u32 %v4060, 4294901760
    %4062 = vmatmul.mubr.f32.gmra.mxu0 %v4061
    %v4063 = vpop.f32.mrf.mxu0
    %v4064 = vadd.f32 %v3911, %v4063
    %v4065 = vpop.f32.mrf.mxu0
    %v4066 = vadd.f32 %v3913, %v4065
    %4067 = vdwg.mxu0
    %v4068 = vand.u32 %v233, 4294901760
    %v4069 = vsub.f32 %v233, %v4068
    %v4070 = vand.u32 %v4069, 4294901760
    %4071 = vmatprep.subr.mxu0 %v4070
    %v4072 = vand.u32 %v232, 4294901760
    %v4073 = vsub.f32 %v232, %v4072
    %v4074 = vand.u32 %v4073, 4294901760
    %4075 = vmatpush1.msra.mxu0 %v4074
    %v4076 = vand.u32 %v229, 4294901760
    %v4077 = vsub.f32 %v229, %v4076
    %v4078 = vand.u32 %v4077, 4294901760
    %4079 = vmatprep.subr.mxu0 %v4078
    %v4080 = vand.u32 %v228, 4294901760
    %v4081 = vsub.f32 %v228, %v4080
    %v4082 = vand.u32 %v4081, 4294901760
    %4083 = vmatpush1.msra.mxu0 %v4082
    %v4084 = vand.u32 %v225, 4294901760
    %v4085 = vsub.f32 %v225, %v4084
    %v4086 = vand.u32 %v4085, 4294901760
    %4087 = vmatprep.subr.mxu0 %v4086
    %v4088 = vand.u32 %v224, 4294901760
    %v4089 = vsub.f32 %v224, %v4088
    %v4090 = vand.u32 %v4089, 4294901760
    %4091 = vmatpush1.msra.mxu0 %v4090
    %v4092 = vand.u32 %v221, 4294901760
    %v4093 = vsub.f32 %v221, %v4092
    %v4094 = vand.u32 %v4093, 4294901760
    %4095 = vmatprep.subr.mxu0 %v4094
    %v4096 = vand.u32 %v220, 4294901760
    %v4097 = vsub.f32 %v220, %v4096
    %v4098 = vand.u32 %v4097, 4294901760
    %4099 = vmatpush1.msra.mxu0 %v4098
    %v4100 = vand.u32 %v217, 4294901760
    %v4101 = vsub.f32 %v217, %v4100
    %v4102 = vand.u32 %v4101, 4294901760
    %4103 = vmatprep.subr.mxu0 %v4102
    %v4104 = vand.u32 %v216, 4294901760
    %v4105 = vsub.f32 %v216, %v4104
    %v4106 = vand.u32 %v4105, 4294901760
    %4107 = vmatpush1.msra.mxu0 %v4106
    %v4108 = vand.u32 %v213, 4294901760
    %v4109 = vsub.f32 %v213, %v4108
    %v4110 = vand.u32 %v4109, 4294901760
    %4111 = vmatprep.subr.mxu0 %v4110
    %v4112 = vand.u32 %v212, 4294901760
    %v4113 = vsub.f32 %v212, %v4112
    %v4114 = vand.u32 %v4113, 4294901760
    %4115 = vmatpush1.msra.mxu0 %v4114
    %v4116 = vand.u32 %v209, 4294901760
    %v4117 = vsub.f32 %v209, %v4116
    %v4118 = vand.u32 %v4117, 4294901760
    %4119 = vmatprep.subr.mxu0 %v4118
    %v4120 = vand.u32 %v208, 4294901760
    %v4121 = vsub.f32 %v208, %v4120
    %v4122 = vand.u32 %v4121, 4294901760
    %4123 = vmatpush1.msra.mxu0 %v4122
    %v4124 = vand.u32 %v205, 4294901760
    %v4125 = vsub.f32 %v205, %v4124
    %v4126 = vand.u32 %v4125, 4294901760
    %4127 = vmatprep.subr.mxu0 %v4126
    %v4128 = vand.u32 %v204, 4294901760
    %v4129 = vsub.f32 %v204, %v4128
    %v4130 = vand.u32 %v4129, 4294901760
    %4131 = vmatpush1.msra.mxu0 %v4130
    %v4132 = vand.u32 %v201, 4294901760
    %v4133 = vsub.f32 %v201, %v4132
    %v4134 = vand.u32 %v4133, 4294901760
    %4135 = vmatprep.subr.mxu0 %v4134
    %v4136 = vand.u32 %v200, 4294901760
    %v4137 = vsub.f32 %v200, %v4136
    %v4138 = vand.u32 %v4137, 4294901760
    %4139 = vmatpush1.msra.mxu0 %v4138
    %v4140 = vand.u32 %v197, 4294901760
    %v4141 = vsub.f32 %v197, %v4140
    %v4142 = vand.u32 %v4141, 4294901760
    %4143 = vmatprep.subr.mxu0 %v4142
    %v4144 = vand.u32 %v196, 4294901760
    %v4145 = vsub.f32 %v196, %v4144
    %v4146 = vand.u32 %v4145, 4294901760
    %4147 = vmatpush1.msra.mxu0 %v4146
    %v4148 = vand.u32 %v193, 4294901760
    %v4149 = vsub.f32 %v193, %v4148
    %v4150 = vand.u32 %v4149, 4294901760
    %4151 = vmatprep.subr.mxu0 %v4150
    %v4152 = vand.u32 %v192, 4294901760
    %v4153 = vsub.f32 %v192, %v4152
    %v4154 = vand.u32 %v4153, 4294901760
    %4155 = vmatpush1.msra.mxu0 %v4154
    %v4156 = vand.u32 %v189, 4294901760
    %v4157 = vsub.f32 %v189, %v4156
    %v4158 = vand.u32 %v4157, 4294901760
    %4159 = vmatprep.subr.mxu0 %v4158
    %v4160 = vand.u32 %v188, 4294901760
    %v4161 = vsub.f32 %v188, %v4160
    %v4162 = vand.u32 %v4161, 4294901760
    %4163 = vmatpush1.msra.mxu0 %v4162
    %v4164 = vand.u32 %v185, 4294901760
    %v4165 = vsub.f32 %v185, %v4164
    %v4166 = vand.u32 %v4165, 4294901760
    %4167 = vmatprep.subr.mxu0 %v4166
    %v4168 = vand.u32 %v184, 4294901760
    %v4169 = vsub.f32 %v184, %v4168
    %v4170 = vand.u32 %v4169, 4294901760
    %4171 = vmatpush1.msra.mxu0 %v4170
    %v4172 = vand.u32 %v181, 4294901760
    %v4173 = vsub.f32 %v181, %v4172
    %v4174 = vand.u32 %v4173, 4294901760
    %4175 = vmatprep.subr.mxu0 %v4174
    %v4176 = vand.u32 %v180, 4294901760
    %v4177 = vsub.f32 %v180, %v4176
    %v4178 = vand.u32 %v4177, 4294901760
    %4179 = vmatpush1.msra.mxu0 %v4178
    %v4180 = vand.u32 %v177, 4294901760
    %v4181 = vsub.f32 %v177, %v4180
    %v4182 = vand.u32 %v4181, 4294901760
    %4183 = vmatprep.subr.mxu0 %v4182
    %v4184 = vand.u32 %v176, 4294901760
    %v4185 = vsub.f32 %v176, %v4184
    %v4186 = vand.u32 %v4185, 4294901760
    %4187 = vmatpush1.msra.mxu0 %v4186
    %v4188 = vand.u32 %v173, 4294901760
    %v4189 = vsub.f32 %v173, %v4188
    %v4190 = vand.u32 %v4189, 4294901760
    %4191 = vmatprep.subr.mxu0 %v4190
    %v4192 = vand.u32 %v172, 4294901760
    %v4193 = vsub.f32 %v172, %v4192
    %v4194 = vand.u32 %v4193, 4294901760
    %4195 = vmatpush1.msra.mxu0 %v4194
    %v4196 = vand.u32 %v297, 4294901760
    %v4197 = vsub.f32 %v297, %v4196
    %v4198 = vand.u32 %v4197, 4294901760
    %4199 = vmatprep.subr.mxu0 %v4198
    %v4200 = vand.u32 %v296, 4294901760
    %v4201 = vsub.f32 %v296, %v4200
    %v4202 = vand.u32 %v4201, 4294901760
    %4203 = vmatpush2.msra.mxu0 %v4202
    %v4204 = vand.u32 %v293, 4294901760
    %v4205 = vsub.f32 %v293, %v4204
    %v4206 = vand.u32 %v4205, 4294901760
    %4207 = vmatprep.subr.mxu0 %v4206
    %v4208 = vand.u32 %v292, 4294901760
    %v4209 = vsub.f32 %v292, %v4208
    %v4210 = vand.u32 %v4209, 4294901760
    %4211 = vmatpush2.msra.mxu0 %v4210
    %v4212 = vand.u32 %v289, 4294901760
    %v4213 = vsub.f32 %v289, %v4212
    %v4214 = vand.u32 %v4213, 4294901760
    %4215 = vmatprep.subr.mxu0 %v4214
    %v4216 = vand.u32 %v288, 4294901760
    %v4217 = vsub.f32 %v288, %v4216
    %v4218 = vand.u32 %v4217, 4294901760
    %4219 = vmatpush2.msra.mxu0 %v4218
    %v4220 = vand.u32 %v285, 4294901760
    %v4221 = vsub.f32 %v285, %v4220
    %v4222 = vand.u32 %v4221, 4294901760
    %4223 = vmatprep.subr.mxu0 %v4222
    %v4224 = vand.u32 %v284, 4294901760
    %v4225 = vsub.f32 %v284, %v4224
    %v4226 = vand.u32 %v4225, 4294901760
    %4227 = vmatpush2.msra.mxu0 %v4226
    %v4228 = vand.u32 %v281, 4294901760
    %v4229 = vsub.f32 %v281, %v4228
    %v4230 = vand.u32 %v4229, 4294901760
    %4231 = vmatprep.subr.mxu0 %v4230
    %v4232 = vand.u32 %v280, 4294901760
    %v4233 = vsub.f32 %v280, %v4232
    %v4234 = vand.u32 %v4233, 4294901760
    %4235 = vmatpush2.msra.mxu0 %v4234
    %v4236 = vand.u32 %v277, 4294901760
    %v4237 = vsub.f32 %v277, %v4236
    %v4238 = vand.u32 %v4237, 4294901760
    %4239 = vmatprep.subr.mxu0 %v4238
    %v4240 = vand.u32 %v276, 4294901760
    %v4241 = vsub.f32 %v276, %v4240
    %v4242 = vand.u32 %v4241, 4294901760
    %4243 = vmatpush2.msra.mxu0 %v4242
    %v4244 = vand.u32 %v273, 4294901760
    %v4245 = vsub.f32 %v273, %v4244
    %v4246 = vand.u32 %v4245, 4294901760
    %4247 = vmatprep.subr.mxu0 %v4246
    %v4248 = vand.u32 %v272, 4294901760
    %v4249 = vsub.f32 %v272, %v4248
    %v4250 = vand.u32 %v4249, 4294901760
    %4251 = vmatpush2.msra.mxu0 %v4250
    %v4252 = vand.u32 %v269, 4294901760
    %v4253 = vsub.f32 %v269, %v4252
    %v4254 = vand.u32 %v4253, 4294901760
    %4255 = vmatprep.subr.mxu0 %v4254
    %v4256 = vand.u32 %v268, 4294901760
    %v4257 = vsub.f32 %v268, %v4256
    %v4258 = vand.u32 %v4257, 4294901760
    %4259 = vmatpush2.msra.mxu0 %v4258
    %v4260 = vand.u32 %v265, 4294901760
    %v4261 = vsub.f32 %v265, %v4260
    %v4262 = vand.u32 %v4261, 4294901760
    %4263 = vmatprep.subr.mxu0 %v4262
    %v4264 = vand.u32 %v264, 4294901760
    %v4265 = vsub.f32 %v264, %v4264
    %v4266 = vand.u32 %v4265, 4294901760
    %4267 = vmatpush2.msra.mxu0 %v4266
    %v4268 = vand.u32 %v261, 4294901760
    %v4269 = vsub.f32 %v261, %v4268
    %v4270 = vand.u32 %v4269, 4294901760
    %4271 = vmatprep.subr.mxu0 %v4270
    %v4272 = vand.u32 %v260, 4294901760
    %v4273 = vsub.f32 %v260, %v4272
    %v4274 = vand.u32 %v4273, 4294901760
    %4275 = vmatpush2.msra.mxu0 %v4274
    %v4276 = vand.u32 %v257, 4294901760
    %v4277 = vsub.f32 %v257, %v4276
    %v4278 = vand.u32 %v4277, 4294901760
    %4279 = vmatprep.subr.mxu0 %v4278
    %v4280 = vand.u32 %v256, 4294901760
    %v4281 = vsub.f32 %v256, %v4280
    %v4282 = vand.u32 %v4281, 4294901760
    %4283 = vmatpush2.msra.mxu0 %v4282
    %v4284 = vand.u32 %v253, 4294901760
    %v4285 = vsub.f32 %v253, %v4284
    %v4286 = vand.u32 %v4285, 4294901760
    %4287 = vmatprep.subr.mxu0 %v4286
    %v4288 = vand.u32 %v252, 4294901760
    %v4289 = vsub.f32 %v252, %v4288
    %v4290 = vand.u32 %v4289, 4294901760
    %4291 = vmatpush2.msra.mxu0 %v4290
    %v4292 = vand.u32 %v249, 4294901760
    %v4293 = vsub.f32 %v249, %v4292
    %v4294 = vand.u32 %v4293, 4294901760
    %4295 = vmatprep.subr.mxu0 %v4294
    %v4296 = vand.u32 %v248, 4294901760
    %v4297 = vsub.f32 %v248, %v4296
    %v4298 = vand.u32 %v4297, 4294901760
    %4299 = vmatpush2.msra.mxu0 %v4298
    %v4300 = vand.u32 %v245, 4294901760
    %v4301 = vsub.f32 %v245, %v4300
    %v4302 = vand.u32 %v4301, 4294901760
    %4303 = vmatprep.subr.mxu0 %v4302
    %v4304 = vand.u32 %v244, 4294901760
    %v4305 = vsub.f32 %v244, %v4304
    %v4306 = vand.u32 %v4305, 4294901760
    %4307 = vmatpush2.msra.mxu0 %v4306
    %v4308 = vand.u32 %v241, 4294901760
    %v4309 = vsub.f32 %v241, %v4308
    %v4310 = vand.u32 %v4309, 4294901760
    %4311 = vmatprep.subr.mxu0 %v4310
    %v4312 = vand.u32 %v240, 4294901760
    %v4313 = vsub.f32 %v240, %v4312
    %v4314 = vand.u32 %v4313, 4294901760
    %4315 = vmatpush2.msra.mxu0 %v4314
    %v4316 = vand.u32 %v237, 4294901760
    %v4317 = vsub.f32 %v237, %v4316
    %v4318 = vand.u32 %v4317, 4294901760
    %4319 = vmatprep.subr.mxu0 %v4318
    %v4320 = vand.u32 %v236, 4294901760
    %v4321 = vsub.f32 %v236, %v4320
    %v4322 = vand.u32 %v4321, 4294901760
    %4323 = vmatpush2.msra.mxu0 %v4322
    %v4324 = vand.u32 %v163, 4294901760
    %4325 = vmatprep.mubr.f32.mxu0 %v4324
    %v4326 = vand.u32 %v162, 4294901760
    %4327 = vmatmul.mubr.f32.gmra.mxu0 %v4326
    %v4328 = vpop.f32.mrf.mxu0
    %v4329 = vadd.f32 %v4052, %v4328
    %v4330 = vpop.f32.mrf.mxu0
    %v4331 = vadd.f32 %v4054, %v4330
    %v4332 = vand.u32 %v167, 4294901760
    %4333 = vmatprep.mubr.f32.mxu0 %v4332
    %v4334 = vand.u32 %v166, 4294901760
    %4335 = vmatmul.mubr.f32.gmra.mxu0 %v4334
    %v4336 = vpop.f32.mrf.mxu0
    %v4337 = vadd.f32 %v4064, %v4336
    %v4338 = vpop.f32.mrf.mxu0
    %v4339 = vadd.f32 %v4066, %v4338
    %4340 = vdwg.mxu0
    %v4341 = vand.u32 %v233, 4294901760
    %4342 = vmatprep.subr.mxu0 %v4341
    %v4343 = vand.u32 %v232, 4294901760
    %4344 = vmatpush1.msra.mxu0 %v4343
    %v4345 = vand.u32 %v229, 4294901760
    %4346 = vmatprep.subr.mxu0 %v4345
    %v4347 = vand.u32 %v228, 4294901760
    %4348 = vmatpush1.msra.mxu0 %v4347
    %v4349 = vand.u32 %v225, 4294901760
    %4350 = vmatprep.subr.mxu0 %v4349
    %v4351 = vand.u32 %v224, 4294901760
    %4352 = vmatpush1.msra.mxu0 %v4351
    %v4353 = vand.u32 %v221, 4294901760
    %4354 = vmatprep.subr.mxu0 %v4353
    %v4355 = vand.u32 %v220, 4294901760
    %4356 = vmatpush1.msra.mxu0 %v4355
    %v4357 = vand.u32 %v217, 4294901760
    %4358 = vmatprep.subr.mxu0 %v4357
    %v4359 = vand.u32 %v216, 4294901760
    %4360 = vmatpush1.msra.mxu0 %v4359
    %v4361 = vand.u32 %v213, 4294901760
    %4362 = vmatprep.subr.mxu0 %v4361
    %v4363 = vand.u32 %v212, 4294901760
    %4364 = vmatpush1.msra.mxu0 %v4363
    %v4365 = vand.u32 %v209, 4294901760
    %4366 = vmatprep.subr.mxu0 %v4365
    %v4367 = vand.u32 %v208, 4294901760
    %4368 = vmatpush1.msra.mxu0 %v4367
    %v4369 = vand.u32 %v205, 4294901760
    %4370 = vmatprep.subr.mxu0 %v4369
    %v4371 = vand.u32 %v204, 4294901760
    %4372 = vmatpush1.msra.mxu0 %v4371
    %v4373 = vand.u32 %v201, 4294901760
    %4374 = vmatprep.subr.mxu0 %v4373
    %v4375 = vand.u32 %v200, 4294901760
    %4376 = vmatpush1.msra.mxu0 %v4375
    %v4377 = vand.u32 %v197, 4294901760
    %4378 = vmatprep.subr.mxu0 %v4377
    %v4379 = vand.u32 %v196, 4294901760
    %4380 = vmatpush1.msra.mxu0 %v4379
    %v4381 = vand.u32 %v193, 4294901760
    %4382 = vmatprep.subr.mxu0 %v4381
    %v4383 = vand.u32 %v192, 4294901760
    %4384 = vmatpush1.msra.mxu0 %v4383
    %v4385 = vand.u32 %v189, 4294901760
    %4386 = vmatprep.subr.mxu0 %v4385
    %v4387 = vand.u32 %v188, 4294901760
    %4388 = vmatpush1.msra.mxu0 %v4387
    %v4389 = vand.u32 %v185, 4294901760
    %4390 = vmatprep.subr.mxu0 %v4389
    %v4391 = vand.u32 %v184, 4294901760
    %4392 = vmatpush1.msra.mxu0 %v4391
    %v4393 = vand.u32 %v181, 4294901760
    %4394 = vmatprep.subr.mxu0 %v4393
    %v4395 = vand.u32 %v180, 4294901760
    %4396 = vmatpush1.msra.mxu0 %v4395
    %v4397 = vand.u32 %v177, 4294901760
    %4398 = vmatprep.subr.mxu0 %v4397
    %v4399 = vand.u32 %v176, 4294901760
    %4400 = vmatpush1.msra.mxu0 %v4399
    %v4401 = vand.u32 %v173, 4294901760
    %4402 = vmatprep.subr.mxu0 %v4401
    %v4403 = vand.u32 %v172, 4294901760
    %4404 = vmatpush1.msra.mxu0 %v4403
    %v4405 = vand.u32 %v297, 4294901760
    %4406 = vmatprep.subr.mxu0 %v4405
    %v4407 = vand.u32 %v296, 4294901760
    %4408 = vmatpush2.msra.mxu0 %v4407
    %v4409 = vand.u32 %v293, 4294901760
    %4410 = vmatprep.subr.mxu0 %v4409
    %v4411 = vand.u32 %v292, 4294901760
    %4412 = vmatpush2.msra.mxu0 %v4411
    %v4413 = vand.u32 %v289, 4294901760
    %4414 = vmatprep.subr.mxu0 %v4413
    %v4415 = vand.u32 %v288, 4294901760
    %4416 = vmatpush2.msra.mxu0 %v4415
    %v4417 = vand.u32 %v285, 4294901760
    %4418 = vmatprep.subr.mxu0 %v4417
    %v4419 = vand.u32 %v284, 4294901760
    %4420 = vmatpush2.msra.mxu0 %v4419
    %v4421 = vand.u32 %v281, 4294901760
    %4422 = vmatprep.subr.mxu0 %v4421
    %v4423 = vand.u32 %v280, 4294901760
    %4424 = vmatpush2.msra.mxu0 %v4423
    %v4425 = vand.u32 %v277, 4294901760
    %4426 = vmatprep.subr.mxu0 %v4425
    %v4427 = vand.u32 %v276, 4294901760
    %4428 = vmatpush2.msra.mxu0 %v4427
    %v4429 = vand.u32 %v273, 4294901760
    %4430 = vmatprep.subr.mxu0 %v4429
    %v4431 = vand.u32 %v272, 4294901760
    %4432 = vmatpush2.msra.mxu0 %v4431
    %v4433 = vand.u32 %v269, 4294901760
    %4434 = vmatprep.subr.mxu0 %v4433
    %v4435 = vand.u32 %v268, 4294901760
    %4436 = vmatpush2.msra.mxu0 %v4435
    %v4437 = vand.u32 %v265, 4294901760
    %4438 = vmatprep.subr.mxu0 %v4437
    %v4439 = vand.u32 %v264, 4294901760
    %4440 = vmatpush2.msra.mxu0 %v4439
    %v4441 = vand.u32 %v261, 4294901760
    %4442 = vmatprep.subr.mxu0 %v4441
    %v4443 = vand.u32 %v260, 4294901760
    %4444 = vmatpush2.msra.mxu0 %v4443
    %v4445 = vand.u32 %v257, 4294901760
    %4446 = vmatprep.subr.mxu0 %v4445
    %v4447 = vand.u32 %v256, 4294901760
    %4448 = vmatpush2.msra.mxu0 %v4447
    %v4449 = vand.u32 %v253, 4294901760
    %4450 = vmatprep.subr.mxu0 %v4449
    %v4451 = vand.u32 %v252, 4294901760
    %4452 = vmatpush2.msra.mxu0 %v4451
    %v4453 = vand.u32 %v249, 4294901760
    %4454 = vmatprep.subr.mxu0 %v4453
    %v4455 = vand.u32 %v248, 4294901760
    %4456 = vmatpush2.msra.mxu0 %v4455
    %v4457 = vand.u32 %v245, 4294901760
    %4458 = vmatprep.subr.mxu0 %v4457
    %v4459 = vand.u32 %v244, 4294901760
    %4460 = vmatpush2.msra.mxu0 %v4459
    %v4461 = vand.u32 %v241, 4294901760
    %4462 = vmatprep.subr.mxu0 %v4461
    %v4463 = vand.u32 %v240, 4294901760
    %4464 = vmatpush2.msra.mxu0 %v4463
    %v4465 = vand.u32 %v237, 4294901760
    %4466 = vmatprep.subr.mxu0 %v4465
    %v4467 = vand.u32 %v236, 4294901760
    %4468 = vmatpush2.msra.mxu0 %v4467
    %v4469 = vand.u32 %v163, 4294901760
    %4470 = vmatprep.mubr.f32.mxu0 %v4469
    %v4471 = vand.u32 %v162, 4294901760
    %4472 = vmatmul.mubr.f32.gmra.mxu0 %v4471
    %v4473 = vpop.f32.mrf.mxu0
    %v4474 = vadd.f32 %v4329, %v4473
    %v4475 = vpop.f32.mrf.mxu0
    %v4476 = vadd.f32 %v4331, %v4475
    %v4477 = vand.u32 %v167, 4294901760
    %4478 = vmatprep.mubr.f32.mxu0 %v4477
    %v4479 = vand.u32 %v166, 4294901760
    %4480 = vmatmul.mubr.f32.gmra.mxu0 %v4479
    %v4481 = vpop.f32.mrf.mxu0
    %v4482 = vadd.f32 %v4337, %v4481
    %v4483 = vpop.f32.mrf.mxu0
    %v4484 = vadd.f32 %v4339, %v4483
    %4485 = vdwg.mxu0
    %v4486 = vand.u32 %v361, 4294901760
    %4487 = vmatprep.subr.mxu0 %v4486
    %v4488 = vand.u32 %v360, 4294901760
    %4489 = vmatpush1.msra.mxu0 %v4488
    %v4490 = vand.u32 %v357, 4294901760
    %4491 = vmatprep.subr.mxu0 %v4490
    %v4492 = vand.u32 %v356, 4294901760
    %4493 = vmatpush1.msra.mxu0 %v4492
    %v4494 = vand.u32 %v353, 4294901760
    %4495 = vmatprep.subr.mxu0 %v4494
    %v4496 = vand.u32 %v352, 4294901760
    %4497 = vmatpush1.msra.mxu0 %v4496
    %v4498 = vand.u32 %v349, 4294901760
    %4499 = vmatprep.subr.mxu0 %v4498
    %v4500 = vand.u32 %v348, 4294901760
    %4501 = vmatpush1.msra.mxu0 %v4500
    %v4502 = vand.u32 %v345, 4294901760
    %4503 = vmatprep.subr.mxu0 %v4502
    %v4504 = vand.u32 %v344, 4294901760
    %4505 = vmatpush1.msra.mxu0 %v4504
    %v4506 = vand.u32 %v341, 4294901760
    %4507 = vmatprep.subr.mxu0 %v4506
    %v4508 = vand.u32 %v340, 4294901760
    %4509 = vmatpush1.msra.mxu0 %v4508
    %v4510 = vand.u32 %v337, 4294901760
    %4511 = vmatprep.subr.mxu0 %v4510
    %v4512 = vand.u32 %v336, 4294901760
    %4513 = vmatpush1.msra.mxu0 %v4512
    %v4514 = vand.u32 %v333, 4294901760
    %4515 = vmatprep.subr.mxu0 %v4514
    %v4516 = vand.u32 %v332, 4294901760
    %4517 = vmatpush1.msra.mxu0 %v4516
    %v4518 = vand.u32 %v329, 4294901760
    %4519 = vmatprep.subr.mxu0 %v4518
    %v4520 = vand.u32 %v328, 4294901760
    %4521 = vmatpush1.msra.mxu0 %v4520
    %v4522 = vand.u32 %v325, 4294901760
    %4523 = vmatprep.subr.mxu0 %v4522
    %v4524 = vand.u32 %v324, 4294901760
    %4525 = vmatpush1.msra.mxu0 %v4524
    %v4526 = vand.u32 %v321, 4294901760
    %4527 = vmatprep.subr.mxu0 %v4526
    %v4528 = vand.u32 %v320, 4294901760
    %4529 = vmatpush1.msra.mxu0 %v4528
    %v4530 = vand.u32 %v317, 4294901760
    %4531 = vmatprep.subr.mxu0 %v4530
    %v4532 = vand.u32 %v316, 4294901760
    %4533 = vmatpush1.msra.mxu0 %v4532
    %v4534 = vand.u32 %v313, 4294901760
    %4535 = vmatprep.subr.mxu0 %v4534
    %v4536 = vand.u32 %v312, 4294901760
    %4537 = vmatpush1.msra.mxu0 %v4536
    %v4538 = vand.u32 %v309, 4294901760
    %4539 = vmatprep.subr.mxu0 %v4538
    %v4540 = vand.u32 %v308, 4294901760
    %4541 = vmatpush1.msra.mxu0 %v4540
    %v4542 = vand.u32 %v305, 4294901760
    %4543 = vmatprep.subr.mxu0 %v4542
    %v4544 = vand.u32 %v304, 4294901760
    %4545 = vmatpush1.msra.mxu0 %v4544
    %v4546 = vand.u32 %v301, 4294901760
    %4547 = vmatprep.subr.mxu0 %v4546
    %v4548 = vand.u32 %v300, 4294901760
    %4549 = vmatpush1.msra.mxu0 %v4548
    %v4550 = vand.u32 %v425, 4294901760
    %4551 = vmatprep.subr.mxu0 %v4550
    %v4552 = vand.u32 %v424, 4294901760
    %4553 = vmatpush2.msra.mxu0 %v4552
    %v4554 = vand.u32 %v421, 4294901760
    %4555 = vmatprep.subr.mxu0 %v4554
    %v4556 = vand.u32 %v420, 4294901760
    %4557 = vmatpush2.msra.mxu0 %v4556
    %v4558 = vand.u32 %v417, 4294901760
    %4559 = vmatprep.subr.mxu0 %v4558
    %v4560 = vand.u32 %v416, 4294901760
    %4561 = vmatpush2.msra.mxu0 %v4560
    %v4562 = vand.u32 %v413, 4294901760
    %4563 = vmatprep.subr.mxu0 %v4562
    %v4564 = vand.u32 %v412, 4294901760
    %4565 = vmatpush2.msra.mxu0 %v4564
    %v4566 = vand.u32 %v409, 4294901760
    %4567 = vmatprep.subr.mxu0 %v4566
    %v4568 = vand.u32 %v408, 4294901760
    %4569 = vmatpush2.msra.mxu0 %v4568
    %v4570 = vand.u32 %v405, 4294901760
    %4571 = vmatprep.subr.mxu0 %v4570
    %v4572 = vand.u32 %v404, 4294901760
    %4573 = vmatpush2.msra.mxu0 %v4572
    %v4574 = vand.u32 %v401, 4294901760
    %4575 = vmatprep.subr.mxu0 %v4574
    %v4576 = vand.u32 %v400, 4294901760
    %4577 = vmatpush2.msra.mxu0 %v4576
    %v4578 = vand.u32 %v397, 4294901760
    %4579 = vmatprep.subr.mxu0 %v4578
    %v4580 = vand.u32 %v396, 4294901760
    %4581 = vmatpush2.msra.mxu0 %v4580
    %v4582 = vand.u32 %v393, 4294901760
    %4583 = vmatprep.subr.mxu0 %v4582
    %v4584 = vand.u32 %v392, 4294901760
    %4585 = vmatpush2.msra.mxu0 %v4584
    %v4586 = vand.u32 %v389, 4294901760
    %4587 = vmatprep.subr.mxu0 %v4586
    %v4588 = vand.u32 %v388, 4294901760
    %4589 = vmatpush2.msra.mxu0 %v4588
    %v4590 = vand.u32 %v385, 4294901760
    %4591 = vmatprep.subr.mxu0 %v4590
    %v4592 = vand.u32 %v384, 4294901760
    %4593 = vmatpush2.msra.mxu0 %v4592
    %v4594 = vand.u32 %v381, 4294901760
    %4595 = vmatprep.subr.mxu0 %v4594
    %v4596 = vand.u32 %v380, 4294901760
    %4597 = vmatpush2.msra.mxu0 %v4596
    %v4598 = vand.u32 %v377, 4294901760
    %4599 = vmatprep.subr.mxu0 %v4598
    %v4600 = vand.u32 %v376, 4294901760
    %4601 = vmatpush2.msra.mxu0 %v4600
    %v4602 = vand.u32 %v373, 4294901760
    %4603 = vmatprep.subr.mxu0 %v4602
    %v4604 = vand.u32 %v372, 4294901760
    %4605 = vmatpush2.msra.mxu0 %v4604
    %v4606 = vand.u32 %v369, 4294901760
    %4607 = vmatprep.subr.mxu0 %v4606
    %v4608 = vand.u32 %v368, 4294901760
    %4609 = vmatpush2.msra.mxu0 %v4608
    %v4610 = vand.u32 %v365, 4294901760
    %4611 = vmatprep.subr.mxu0 %v4610
    %v4612 = vand.u32 %v364, 4294901760
    %4613 = vmatpush2.msra.mxu0 %v4612
    %v4614 = vand.u32 %v165, 4294901760
    %v4615 = vsub.f32 %v165, %v4614
    %v4616 = vand.u32 %v4615, 4294901760
    %v4617 = vsub.f32 %v4615, %v4616
    %v4618 = vand.u32 %v4617, 4294901760
    %4619 = vmatprep.mubr.f32.mxu0 %v4618
    %v4620 = vand.u32 %v164, 4294901760
    %v4621 = vsub.f32 %v164, %v4620
    %v4622 = vand.u32 %v4621, 4294901760
    %v4623 = vsub.f32 %v4621, %v4622
    %v4624 = vand.u32 %v4623, 4294901760
    %4625 = vmatmul.mubr.f32.gmra.mxu0 %v4624
    %v4626 = vpop.f32.mrf.mxu0
    %v4627 = vadd.f32 %v4474, %v4626
    %v4628 = vpop.f32.mrf.mxu0
    %v4629 = vadd.f32 %v4476, %v4628
    %v4630 = vand.u32 %v169, 4294901760
    %v4631 = vsub.f32 %v169, %v4630
    %v4632 = vand.u32 %v4631, 4294901760
    %v4633 = vsub.f32 %v4631, %v4632
    %v4634 = vand.u32 %v4633, 4294901760
    %4635 = vmatprep.mubr.f32.mxu0 %v4634
    %v4636 = vand.u32 %v168, 4294901760
    %v4637 = vsub.f32 %v168, %v4636
    %v4638 = vand.u32 %v4637, 4294901760
    %v4639 = vsub.f32 %v4637, %v4638
    %v4640 = vand.u32 %v4639, 4294901760
    %4641 = vmatmul.mubr.f32.gmra.mxu0 %v4640
    %v4642 = vpop.f32.mrf.mxu0
    %v4643 = vadd.f32 %v4482, %v4642
    %v4644 = vpop.f32.mrf.mxu0
    %v4645 = vadd.f32 %v4484, %v4644
    %4646 = vdwg.mxu0
    %v4647 = vand.u32 %v361, 4294901760
    %v4648 = vsub.f32 %v361, %v4647
    %v4649 = vand.u32 %v4648, 4294901760
    %v4650 = vsub.f32 %v4648, %v4649
    %v4651 = vand.u32 %v4650, 4294901760
    %4652 = vmatprep.subr.mxu0 %v4651
    %v4653 = vand.u32 %v360, 4294901760
    %v4654 = vsub.f32 %v360, %v4653
    %v4655 = vand.u32 %v4654, 4294901760
    %v4656 = vsub.f32 %v4654, %v4655
    %v4657 = vand.u32 %v4656, 4294901760
    %4658 = vmatpush1.msra.mxu0 %v4657
    %v4659 = vand.u32 %v357, 4294901760
    %v4660 = vsub.f32 %v357, %v4659
    %v4661 = vand.u32 %v4660, 4294901760
    %v4662 = vsub.f32 %v4660, %v4661
    %v4663 = vand.u32 %v4662, 4294901760
    %4664 = vmatprep.subr.mxu0 %v4663
    %v4665 = vand.u32 %v356, 4294901760
    %v4666 = vsub.f32 %v356, %v4665
    %v4667 = vand.u32 %v4666, 4294901760
    %v4668 = vsub.f32 %v4666, %v4667
    %v4669 = vand.u32 %v4668, 4294901760
    %4670 = vmatpush1.msra.mxu0 %v4669
    %v4671 = vand.u32 %v353, 4294901760
    %v4672 = vsub.f32 %v353, %v4671
    %v4673 = vand.u32 %v4672, 4294901760
    %v4674 = vsub.f32 %v4672, %v4673
    %v4675 = vand.u32 %v4674, 4294901760
    %4676 = vmatprep.subr.mxu0 %v4675
    %v4677 = vand.u32 %v352, 4294901760
    %v4678 = vsub.f32 %v352, %v4677
    %v4679 = vand.u32 %v4678, 4294901760
    %v4680 = vsub.f32 %v4678, %v4679
    %v4681 = vand.u32 %v4680, 4294901760
    %4682 = vmatpush1.msra.mxu0 %v4681
    %v4683 = vand.u32 %v349, 4294901760
    %v4684 = vsub.f32 %v349, %v4683
    %v4685 = vand.u32 %v4684, 4294901760
    %v4686 = vsub.f32 %v4684, %v4685
    %v4687 = vand.u32 %v4686, 4294901760
    %4688 = vmatprep.subr.mxu0 %v4687
    %v4689 = vand.u32 %v348, 4294901760
    %v4690 = vsub.f32 %v348, %v4689
    %v4691 = vand.u32 %v4690, 4294901760
    %v4692 = vsub.f32 %v4690, %v4691
    %v4693 = vand.u32 %v4692, 4294901760
    %4694 = vmatpush1.msra.mxu0 %v4693
    %v4695 = vand.u32 %v345, 4294901760
    %v4696 = vsub.f32 %v345, %v4695
    %v4697 = vand.u32 %v4696, 4294901760
    %v4698 = vsub.f32 %v4696, %v4697
    %v4699 = vand.u32 %v4698, 4294901760
    %4700 = vmatprep.subr.mxu0 %v4699
    %v4701 = vand.u32 %v344, 4294901760
    %v4702 = vsub.f32 %v344, %v4701
    %v4703 = vand.u32 %v4702, 4294901760
    %v4704 = vsub.f32 %v4702, %v4703
    %v4705 = vand.u32 %v4704, 4294901760
    %4706 = vmatpush1.msra.mxu0 %v4705
    %v4707 = vand.u32 %v341, 4294901760
    %v4708 = vsub.f32 %v341, %v4707
    %v4709 = vand.u32 %v4708, 4294901760
    %v4710 = vsub.f32 %v4708, %v4709
    %v4711 = vand.u32 %v4710, 4294901760
    %4712 = vmatprep.subr.mxu0 %v4711
    %v4713 = vand.u32 %v340, 4294901760
    %v4714 = vsub.f32 %v340, %v4713
    %v4715 = vand.u32 %v4714, 4294901760
    %v4716 = vsub.f32 %v4714, %v4715
    %v4717 = vand.u32 %v4716, 4294901760
    %4718 = vmatpush1.msra.mxu0 %v4717
    %v4719 = vand.u32 %v337, 4294901760
    %v4720 = vsub.f32 %v337, %v4719
    %v4721 = vand.u32 %v4720, 4294901760
    %v4722 = vsub.f32 %v4720, %v4721
    %v4723 = vand.u32 %v4722, 4294901760
    %4724 = vmatprep.subr.mxu0 %v4723
    %v4725 = vand.u32 %v336, 4294901760
    %v4726 = vsub.f32 %v336, %v4725
    %v4727 = vand.u32 %v4726, 4294901760
    %v4728 = vsub.f32 %v4726, %v4727
    %v4729 = vand.u32 %v4728, 4294901760
    %4730 = vmatpush1.msra.mxu0 %v4729
    %v4731 = vand.u32 %v333, 4294901760
    %v4732 = vsub.f32 %v333, %v4731
    %v4733 = vand.u32 %v4732, 4294901760
    %v4734 = vsub.f32 %v4732, %v4733
    %v4735 = vand.u32 %v4734, 4294901760
    %4736 = vmatprep.subr.mxu0 %v4735
    %v4737 = vand.u32 %v332, 4294901760
    %v4738 = vsub.f32 %v332, %v4737
    %v4739 = vand.u32 %v4738, 4294901760
    %v4740 = vsub.f32 %v4738, %v4739
    %v4741 = vand.u32 %v4740, 4294901760
    %4742 = vmatpush1.msra.mxu0 %v4741
    %v4743 = vand.u32 %v329, 4294901760
    %v4744 = vsub.f32 %v329, %v4743
    %v4745 = vand.u32 %v4744, 4294901760
    %v4746 = vsub.f32 %v4744, %v4745
    %v4747 = vand.u32 %v4746, 4294901760
    %4748 = vmatprep.subr.mxu0 %v4747
    %v4749 = vand.u32 %v328, 4294901760
    %v4750 = vsub.f32 %v328, %v4749
    %v4751 = vand.u32 %v4750, 4294901760
    %v4752 = vsub.f32 %v4750, %v4751
    %v4753 = vand.u32 %v4752, 4294901760
    %4754 = vmatpush1.msra.mxu0 %v4753
    %v4755 = vand.u32 %v325, 4294901760
    %v4756 = vsub.f32 %v325, %v4755
    %v4757 = vand.u32 %v4756, 4294901760
    %v4758 = vsub.f32 %v4756, %v4757
    %v4759 = vand.u32 %v4758, 4294901760
    %4760 = vmatprep.subr.mxu0 %v4759
    %v4761 = vand.u32 %v324, 4294901760
    %v4762 = vsub.f32 %v324, %v4761
    %v4763 = vand.u32 %v4762, 4294901760
    %v4764 = vsub.f32 %v4762, %v4763
    %v4765 = vand.u32 %v4764, 4294901760
    %4766 = vmatpush1.msra.mxu0 %v4765
    %v4767 = vand.u32 %v321, 4294901760
    %v4768 = vsub.f32 %v321, %v4767
    %v4769 = vand.u32 %v4768, 4294901760
    %v4770 = vsub.f32 %v4768, %v4769
    %v4771 = vand.u32 %v4770, 4294901760
    %4772 = vmatprep.subr.mxu0 %v4771
    %v4773 = vand.u32 %v320, 4294901760
    %v4774 = vsub.f32 %v320, %v4773
    %v4775 = vand.u32 %v4774, 4294901760
    %v4776 = vsub.f32 %v4774, %v4775
    %v4777 = vand.u32 %v4776, 4294901760
    %4778 = vmatpush1.msra.mxu0 %v4777
    %v4779 = vand.u32 %v317, 4294901760
    %v4780 = vsub.f32 %v317, %v4779
    %v4781 = vand.u32 %v4780, 4294901760
    %v4782 = vsub.f32 %v4780, %v4781
    %v4783 = vand.u32 %v4782, 4294901760
    %4784 = vmatprep.subr.mxu0 %v4783
    %v4785 = vand.u32 %v316, 4294901760
    %v4786 = vsub.f32 %v316, %v4785
    %v4787 = vand.u32 %v4786, 4294901760
    %v4788 = vsub.f32 %v4786, %v4787
    %v4789 = vand.u32 %v4788, 4294901760
    %4790 = vmatpush1.msra.mxu0 %v4789
    %v4791 = vand.u32 %v313, 4294901760
    %v4792 = vsub.f32 %v313, %v4791
    %v4793 = vand.u32 %v4792, 4294901760
    %v4794 = vsub.f32 %v4792, %v4793
    %v4795 = vand.u32 %v4794, 4294901760
    %4796 = vmatprep.subr.mxu0 %v4795
    %v4797 = vand.u32 %v312, 4294901760
    %v4798 = vsub.f32 %v312, %v4797
    %v4799 = vand.u32 %v4798, 4294901760
    %v4800 = vsub.f32 %v4798, %v4799
    %v4801 = vand.u32 %v4800, 4294901760
    %4802 = vmatpush1.msra.mxu0 %v4801
    %v4803 = vand.u32 %v309, 4294901760
    %v4804 = vsub.f32 %v309, %v4803
    %v4805 = vand.u32 %v4804, 4294901760
    %v4806 = vsub.f32 %v4804, %v4805
    %v4807 = vand.u32 %v4806, 4294901760
    %4808 = vmatprep.subr.mxu0 %v4807
    %v4809 = vand.u32 %v308, 4294901760
    %v4810 = vsub.f32 %v308, %v4809
    %v4811 = vand.u32 %v4810, 4294901760
    %v4812 = vsub.f32 %v4810, %v4811
    %v4813 = vand.u32 %v4812, 4294901760
    %4814 = vmatpush1.msra.mxu0 %v4813
    %v4815 = vand.u32 %v305, 4294901760
    %v4816 = vsub.f32 %v305, %v4815
    %v4817 = vand.u32 %v4816, 4294901760
    %v4818 = vsub.f32 %v4816, %v4817
    %v4819 = vand.u32 %v4818, 4294901760
    %4820 = vmatprep.subr.mxu0 %v4819
    %v4821 = vand.u32 %v304, 4294901760
    %v4822 = vsub.f32 %v304, %v4821
    %v4823 = vand.u32 %v4822, 4294901760
    %v4824 = vsub.f32 %v4822, %v4823
    %v4825 = vand.u32 %v4824, 4294901760
    %4826 = vmatpush1.msra.mxu0 %v4825
    %v4827 = vand.u32 %v301, 4294901760
    %v4828 = vsub.f32 %v301, %v4827
    %v4829 = vand.u32 %v4828, 4294901760
    %v4830 = vsub.f32 %v4828, %v4829
    %v4831 = vand.u32 %v4830, 4294901760
    %4832 = vmatprep.subr.mxu0 %v4831
    %v4833 = vand.u32 %v300, 4294901760
    %v4834 = vsub.f32 %v300, %v4833
    %v4835 = vand.u32 %v4834, 4294901760
    %v4836 = vsub.f32 %v4834, %v4835
    %v4837 = vand.u32 %v4836, 4294901760
    %4838 = vmatpush1.msra.mxu0 %v4837
    %v4839 = vand.u32 %v425, 4294901760
    %v4840 = vsub.f32 %v425, %v4839
    %v4841 = vand.u32 %v4840, 4294901760
    %v4842 = vsub.f32 %v4840, %v4841
    %v4843 = vand.u32 %v4842, 4294901760
    %4844 = vmatprep.subr.mxu0 %v4843
    %v4845 = vand.u32 %v424, 4294901760
    %v4846 = vsub.f32 %v424, %v4845
    %v4847 = vand.u32 %v4846, 4294901760
    %v4848 = vsub.f32 %v4846, %v4847
    %v4849 = vand.u32 %v4848, 4294901760
    %4850 = vmatpush2.msra.mxu0 %v4849
    %v4851 = vand.u32 %v421, 4294901760
    %v4852 = vsub.f32 %v421, %v4851
    %v4853 = vand.u32 %v4852, 4294901760
    %v4854 = vsub.f32 %v4852, %v4853
    %v4855 = vand.u32 %v4854, 4294901760
    %4856 = vmatprep.subr.mxu0 %v4855
    %v4857 = vand.u32 %v420, 4294901760
    %v4858 = vsub.f32 %v420, %v4857
    %v4859 = vand.u32 %v4858, 4294901760
    %v4860 = vsub.f32 %v4858, %v4859
    %v4861 = vand.u32 %v4860, 4294901760
    %4862 = vmatpush2.msra.mxu0 %v4861
    %v4863 = vand.u32 %v417, 4294901760
    %v4864 = vsub.f32 %v417, %v4863
    %v4865 = vand.u32 %v4864, 4294901760
    %v4866 = vsub.f32 %v4864, %v4865
    %v4867 = vand.u32 %v4866, 4294901760
    %4868 = vmatprep.subr.mxu0 %v4867
    %v4869 = vand.u32 %v416, 4294901760
    %v4870 = vsub.f32 %v416, %v4869
    %v4871 = vand.u32 %v4870, 4294901760
    %v4872 = vsub.f32 %v4870, %v4871
    %v4873 = vand.u32 %v4872, 4294901760
    %4874 = vmatpush2.msra.mxu0 %v4873
    %v4875 = vand.u32 %v413, 4294901760
    %v4876 = vsub.f32 %v413, %v4875
    %v4877 = vand.u32 %v4876, 4294901760
    %v4878 = vsub.f32 %v4876, %v4877
    %v4879 = vand.u32 %v4878, 4294901760
    %4880 = vmatprep.subr.mxu0 %v4879
    %v4881 = vand.u32 %v412, 4294901760
    %v4882 = vsub.f32 %v412, %v4881
    %v4883 = vand.u32 %v4882, 4294901760
    %v4884 = vsub.f32 %v4882, %v4883
    %v4885 = vand.u32 %v4884, 4294901760
    %4886 = vmatpush2.msra.mxu0 %v4885
    %v4887 = vand.u32 %v409, 4294901760
    %v4888 = vsub.f32 %v409, %v4887
    %v4889 = vand.u32 %v4888, 4294901760
    %v4890 = vsub.f32 %v4888, %v4889
    %v4891 = vand.u32 %v4890, 4294901760
    %4892 = vmatprep.subr.mxu0 %v4891
    %v4893 = vand.u32 %v408, 4294901760
    %v4894 = vsub.f32 %v408, %v4893
    %v4895 = vand.u32 %v4894, 4294901760
    %v4896 = vsub.f32 %v4894, %v4895
    %v4897 = vand.u32 %v4896, 4294901760
    %4898 = vmatpush2.msra.mxu0 %v4897
    %v4899 = vand.u32 %v405, 4294901760
    %v4900 = vsub.f32 %v405, %v4899
    %v4901 = vand.u32 %v4900, 4294901760
    %v4902 = vsub.f32 %v4900, %v4901
    %v4903 = vand.u32 %v4902, 4294901760
    %4904 = vmatprep.subr.mxu0 %v4903
    %v4905 = vand.u32 %v404, 4294901760
    %v4906 = vsub.f32 %v404, %v4905
    %v4907 = vand.u32 %v4906, 4294901760
    %v4908 = vsub.f32 %v4906, %v4907
    %v4909 = vand.u32 %v4908, 4294901760
    %4910 = vmatpush2.msra.mxu0 %v4909
    %v4911 = vand.u32 %v401, 4294901760
    %v4912 = vsub.f32 %v401, %v4911
    %v4913 = vand.u32 %v4912, 4294901760
    %v4914 = vsub.f32 %v4912, %v4913
    %v4915 = vand.u32 %v4914, 4294901760
    %4916 = vmatprep.subr.mxu0 %v4915
    %v4917 = vand.u32 %v400, 4294901760
    %v4918 = vsub.f32 %v400, %v4917
    %v4919 = vand.u32 %v4918, 4294901760
    %v4920 = vsub.f32 %v4918, %v4919
    %v4921 = vand.u32 %v4920, 4294901760
    %4922 = vmatpush2.msra.mxu0 %v4921
    %v4923 = vand.u32 %v397, 4294901760
    %v4924 = vsub.f32 %v397, %v4923
    %v4925 = vand.u32 %v4924, 4294901760
    %v4926 = vsub.f32 %v4924, %v4925
    %v4927 = vand.u32 %v4926, 4294901760
    %4928 = vmatprep.subr.mxu0 %v4927
    %v4929 = vand.u32 %v396, 4294901760
    %v4930 = vsub.f32 %v396, %v4929
    %v4931 = vand.u32 %v4930, 4294901760
    %v4932 = vsub.f32 %v4930, %v4931
    %v4933 = vand.u32 %v4932, 4294901760
    %4934 = vmatpush2.msra.mxu0 %v4933
    %v4935 = vand.u32 %v393, 4294901760
    %v4936 = vsub.f32 %v393, %v4935
    %v4937 = vand.u32 %v4936, 4294901760
    %v4938 = vsub.f32 %v4936, %v4937
    %v4939 = vand.u32 %v4938, 4294901760
    %4940 = vmatprep.subr.mxu0 %v4939
    %v4941 = vand.u32 %v392, 4294901760
    %v4942 = vsub.f32 %v392, %v4941
    %v4943 = vand.u32 %v4942, 4294901760
    %v4944 = vsub.f32 %v4942, %v4943
    %v4945 = vand.u32 %v4944, 4294901760
    %4946 = vmatpush2.msra.mxu0 %v4945
    %v4947 = vand.u32 %v389, 4294901760
    %v4948 = vsub.f32 %v389, %v4947
    %v4949 = vand.u32 %v4948, 4294901760
    %v4950 = vsub.f32 %v4948, %v4949
    %v4951 = vand.u32 %v4950, 4294901760
    %4952 = vmatprep.subr.mxu0 %v4951
    %v4953 = vand.u32 %v388, 4294901760
    %v4954 = vsub.f32 %v388, %v4953
    %v4955 = vand.u32 %v4954, 4294901760
    %v4956 = vsub.f32 %v4954, %v4955
    %v4957 = vand.u32 %v4956, 4294901760
    %4958 = vmatpush2.msra.mxu0 %v4957
    %v4959 = vand.u32 %v385, 4294901760
    %v4960 = vsub.f32 %v385, %v4959
    %v4961 = vand.u32 %v4960, 4294901760
    %v4962 = vsub.f32 %v4960, %v4961
    %v4963 = vand.u32 %v4962, 4294901760
    %4964 = vmatprep.subr.mxu0 %v4963
    %v4965 = vand.u32 %v384, 4294901760
    %v4966 = vsub.f32 %v384, %v4965
    %v4967 = vand.u32 %v4966, 4294901760
    %v4968 = vsub.f32 %v4966, %v4967
    %v4969 = vand.u32 %v4968, 4294901760
    %4970 = vmatpush2.msra.mxu0 %v4969
    %v4971 = vand.u32 %v381, 4294901760
    %v4972 = vsub.f32 %v381, %v4971
    %v4973 = vand.u32 %v4972, 4294901760
    %v4974 = vsub.f32 %v4972, %v4973
    %v4975 = vand.u32 %v4974, 4294901760
    %4976 = vmatprep.subr.mxu0 %v4975
    %v4977 = vand.u32 %v380, 4294901760
    %v4978 = vsub.f32 %v380, %v4977
    %v4979 = vand.u32 %v4978, 4294901760
    %v4980 = vsub.f32 %v4978, %v4979
    %v4981 = vand.u32 %v4980, 4294901760
    %4982 = vmatpush2.msra.mxu0 %v4981
    %v4983 = vand.u32 %v377, 4294901760
    %v4984 = vsub.f32 %v377, %v4983
    %v4985 = vand.u32 %v4984, 4294901760
    %v4986 = vsub.f32 %v4984, %v4985
    %v4987 = vand.u32 %v4986, 4294901760
    %4988 = vmatprep.subr.mxu0 %v4987
    %v4989 = vand.u32 %v376, 4294901760
    %v4990 = vsub.f32 %v376, %v4989
    %v4991 = vand.u32 %v4990, 4294901760
    %v4992 = vsub.f32 %v4990, %v4991
    %v4993 = vand.u32 %v4992, 4294901760
    %4994 = vmatpush2.msra.mxu0 %v4993
    %v4995 = vand.u32 %v373, 4294901760
    %v4996 = vsub.f32 %v373, %v4995
    %v4997 = vand.u32 %v4996, 4294901760
    %v4998 = vsub.f32 %v4996, %v4997
    %v4999 = vand.u32 %v4998, 4294901760
    %5000 = vmatprep.subr.mxu0 %v4999
    %v5001 = vand.u32 %v372, 4294901760
    %v5002 = vsub.f32 %v372, %v5001
    %v5003 = vand.u32 %v5002, 4294901760
    %v5004 = vsub.f32 %v5002, %v5003
    %v5005 = vand.u32 %v5004, 4294901760
    %5006 = vmatpush2.msra.mxu0 %v5005
    %v5007 = vand.u32 %v369, 4294901760
    %v5008 = vsub.f32 %v369, %v5007
    %v5009 = vand.u32 %v5008, 4294901760
    %v5010 = vsub.f32 %v5008, %v5009
    %v5011 = vand.u32 %v5010, 4294901760
    %5012 = vmatprep.subr.mxu0 %v5011
    %v5013 = vand.u32 %v368, 4294901760
    %v5014 = vsub.f32 %v368, %v5013
    %v5015 = vand.u32 %v5014, 4294901760
    %v5016 = vsub.f32 %v5014, %v5015
    %v5017 = vand.u32 %v5016, 4294901760
    %5018 = vmatpush2.msra.mxu0 %v5017
    %v5019 = vand.u32 %v365, 4294901760
    %v5020 = vsub.f32 %v365, %v5019
    %v5021 = vand.u32 %v5020, 4294901760
    %v5022 = vsub.f32 %v5020, %v5021
    %v5023 = vand.u32 %v5022, 4294901760
    %5024 = vmatprep.subr.mxu0 %v5023
    %v5025 = vand.u32 %v364, 4294901760
    %v5026 = vsub.f32 %v364, %v5025
    %v5027 = vand.u32 %v5026, 4294901760
    %v5028 = vsub.f32 %v5026, %v5027
    %v5029 = vand.u32 %v5028, 4294901760
    %5030 = vmatpush2.msra.mxu0 %v5029
    %v5031 = vand.u32 %v165, 4294901760
    %5032 = vmatprep.mubr.f32.mxu0 %v5031
    %v5033 = vand.u32 %v164, 4294901760
    %5034 = vmatmul.mubr.f32.gmra.mxu0 %v5033
    %v5035 = vpop.f32.mrf.mxu0
    %v5036 = vadd.f32 %v4627, %v5035
    %v5037 = vpop.f32.mrf.mxu0
    %v5038 = vadd.f32 %v4629, %v5037
    %v5039 = vand.u32 %v169, 4294901760
    %5040 = vmatprep.mubr.f32.mxu0 %v5039
    %v5041 = vand.u32 %v168, 4294901760
    %5042 = vmatmul.mubr.f32.gmra.mxu0 %v5041
    %v5043 = vpop.f32.mrf.mxu0
    %v5044 = vadd.f32 %v4643, %v5043
    %v5045 = vpop.f32.mrf.mxu0
    %v5046 = vadd.f32 %v4645, %v5045
    %5047 = vdwg.mxu0
    %v5048 = vand.u32 %v361, 4294901760
    %v5049 = vsub.f32 %v361, %v5048
    %5050 = vmatprep.subr.mxu0 %v5049
    %v5051 = vand.u32 %v360, 4294901760
    %v5052 = vsub.f32 %v360, %v5051
    %5053 = vmatpush1.msra.mxu0 %v5052
    %v5054 = vand.u32 %v357, 4294901760
    %v5055 = vsub.f32 %v357, %v5054
    %5056 = vmatprep.subr.mxu0 %v5055
    %v5057 = vand.u32 %v356, 4294901760
    %v5058 = vsub.f32 %v356, %v5057
    %5059 = vmatpush1.msra.mxu0 %v5058
    %v5060 = vand.u32 %v353, 4294901760
    %v5061 = vsub.f32 %v353, %v5060
    %5062 = vmatprep.subr.mxu0 %v5061
    %v5063 = vand.u32 %v352, 4294901760
    %v5064 = vsub.f32 %v352, %v5063
    %5065 = vmatpush1.msra.mxu0 %v5064
    %v5066 = vand.u32 %v349, 4294901760
    %v5067 = vsub.f32 %v349, %v5066
    %5068 = vmatprep.subr.mxu0 %v5067
    %v5069 = vand.u32 %v348, 4294901760
    %v5070 = vsub.f32 %v348, %v5069
    %5071 = vmatpush1.msra.mxu0 %v5070
    %v5072 = vand.u32 %v345, 4294901760
    %v5073 = vsub.f32 %v345, %v5072
    %5074 = vmatprep.subr.mxu0 %v5073
    %v5075 = vand.u32 %v344, 4294901760
    %v5076 = vsub.f32 %v344, %v5075
    %5077 = vmatpush1.msra.mxu0 %v5076
    %v5078 = vand.u32 %v341, 4294901760
    %v5079 = vsub.f32 %v341, %v5078
    %5080 = vmatprep.subr.mxu0 %v5079
    %v5081 = vand.u32 %v340, 4294901760
    %v5082 = vsub.f32 %v340, %v5081
    %5083 = vmatpush1.msra.mxu0 %v5082
    %v5084 = vand.u32 %v337, 4294901760
    %v5085 = vsub.f32 %v337, %v5084
    %5086 = vmatprep.subr.mxu0 %v5085
    %v5087 = vand.u32 %v336, 4294901760
    %v5088 = vsub.f32 %v336, %v5087
    %5089 = vmatpush1.msra.mxu0 %v5088
    %v5090 = vand.u32 %v333, 4294901760
    %v5091 = vsub.f32 %v333, %v5090
    %5092 = vmatprep.subr.mxu0 %v5091
    %v5093 = vand.u32 %v332, 4294901760
    %v5094 = vsub.f32 %v332, %v5093
    %5095 = vmatpush1.msra.mxu0 %v5094
    %v5096 = vand.u32 %v329, 4294901760
    %v5097 = vsub.f32 %v329, %v5096
    %5098 = vmatprep.subr.mxu0 %v5097
    %v5099 = vand.u32 %v328, 4294901760
    %v5100 = vsub.f32 %v328, %v5099
    %5101 = vmatpush1.msra.mxu0 %v5100
    %v5102 = vand.u32 %v325, 4294901760
    %v5103 = vsub.f32 %v325, %v5102
    %5104 = vmatprep.subr.mxu0 %v5103
    %v5105 = vand.u32 %v324, 4294901760
    %v5106 = vsub.f32 %v324, %v5105
    %5107 = vmatpush1.msra.mxu0 %v5106
    %v5108 = vand.u32 %v321, 4294901760
    %v5109 = vsub.f32 %v321, %v5108
    %5110 = vmatprep.subr.mxu0 %v5109
    %v5111 = vand.u32 %v320, 4294901760
    %v5112 = vsub.f32 %v320, %v5111
    %5113 = vmatpush1.msra.mxu0 %v5112
    %v5114 = vand.u32 %v317, 4294901760
    %v5115 = vsub.f32 %v317, %v5114
    %5116 = vmatprep.subr.mxu0 %v5115
    %v5117 = vand.u32 %v316, 4294901760
    %v5118 = vsub.f32 %v316, %v5117
    %5119 = vmatpush1.msra.mxu0 %v5118
    %v5120 = vand.u32 %v313, 4294901760
    %v5121 = vsub.f32 %v313, %v5120
    %5122 = vmatprep.subr.mxu0 %v5121
    %v5123 = vand.u32 %v312, 4294901760
    %v5124 = vsub.f32 %v312, %v5123
    %5125 = vmatpush1.msra.mxu0 %v5124
    %v5126 = vand.u32 %v309, 4294901760
    %v5127 = vsub.f32 %v309, %v5126
    %5128 = vmatprep.subr.mxu0 %v5127
    %v5129 = vand.u32 %v308, 4294901760
    %v5130 = vsub.f32 %v308, %v5129
    %5131 = vmatpush1.msra.mxu0 %v5130
    %v5132 = vand.u32 %v305, 4294901760
    %v5133 = vsub.f32 %v305, %v5132
    %5134 = vmatprep.subr.mxu0 %v5133
    %v5135 = vand.u32 %v304, 4294901760
    %v5136 = vsub.f32 %v304, %v5135
    %5137 = vmatpush1.msra.mxu0 %v5136
    %v5138 = vand.u32 %v301, 4294901760
    %v5139 = vsub.f32 %v301, %v5138
    %5140 = vmatprep.subr.mxu0 %v5139
    %v5141 = vand.u32 %v300, 4294901760
    %v5142 = vsub.f32 %v300, %v5141
    %5143 = vmatpush1.msra.mxu0 %v5142
    %v5144 = vand.u32 %v425, 4294901760
    %v5145 = vsub.f32 %v425, %v5144
    %5146 = vmatprep.subr.mxu0 %v5145
    %v5147 = vand.u32 %v424, 4294901760
    %v5148 = vsub.f32 %v424, %v5147
    %5149 = vmatpush2.msra.mxu0 %v5148
    %v5150 = vand.u32 %v421, 4294901760
    %v5151 = vsub.f32 %v421, %v5150
    %5152 = vmatprep.subr.mxu0 %v5151
    %v5153 = vand.u32 %v420, 4294901760
    %v5154 = vsub.f32 %v420, %v5153
    %5155 = vmatpush2.msra.mxu0 %v5154
    %v5156 = vand.u32 %v417, 4294901760
    %v5157 = vsub.f32 %v417, %v5156
    %5158 = vmatprep.subr.mxu0 %v5157
    %v5159 = vand.u32 %v416, 4294901760
    %v5160 = vsub.f32 %v416, %v5159
    %5161 = vmatpush2.msra.mxu0 %v5160
    %v5162 = vand.u32 %v413, 4294901760
    %v5163 = vsub.f32 %v413, %v5162
    %5164 = vmatprep.subr.mxu0 %v5163
    %v5165 = vand.u32 %v412, 4294901760
    %v5166 = vsub.f32 %v412, %v5165
    %5167 = vmatpush2.msra.mxu0 %v5166
    %v5168 = vand.u32 %v409, 4294901760
    %v5169 = vsub.f32 %v409, %v5168
    %5170 = vmatprep.subr.mxu0 %v5169
    %v5171 = vand.u32 %v408, 4294901760
    %v5172 = vsub.f32 %v408, %v5171
    %5173 = vmatpush2.msra.mxu0 %v5172
    %v5174 = vand.u32 %v405, 4294901760
    %v5175 = vsub.f32 %v405, %v5174
    %5176 = vmatprep.subr.mxu0 %v5175
    %v5177 = vand.u32 %v404, 4294901760
    %v5178 = vsub.f32 %v404, %v5177
    %5179 = vmatpush2.msra.mxu0 %v5178
    %v5180 = vand.u32 %v401, 4294901760
    %v5181 = vsub.f32 %v401, %v5180
    %5182 = vmatprep.subr.mxu0 %v5181
    %v5183 = vand.u32 %v400, 4294901760
    %v5184 = vsub.f32 %v400, %v5183
    %5185 = vmatpush2.msra.mxu0 %v5184
    %v5186 = vand.u32 %v397, 4294901760
    %v5187 = vsub.f32 %v397, %v5186
    %5188 = vmatprep.subr.mxu0 %v5187
    %v5189 = vand.u32 %v396, 4294901760
    %v5190 = vsub.f32 %v396, %v5189
    %5191 = vmatpush2.msra.mxu0 %v5190
    %v5192 = vand.u32 %v393, 4294901760
    %v5193 = vsub.f32 %v393, %v5192
    %5194 = vmatprep.subr.mxu0 %v5193
    %v5195 = vand.u32 %v392, 4294901760
    %v5196 = vsub.f32 %v392, %v5195
    %5197 = vmatpush2.msra.mxu0 %v5196
    %v5198 = vand.u32 %v389, 4294901760
    %v5199 = vsub.f32 %v389, %v5198
    %5200 = vmatprep.subr.mxu0 %v5199
    %v5201 = vand.u32 %v388, 4294901760
    %v5202 = vsub.f32 %v388, %v5201
    %5203 = vmatpush2.msra.mxu0 %v5202
    %v5204 = vand.u32 %v385, 4294901760
    %v5205 = vsub.f32 %v385, %v5204
    %5206 = vmatprep.subr.mxu0 %v5205
    %v5207 = vand.u32 %v384, 4294901760
    %v5208 = vsub.f32 %v384, %v5207
    %5209 = vmatpush2.msra.mxu0 %v5208
    %v5210 = vand.u32 %v381, 4294901760
    %v5211 = vsub.f32 %v381, %v5210
    %5212 = vmatprep.subr.mxu0 %v5211
    %v5213 = vand.u32 %v380, 4294901760
    %v5214 = vsub.f32 %v380, %v5213
    %5215 = vmatpush2.msra.mxu0 %v5214
    %v5216 = vand.u32 %v377, 4294901760
    %v5217 = vsub.f32 %v377, %v5216
    %5218 = vmatprep.subr.mxu0 %v5217
    %v5219 = vand.u32 %v376, 4294901760
    %v5220 = vsub.f32 %v376, %v5219
    %5221 = vmatpush2.msra.mxu0 %v5220
    %v5222 = vand.u32 %v373, 4294901760
    %v5223 = vsub.f32 %v373, %v5222
    %5224 = vmatprep.subr.mxu0 %v5223
    %v5225 = vand.u32 %v372, 4294901760
    %v5226 = vsub.f32 %v372, %v5225
    %5227 = vmatpush2.msra.mxu0 %v5226
    %v5228 = vand.u32 %v369, 4294901760
    %v5229 = vsub.f32 %v369, %v5228
    %5230 = vmatprep.subr.mxu0 %v5229
    %v5231 = vand.u32 %v368, 4294901760
    %v5232 = vsub.f32 %v368, %v5231
    %5233 = vmatpush2.msra.mxu0 %v5232
    %v5234 = vand.u32 %v365, 4294901760
    %v5235 = vsub.f32 %v365, %v5234
    %5236 = vmatprep.subr.mxu0 %v5235
    %v5237 = vand.u32 %v364, 4294901760
    %v5238 = vsub.f32 %v364, %v5237
    %5239 = vmatpush2.msra.mxu0 %v5238
    %v5240 = vand.u32 %v165, 4294901760
    %v5241 = vsub.f32 %v165, %v5240
    %5242 = vmatprep.mubr.f32.mxu0 %v5241
    %v5243 = vand.u32 %v164, 4294901760
    %v5244 = vsub.f32 %v164, %v5243
    %5245 = vmatmul.mubr.f32.gmra.mxu0 %v5244
    %v5246 = vpop.f32.mrf.mxu0
    %v5247 = vadd.f32 %v5036, %v5246
    %v5248 = vpop.f32.mrf.mxu0
    %v5249 = vadd.f32 %v5038, %v5248
    %v5250 = vand.u32 %v169, 4294901760
    %v5251 = vsub.f32 %v169, %v5250
    %5252 = vmatprep.mubr.f32.mxu0 %v5251
    %v5253 = vand.u32 %v168, 4294901760
    %v5254 = vsub.f32 %v168, %v5253
    %5255 = vmatmul.mubr.f32.gmra.mxu0 %v5254
    %v5256 = vpop.f32.mrf.mxu0
    %v5257 = vadd.f32 %v5044, %v5256
    %v5258 = vpop.f32.mrf.mxu0
    %v5259 = vadd.f32 %v5046, %v5258
    %5260 = vdwg.mxu0
    %v5261 = vand.u32 %v361, 4294901760
    %5262 = vmatprep.subr.mxu0 %v5261
    %v5263 = vand.u32 %v360, 4294901760
    %5264 = vmatpush1.msra.mxu0 %v5263
    %v5265 = vand.u32 %v357, 4294901760
    %5266 = vmatprep.subr.mxu0 %v5265
    %v5267 = vand.u32 %v356, 4294901760
    %5268 = vmatpush1.msra.mxu0 %v5267
    %v5269 = vand.u32 %v353, 4294901760
    %5270 = vmatprep.subr.mxu0 %v5269
    %v5271 = vand.u32 %v352, 4294901760
    %5272 = vmatpush1.msra.mxu0 %v5271
    %v5273 = vand.u32 %v349, 4294901760
    %5274 = vmatprep.subr.mxu0 %v5273
    %v5275 = vand.u32 %v348, 4294901760
    %5276 = vmatpush1.msra.mxu0 %v5275
    %v5277 = vand.u32 %v345, 4294901760
    %5278 = vmatprep.subr.mxu0 %v5277
    %v5279 = vand.u32 %v344, 4294901760
    %5280 = vmatpush1.msra.mxu0 %v5279
    %v5281 = vand.u32 %v341, 4294901760
    %5282 = vmatprep.subr.mxu0 %v5281
    %v5283 = vand.u32 %v340, 4294901760
    %5284 = vmatpush1.msra.mxu0 %v5283
    %v5285 = vand.u32 %v337, 4294901760
    %5286 = vmatprep.subr.mxu0 %v5285
    %v5287 = vand.u32 %v336, 4294901760
    %5288 = vmatpush1.msra.mxu0 %v5287
    %v5289 = vand.u32 %v333, 4294901760
    %5290 = vmatprep.subr.mxu0 %v5289
    %v5291 = vand.u32 %v332, 4294901760
    %5292 = vmatpush1.msra.mxu0 %v5291
    %v5293 = vand.u32 %v329, 4294901760
    %5294 = vmatprep.subr.mxu0 %v5293
    %v5295 = vand.u32 %v328, 4294901760
    %5296 = vmatpush1.msra.mxu0 %v5295
    %v5297 = vand.u32 %v325, 4294901760
    %5298 = vmatprep.subr.mxu0 %v5297
    %v5299 = vand.u32 %v324, 4294901760
    %5300 = vmatpush1.msra.mxu0 %v5299
    %v5301 = vand.u32 %v321, 4294901760
    %5302 = vmatprep.subr.mxu0 %v5301
    %v5303 = vand.u32 %v320, 4294901760
    %5304 = vmatpush1.msra.mxu0 %v5303
    %v5305 = vand.u32 %v317, 4294901760
    %5306 = vmatprep.subr.mxu0 %v5305
    %v5307 = vand.u32 %v316, 4294901760
    %5308 = vmatpush1.msra.mxu0 %v5307
    %v5309 = vand.u32 %v313, 4294901760
    %5310 = vmatprep.subr.mxu0 %v5309
    %v5311 = vand.u32 %v312, 4294901760
    %5312 = vmatpush1.msra.mxu0 %v5311
    %v5313 = vand.u32 %v309, 4294901760
    %5314 = vmatprep.subr.mxu0 %v5313
    %v5315 = vand.u32 %v308, 4294901760
    %5316 = vmatpush1.msra.mxu0 %v5315
    %v5317 = vand.u32 %v305, 4294901760
    %5318 = vmatprep.subr.mxu0 %v5317
    %v5319 = vand.u32 %v304, 4294901760
    %5320 = vmatpush1.msra.mxu0 %v5319
    %v5321 = vand.u32 %v301, 4294901760
    %5322 = vmatprep.subr.mxu0 %v5321
    %v5323 = vand.u32 %v300, 4294901760
    %5324 = vmatpush1.msra.mxu0 %v5323
    %v5325 = vand.u32 %v425, 4294901760
    %5326 = vmatprep.subr.mxu0 %v5325
    %v5327 = vand.u32 %v424, 4294901760
    %5328 = vmatpush2.msra.mxu0 %v5327
    %v5329 = vand.u32 %v421, 4294901760
    %5330 = vmatprep.subr.mxu0 %v5329
    %v5331 = vand.u32 %v420, 4294901760
    %5332 = vmatpush2.msra.mxu0 %v5331
    %v5333 = vand.u32 %v417, 4294901760
    %5334 = vmatprep.subr.mxu0 %v5333
    %v5335 = vand.u32 %v416, 4294901760
    %5336 = vmatpush2.msra.mxu0 %v5335
    %v5337 = vand.u32 %v413, 4294901760
    %5338 = vmatprep.subr.mxu0 %v5337
    %v5339 = vand.u32 %v412, 4294901760
    %5340 = vmatpush2.msra.mxu0 %v5339
    %v5341 = vand.u32 %v409, 4294901760
    %5342 = vmatprep.subr.mxu0 %v5341
    %v5343 = vand.u32 %v408, 4294901760
    %5344 = vmatpush2.msra.mxu0 %v5343
    %v5345 = vand.u32 %v405, 4294901760
    %5346 = vmatprep.subr.mxu0 %v5345
    %v5347 = vand.u32 %v404, 4294901760
    %5348 = vmatpush2.msra.mxu0 %v5347
    %v5349 = vand.u32 %v401, 4294901760
    %5350 = vmatprep.subr.mxu0 %v5349
    %v5351 = vand.u32 %v400, 4294901760
    %5352 = vmatpush2.msra.mxu0 %v5351
    %v5353 = vand.u32 %v397, 4294901760
    %5354 = vmatprep.subr.mxu0 %v5353
    %v5355 = vand.u32 %v396, 4294901760
    %5356 = vmatpush2.msra.mxu0 %v5355
    %v5357 = vand.u32 %v393, 4294901760
    %5358 = vmatprep.subr.mxu0 %v5357
    %v5359 = vand.u32 %v392, 4294901760
    %5360 = vmatpush2.msra.mxu0 %v5359
    %v5361 = vand.u32 %v389, 4294901760
    %5362 = vmatprep.subr.mxu0 %v5361
    %v5363 = vand.u32 %v388, 4294901760
    %5364 = vmatpush2.msra.mxu0 %v5363
    %v5365 = vand.u32 %v385, 4294901760
    %5366 = vmatprep.subr.mxu0 %v5365
    %v5367 = vand.u32 %v384, 4294901760
    %5368 = vmatpush2.msra.mxu0 %v5367
    %v5369 = vand.u32 %v381, 4294901760
    %5370 = vmatprep.subr.mxu0 %v5369
    %v5371 = vand.u32 %v380, 4294901760
    %5372 = vmatpush2.msra.mxu0 %v5371
    %v5373 = vand.u32 %v377, 4294901760
    %5374 = vmatprep.subr.mxu0 %v5373
    %v5375 = vand.u32 %v376, 4294901760
    %5376 = vmatpush2.msra.mxu0 %v5375
    %v5377 = vand.u32 %v373, 4294901760
    %5378 = vmatprep.subr.mxu0 %v5377
    %v5379 = vand.u32 %v372, 4294901760
    %5380 = vmatpush2.msra.mxu0 %v5379
    %v5381 = vand.u32 %v369, 4294901760
    %5382 = vmatprep.subr.mxu0 %v5381
    %v5383 = vand.u32 %v368, 4294901760
    %5384 = vmatpush2.msra.mxu0 %v5383
    %v5385 = vand.u32 %v365, 4294901760
    %5386 = vmatprep.subr.mxu0 %v5385
    %v5387 = vand.u32 %v364, 4294901760
    %5388 = vmatpush2.msra.mxu0 %v5387
    %v5389 = vand.u32 %v165, 4294901760
    %v5390 = vsub.f32 %v165, %v5389
    %v5391 = vand.u32 %v5390, 4294901760
    %5392 = vmatprep.mubr.f32.mxu0 %v5391
    %v5393 = vand.u32 %v164, 4294901760
    %v5394 = vsub.f32 %v164, %v5393
    %v5395 = vand.u32 %v5394, 4294901760
    %5396 = vmatmul.mubr.f32.gmra.mxu0 %v5395
    %v5397 = vpop.f32.mrf.mxu0
    %v5398 = vadd.f32 %v5247, %v5397
    %v5399 = vpop.f32.mrf.mxu0
    %v5400 = vadd.f32 %v5249, %v5399
    %v5401 = vand.u32 %v169, 4294901760
    %v5402 = vsub.f32 %v169, %v5401
    %v5403 = vand.u32 %v5402, 4294901760
    %5404 = vmatprep.mubr.f32.mxu0 %v5403
    %v5405 = vand.u32 %v168, 4294901760
    %v5406 = vsub.f32 %v168, %v5405
    %v5407 = vand.u32 %v5406, 4294901760
    %5408 = vmatmul.mubr.f32.gmra.mxu0 %v5407
    %v5409 = vpop.f32.mrf.mxu0
    %v5410 = vadd.f32 %v5257, %v5409
    %v5411 = vpop.f32.mrf.mxu0
    %v5412 = vadd.f32 %v5259, %v5411
    %5413 = vdwg.mxu0
    %v5414 = vand.u32 %v361, 4294901760
    %v5415 = vsub.f32 %v361, %v5414
    %v5416 = vand.u32 %v5415, 4294901760
    %5417 = vmatprep.subr.mxu0 %v5416
    %v5418 = vand.u32 %v360, 4294901760
    %v5419 = vsub.f32 %v360, %v5418
    %v5420 = vand.u32 %v5419, 4294901760
    %5421 = vmatpush1.msra.mxu0 %v5420
    %v5422 = vand.u32 %v357, 4294901760
    %v5423 = vsub.f32 %v357, %v5422
    %v5424 = vand.u32 %v5423, 4294901760
    %5425 = vmatprep.subr.mxu0 %v5424
    %v5426 = vand.u32 %v356, 4294901760
    %v5427 = vsub.f32 %v356, %v5426
    %v5428 = vand.u32 %v5427, 4294901760
    %5429 = vmatpush1.msra.mxu0 %v5428
    %v5430 = vand.u32 %v353, 4294901760
    %v5431 = vsub.f32 %v353, %v5430
    %v5432 = vand.u32 %v5431, 4294901760
    %5433 = vmatprep.subr.mxu0 %v5432
    %v5434 = vand.u32 %v352, 4294901760
    %v5435 = vsub.f32 %v352, %v5434
    %v5436 = vand.u32 %v5435, 4294901760
    %5437 = vmatpush1.msra.mxu0 %v5436
    %v5438 = vand.u32 %v349, 4294901760
    %v5439 = vsub.f32 %v349, %v5438
    %v5440 = vand.u32 %v5439, 4294901760
    %5441 = vmatprep.subr.mxu0 %v5440
    %v5442 = vand.u32 %v348, 4294901760
    %v5443 = vsub.f32 %v348, %v5442
    %v5444 = vand.u32 %v5443, 4294901760
    %5445 = vmatpush1.msra.mxu0 %v5444
    %v5446 = vand.u32 %v345, 4294901760
    %v5447 = vsub.f32 %v345, %v5446
    %v5448 = vand.u32 %v5447, 4294901760
    %5449 = vmatprep.subr.mxu0 %v5448
    %v5450 = vand.u32 %v344, 4294901760
    %v5451 = vsub.f32 %v344, %v5450
    %v5452 = vand.u32 %v5451, 4294901760
    %5453 = vmatpush1.msra.mxu0 %v5452
    %v5454 = vand.u32 %v341, 4294901760
    %v5455 = vsub.f32 %v341, %v5454
    %v5456 = vand.u32 %v5455, 4294901760
    %5457 = vmatprep.subr.mxu0 %v5456
    %v5458 = vand.u32 %v340, 4294901760
    %v5459 = vsub.f32 %v340, %v5458
    %v5460 = vand.u32 %v5459, 4294901760
    %5461 = vmatpush1.msra.mxu0 %v5460
    %v5462 = vand.u32 %v337, 4294901760
    %v5463 = vsub.f32 %v337, %v5462
    %v5464 = vand.u32 %v5463, 4294901760
    %5465 = vmatprep.subr.mxu0 %v5464
    %v5466 = vand.u32 %v336, 4294901760
    %v5467 = vsub.f32 %v336, %v5466
    %v5468 = vand.u32 %v5467, 4294901760
    %5469 = vmatpush1.msra.mxu0 %v5468
    %v5470 = vand.u32 %v333, 4294901760
    %v5471 = vsub.f32 %v333, %v5470
    %v5472 = vand.u32 %v5471, 4294901760
    %5473 = vmatprep.subr.mxu0 %v5472
    %v5474 = vand.u32 %v332, 4294901760
    %v5475 = vsub.f32 %v332, %v5474
    %v5476 = vand.u32 %v5475, 4294901760
    %5477 = vmatpush1.msra.mxu0 %v5476
    %v5478 = vand.u32 %v329, 4294901760
    %v5479 = vsub.f32 %v329, %v5478
    %v5480 = vand.u32 %v5479, 4294901760
    %5481 = vmatprep.subr.mxu0 %v5480
    %v5482 = vand.u32 %v328, 4294901760
    %v5483 = vsub.f32 %v328, %v5482
    %v5484 = vand.u32 %v5483, 4294901760
    %5485 = vmatpush1.msra.mxu0 %v5484
    %v5486 = vand.u32 %v325, 4294901760
    %v5487 = vsub.f32 %v325, %v5486
    %v5488 = vand.u32 %v5487, 4294901760
    %5489 = vmatprep.subr.mxu0 %v5488
    %v5490 = vand.u32 %v324, 4294901760
    %v5491 = vsub.f32 %v324, %v5490
    %v5492 = vand.u32 %v5491, 4294901760
    %5493 = vmatpush1.msra.mxu0 %v5492
    %v5494 = vand.u32 %v321, 4294901760
    %v5495 = vsub.f32 %v321, %v5494
    %v5496 = vand.u32 %v5495, 4294901760
    %5497 = vmatprep.subr.mxu0 %v5496
    %v5498 = vand.u32 %v320, 4294901760
    %v5499 = vsub.f32 %v320, %v5498
    %v5500 = vand.u32 %v5499, 4294901760
    %5501 = vmatpush1.msra.mxu0 %v5500
    %v5502 = vand.u32 %v317, 4294901760
    %v5503 = vsub.f32 %v317, %v5502
    %v5504 = vand.u32 %v5503, 4294901760
    %5505 = vmatprep.subr.mxu0 %v5504
    %v5506 = vand.u32 %v316, 4294901760
    %v5507 = vsub.f32 %v316, %v5506
    %v5508 = vand.u32 %v5507, 4294901760
    %5509 = vmatpush1.msra.mxu0 %v5508
    %v5510 = vand.u32 %v313, 4294901760
    %v5511 = vsub.f32 %v313, %v5510
    %v5512 = vand.u32 %v5511, 4294901760
    %5513 = vmatprep.subr.mxu0 %v5512
    %v5514 = vand.u32 %v312, 4294901760
    %v5515 = vsub.f32 %v312, %v5514
    %v5516 = vand.u32 %v5515, 4294901760
    %5517 = vmatpush1.msra.mxu0 %v5516
    %v5518 = vand.u32 %v309, 4294901760
    %v5519 = vsub.f32 %v309, %v5518
    %v5520 = vand.u32 %v5519, 4294901760
    %5521 = vmatprep.subr.mxu0 %v5520
    %v5522 = vand.u32 %v308, 4294901760
    %v5523 = vsub.f32 %v308, %v5522
    %v5524 = vand.u32 %v5523, 4294901760
    %5525 = vmatpush1.msra.mxu0 %v5524
    %v5526 = vand.u32 %v305, 4294901760
    %v5527 = vsub.f32 %v305, %v5526
    %v5528 = vand.u32 %v5527, 4294901760
    %5529 = vmatprep.subr.mxu0 %v5528
    %v5530 = vand.u32 %v304, 4294901760
    %v5531 = vsub.f32 %v304, %v5530
    %v5532 = vand.u32 %v5531, 4294901760
    %5533 = vmatpush1.msra.mxu0 %v5532
    %v5534 = vand.u32 %v301, 4294901760
    %v5535 = vsub.f32 %v301, %v5534
    %v5536 = vand.u32 %v5535, 4294901760
    %5537 = vmatprep.subr.mxu0 %v5536
    %v5538 = vand.u32 %v300, 4294901760
    %v5539 = vsub.f32 %v300, %v5538
    %v5540 = vand.u32 %v5539, 4294901760
    %5541 = vmatpush1.msra.mxu0 %v5540
    %v5542 = vand.u32 %v425, 4294901760
    %v5543 = vsub.f32 %v425, %v5542
    %v5544 = vand.u32 %v5543, 4294901760
    %5545 = vmatprep.subr.mxu0 %v5544
    %v5546 = vand.u32 %v424, 4294901760
    %v5547 = vsub.f32 %v424, %v5546
    %v5548 = vand.u32 %v5547, 4294901760
    %5549 = vmatpush2.msra.mxu0 %v5548
    %v5550 = vand.u32 %v421, 4294901760
    %v5551 = vsub.f32 %v421, %v5550
    %v5552 = vand.u32 %v5551, 4294901760
    %5553 = vmatprep.subr.mxu0 %v5552
    %v5554 = vand.u32 %v420, 4294901760
    %v5555 = vsub.f32 %v420, %v5554
    %v5556 = vand.u32 %v5555, 4294901760
    %5557 = vmatpush2.msra.mxu0 %v5556
    %v5558 = vand.u32 %v417, 4294901760
    %v5559 = vsub.f32 %v417, %v5558
    %v5560 = vand.u32 %v5559, 4294901760
    %5561 = vmatprep.subr.mxu0 %v5560
    %v5562 = vand.u32 %v416, 4294901760
    %v5563 = vsub.f32 %v416, %v5562
    %v5564 = vand.u32 %v5563, 4294901760
    %5565 = vmatpush2.msra.mxu0 %v5564
    %v5566 = vand.u32 %v413, 4294901760
    %v5567 = vsub.f32 %v413, %v5566
    %v5568 = vand.u32 %v5567, 4294901760
    %5569 = vmatprep.subr.mxu0 %v5568
    %v5570 = vand.u32 %v412, 4294901760
    %v5571 = vsub.f32 %v412, %v5570
    %v5572 = vand.u32 %v5571, 4294901760
    %5573 = vmatpush2.msra.mxu0 %v5572
    %v5574 = vand.u32 %v409, 4294901760
    %v5575 = vsub.f32 %v409, %v5574
    %v5576 = vand.u32 %v5575, 4294901760
    %5577 = vmatprep.subr.mxu0 %v5576
    %v5578 = vand.u32 %v408, 4294901760
    %v5579 = vsub.f32 %v408, %v5578
    %v5580 = vand.u32 %v5579, 4294901760
    %5581 = vmatpush2.msra.mxu0 %v5580
    %v5582 = vand.u32 %v405, 4294901760
    %v5583 = vsub.f32 %v405, %v5582
    %v5584 = vand.u32 %v5583, 4294901760
    %5585 = vmatprep.subr.mxu0 %v5584
    %v5586 = vand.u32 %v404, 4294901760
    %v5587 = vsub.f32 %v404, %v5586
    %v5588 = vand.u32 %v5587, 4294901760
    %5589 = vmatpush2.msra.mxu0 %v5588
    %v5590 = vand.u32 %v401, 4294901760
    %v5591 = vsub.f32 %v401, %v5590
    %v5592 = vand.u32 %v5591, 4294901760
    %5593 = vmatprep.subr.mxu0 %v5592
    %v5594 = vand.u32 %v400, 4294901760
    %v5595 = vsub.f32 %v400, %v5594
    %v5596 = vand.u32 %v5595, 4294901760
    %5597 = vmatpush2.msra.mxu0 %v5596
    %v5598 = vand.u32 %v397, 4294901760
    %v5599 = vsub.f32 %v397, %v5598
    %v5600 = vand.u32 %v5599, 4294901760
    %5601 = vmatprep.subr.mxu0 %v5600
    %v5602 = vand.u32 %v396, 4294901760
    %v5603 = vsub.f32 %v396, %v5602
    %v5604 = vand.u32 %v5603, 4294901760
    %5605 = vmatpush2.msra.mxu0 %v5604
    %v5606 = vand.u32 %v393, 4294901760
    %v5607 = vsub.f32 %v393, %v5606
    %v5608 = vand.u32 %v5607, 4294901760
    %5609 = vmatprep.subr.mxu0 %v5608
    %v5610 = vand.u32 %v392, 4294901760
    %v5611 = vsub.f32 %v392, %v5610
    %v5612 = vand.u32 %v5611, 4294901760
    %5613 = vmatpush2.msra.mxu0 %v5612
    %v5614 = vand.u32 %v389, 4294901760
    %v5615 = vsub.f32 %v389, %v5614
    %v5616 = vand.u32 %v5615, 4294901760
    %5617 = vmatprep.subr.mxu0 %v5616
    %v5618 = vand.u32 %v388, 4294901760
    %v5619 = vsub.f32 %v388, %v5618
    %v5620 = vand.u32 %v5619, 4294901760
    %5621 = vmatpush2.msra.mxu0 %v5620
    %v5622 = vand.u32 %v385, 4294901760
    %v5623 = vsub.f32 %v385, %v5622
    %v5624 = vand.u32 %v5623, 4294901760
    %5625 = vmatprep.subr.mxu0 %v5624
    %v5626 = vand.u32 %v384, 4294901760
    %v5627 = vsub.f32 %v384, %v5626
    %v5628 = vand.u32 %v5627, 4294901760
    %5629 = vmatpush2.msra.mxu0 %v5628
    %v5630 = vand.u32 %v381, 4294901760
    %v5631 = vsub.f32 %v381, %v5630
    %v5632 = vand.u32 %v5631, 4294901760
    %5633 = vmatprep.subr.mxu0 %v5632
    %v5634 = vand.u32 %v380, 4294901760
    %v5635 = vsub.f32 %v380, %v5634
    %v5636 = vand.u32 %v5635, 4294901760
    %5637 = vmatpush2.msra.mxu0 %v5636
    %v5638 = vand.u32 %v377, 4294901760
    %v5639 = vsub.f32 %v377, %v5638
    %v5640 = vand.u32 %v5639, 4294901760
    %5641 = vmatprep.subr.mxu0 %v5640
    %v5642 = vand.u32 %v376, 4294901760
    %v5643 = vsub.f32 %v376, %v5642
    %v5644 = vand.u32 %v5643, 4294901760
    %5645 = vmatpush2.msra.mxu0 %v5644
    %v5646 = vand.u32 %v373, 4294901760
    %v5647 = vsub.f32 %v373, %v5646
    %v5648 = vand.u32 %v5647, 4294901760
    %5649 = vmatprep.subr.mxu0 %v5648
    %v5650 = vand.u32 %v372, 4294901760
    %v5651 = vsub.f32 %v372, %v5650
    %v5652 = vand.u32 %v5651, 4294901760
    %5653 = vmatpush2.msra.mxu0 %v5652
    %v5654 = vand.u32 %v369, 4294901760
    %v5655 = vsub.f32 %v369, %v5654
    %v5656 = vand.u32 %v5655, 4294901760
    %5657 = vmatprep.subr.mxu0 %v5656
    %v5658 = vand.u32 %v368, 4294901760
    %v5659 = vsub.f32 %v368, %v5658
    %v5660 = vand.u32 %v5659, 4294901760
    %5661 = vmatpush2.msra.mxu0 %v5660
    %v5662 = vand.u32 %v365, 4294901760
    %v5663 = vsub.f32 %v365, %v5662
    %v5664 = vand.u32 %v5663, 4294901760
    %5665 = vmatprep.subr.mxu0 %v5664
    %v5666 = vand.u32 %v364, 4294901760
    %v5667 = vsub.f32 %v364, %v5666
    %v5668 = vand.u32 %v5667, 4294901760
    %5669 = vmatpush2.msra.mxu0 %v5668
    %v5670 = vand.u32 %v165, 4294901760
    %5671 = vmatprep.mubr.f32.mxu0 %v5670
    %v5672 = vand.u32 %v164, 4294901760
    %5673 = vmatmul.mubr.f32.gmra.mxu0 %v5672
    %v5674 = vpop.f32.mrf.mxu0
    %v5675 = vadd.f32 %v5398, %v5674
    %v5676 = vpop.f32.mrf.mxu0
    %v5677 = vadd.f32 %v5400, %v5676
    %v5678 = vand.u32 %v169, 4294901760
    %5679 = vmatprep.mubr.f32.mxu0 %v5678
    %v5680 = vand.u32 %v168, 4294901760
    %5681 = vmatmul.mubr.f32.gmra.mxu0 %v5680
    %v5682 = vpop.f32.mrf.mxu0
    %v5683 = vadd.f32 %v5410, %v5682
    %v5684 = vpop.f32.mrf.mxu0
    %v5685 = vadd.f32 %v5412, %v5684
    %5686 = vdwg.mxu0
    %v5687 = vand.u32 %v361, 4294901760
    %5688 = vmatprep.subr.mxu0 %v5687
    %v5689 = vand.u32 %v360, 4294901760
    %5690 = vmatpush1.msra.mxu0 %v5689
    %v5691 = vand.u32 %v357, 4294901760
    %5692 = vmatprep.subr.mxu0 %v5691
    %v5693 = vand.u32 %v356, 4294901760
    %5694 = vmatpush1.msra.mxu0 %v5693
    %v5695 = vand.u32 %v353, 4294901760
    %5696 = vmatprep.subr.mxu0 %v5695
    %v5697 = vand.u32 %v352, 4294901760
    %5698 = vmatpush1.msra.mxu0 %v5697
    %v5699 = vand.u32 %v349, 4294901760
    %5700 = vmatprep.subr.mxu0 %v5699
    %v5701 = vand.u32 %v348, 4294901760
    %5702 = vmatpush1.msra.mxu0 %v5701
    %v5703 = vand.u32 %v345, 4294901760
    %5704 = vmatprep.subr.mxu0 %v5703
    %v5705 = vand.u32 %v344, 4294901760
    %5706 = vmatpush1.msra.mxu0 %v5705
    %v5707 = vand.u32 %v341, 4294901760
    %5708 = vmatprep.subr.mxu0 %v5707
    %v5709 = vand.u32 %v340, 4294901760
    %5710 = vmatpush1.msra.mxu0 %v5709
    %v5711 = vand.u32 %v337, 4294901760
    %5712 = vmatprep.subr.mxu0 %v5711
    %v5713 = vand.u32 %v336, 4294901760
    %5714 = vmatpush1.msra.mxu0 %v5713
    %v5715 = vand.u32 %v333, 4294901760
    %5716 = vmatprep.subr.mxu0 %v5715
    %v5717 = vand.u32 %v332, 4294901760
    %5718 = vmatpush1.msra.mxu0 %v5717
    %v5719 = vand.u32 %v329, 4294901760
    %5720 = vmatprep.subr.mxu0 %v5719
    %v5721 = vand.u32 %v328, 4294901760
    %5722 = vmatpush1.msra.mxu0 %v5721
    %v5723 = vand.u32 %v325, 4294901760
    %5724 = vmatprep.subr.mxu0 %v5723
    %v5725 = vand.u32 %v324, 4294901760
    %5726 = vmatpush1.msra.mxu0 %v5725
    %v5727 = vand.u32 %v321, 4294901760
    %5728 = vmatprep.subr.mxu0 %v5727
    %v5729 = vand.u32 %v320, 4294901760
    %5730 = vmatpush1.msra.mxu0 %v5729
    %v5731 = vand.u32 %v317, 4294901760
    %5732 = vmatprep.subr.mxu0 %v5731
    %v5733 = vand.u32 %v316, 4294901760
    %5734 = vmatpush1.msra.mxu0 %v5733
    %v5735 = vand.u32 %v313, 4294901760
    %5736 = vmatprep.subr.mxu0 %v5735
    %v5737 = vand.u32 %v312, 4294901760
    %5738 = vmatpush1.msra.mxu0 %v5737
    %v5739 = vand.u32 %v309, 4294901760
    %5740 = vmatprep.subr.mxu0 %v5739
    %v5741 = vand.u32 %v308, 4294901760
    %5742 = vmatpush1.msra.mxu0 %v5741
    %v5743 = vand.u32 %v305, 4294901760
    %5744 = vmatprep.subr.mxu0 %v5743
    %v5745 = vand.u32 %v304, 4294901760
    %5746 = vmatpush1.msra.mxu0 %v5745
    %v5747 = vand.u32 %v301, 4294901760
    %5748 = vmatprep.subr.mxu0 %v5747
    %v5749 = vand.u32 %v300, 4294901760
    %5750 = vmatpush1.msra.mxu0 %v5749
    %v5751 = vand.u32 %v425, 4294901760
    %5752 = vmatprep.subr.mxu0 %v5751
    %v5753 = vand.u32 %v424, 4294901760
    %5754 = vmatpush2.msra.mxu0 %v5753
    %v5755 = vand.u32 %v421, 4294901760
    %5756 = vmatprep.subr.mxu0 %v5755
    %v5757 = vand.u32 %v420, 4294901760
    %5758 = vmatpush2.msra.mxu0 %v5757
    %v5759 = vand.u32 %v417, 4294901760
    %5760 = vmatprep.subr.mxu0 %v5759
    %v5761 = vand.u32 %v416, 4294901760
    %5762 = vmatpush2.msra.mxu0 %v5761
    %v5763 = vand.u32 %v413, 4294901760
    %5764 = vmatprep.subr.mxu0 %v5763
    %v5765 = vand.u32 %v412, 4294901760
    %5766 = vmatpush2.msra.mxu0 %v5765
    %v5767 = vand.u32 %v409, 4294901760
    %5768 = vmatprep.subr.mxu0 %v5767
    %v5769 = vand.u32 %v408, 4294901760
    %5770 = vmatpush2.msra.mxu0 %v5769
    %v5771 = vand.u32 %v405, 4294901760
    %5772 = vmatprep.subr.mxu0 %v5771
    %v5773 = vand.u32 %v404, 4294901760
    %5774 = vmatpush2.msra.mxu0 %v5773
    %v5775 = vand.u32 %v401, 4294901760
    %5776 = vmatprep.subr.mxu0 %v5775
    %v5777 = vand.u32 %v400, 4294901760
    %5778 = vmatpush2.msra.mxu0 %v5777
    %v5779 = vand.u32 %v397, 4294901760
    %5780 = vmatprep.subr.mxu0 %v5779
    %v5781 = vand.u32 %v396, 4294901760
    %5782 = vmatpush2.msra.mxu0 %v5781
    %v5783 = vand.u32 %v393, 4294901760
    %5784 = vmatprep.subr.mxu0 %v5783
    %v5785 = vand.u32 %v392, 4294901760
    %5786 = vmatpush2.msra.mxu0 %v5785
    %v5787 = vand.u32 %v389, 4294901760
    %5788 = vmatprep.subr.mxu0 %v5787
    %v5789 = vand.u32 %v388, 4294901760
    %5790 = vmatpush2.msra.mxu0 %v5789
    %v5791 = vand.u32 %v385, 4294901760
    %5792 = vmatprep.subr.mxu0 %v5791
    %v5793 = vand.u32 %v384, 4294901760
    %5794 = vmatpush2.msra.mxu0 %v5793
    %v5795 = vand.u32 %v381, 4294901760
    %5796 = vmatprep.subr.mxu0 %v5795
    %v5797 = vand.u32 %v380, 4294901760
    %5798 = vmatpush2.msra.mxu0 %v5797
    %v5799 = vand.u32 %v377, 4294901760
    %5800 = vmatprep.subr.mxu0 %v5799
    %v5801 = vand.u32 %v376, 4294901760
    %5802 = vmatpush2.msra.mxu0 %v5801
    %v5803 = vand.u32 %v373, 4294901760
    %5804 = vmatprep.subr.mxu0 %v5803
    %v5805 = vand.u32 %v372, 4294901760
    %5806 = vmatpush2.msra.mxu0 %v5805
    %v5807 = vand.u32 %v369, 4294901760
    %5808 = vmatprep.subr.mxu0 %v5807
    %v5809 = vand.u32 %v368, 4294901760
    %5810 = vmatpush2.msra.mxu0 %v5809
    %v5811 = vand.u32 %v365, 4294901760
    %5812 = vmatprep.subr.mxu0 %v5811
    %v5813 = vand.u32 %v364, 4294901760
    %5814 = vmatpush2.msra.mxu0 %v5813
    %v5815 = vand.u32 %v165, 4294901760
    %5816 = vmatprep.mubr.f32.mxu0 %v5815
    %v5817 = vand.u32 %v164, 4294901760
    %5818 = vmatmul.mubr.f32.gmra.mxu0 %v5817
    %v5819 = vpop.f32.mrf.mxu0
    %v5820 = vadd.f32 %v5675, %v5819
    %v5821 = vpop.f32.mrf.mxu0
    %v5822 = vadd.f32 %v5677, %v5821
    %v5823 = vand.u32 %v169, 4294901760
    %5824 = vmatprep.mubr.f32.mxu0 %v5823
    %v5825 = vand.u32 %v168, 4294901760
    %5826 = vmatmul.mubr.f32.gmra.mxu0 %v5825
    %v5827 = vpop.f32.mrf.mxu0
    %v5828 = vadd.f32 %v5683, %v5827
    %v5829 = vpop.f32.mrf.mxu0
    %v5830 = vadd.f32 %v5685, %v5829
    %5831 = vdwg.mxu0
    %5832 = vst [vmem:[#allocation7] sm:$0xff] %v3128
    %5833 = vst [vmem:[#allocation7 + $0x8] sm:$0xff] %v3130
    %5834 = vst [vmem:[#allocation7 + $0x10] sm:$0xff] %v5820
    %5835 = vst [vmem:[#allocation7 + $0x18] sm:$0xff] %v5822
    %5836 = vst [vmem:[#allocation7 + $0x20] sm:$0xff] %v3136
    %5837 = vst [vmem:[#allocation7 + $0x28] sm:$0xff] %v3138
    %5838 = vst [vmem:[#allocation7 + $0x30] sm:$0xff] %v5828
    %5839 = vst [vmem:[#allocation7 + $0x38] sm:$0xff] %v5830
    // Predicated region
    $region30: #{prenorm_linear_pallas.1} parent=1 // pred_check
      _
    $region31: #{prenorm_linear_pallas.1} parent=1 // pred_check_branch
      %5841 = sbr.rel (0) target = $region33
    $region32: #{prenorm_linear_pallas.1} parent=1 // pred_region
      %s5843 = ssub.s32 1024, 1024
      %5844 = vsyncadd [#allocation4], %s5843
      %s5845 = sshll.u32 [#allocation7], 4
      %s5846 = int_to_ptr.vmem [resolvable:$true] %s5845
      %5851 = dma.vmem_to_hbm [thread:$0]  %s5846, 1024, %s5, [#allocation4], 512, 512, 32
    $region33: #{prenorm_linear_pallas.1} parent=1 // pred_fallthru
      _
    // Predicated region
    $region34: #{prenorm_linear_pallas.1} parent=1 // pred_check
      _
    $region35: #{prenorm_linear_pallas.1} parent=1 // pred_check_branch
      %5853 = sbr.rel (0) target = $region37
    $region36: #{prenorm_linear_pallas.1} parent=1 // pred_region
      %5854 = dma.done [#allocation4], 1024
    $region37: #{prenorm_linear_pallas.1} parent=1 // pred_fallthru
      _
    %5855 = vsyncpa [#allocation3], 1
    %5856 = vsyncpa [#allocation6], 1
    %5857 = vsyncpa [#allocation4], 1

</llo_original>
